<compile_context>
chip_gen: v5e
topology: v5e:2x2
jax: 0.10.0
libtpu: 0.0.40
codegen_flags: <defaults>
</compile_context>

<pallas_src>
import functools

import jax
import jax.numpy as jnp
from jax.experimental import pallas as pl
from jax.experimental.pallas import tpu as pltpu

EPS = 1e-5                      # torch.nn.BatchNorm2d default
LANE = 128                      # channel padding target (TPU lane width)
VMEM_LIMIT = 32 * 1024 * 1024   # explicit scoped-VMEM limit, safe on v5e/v6e/v7x


def _round_up(x, m):
    return (x + m - 1) // m * m


def _ds(start, size, stride):
    return pl.ds(start, size) if stride == 1 else pl.ds(start, size, stride=stride)


# ------------------------------ Pallas kernels ------------------------------ #
def _conv_stats_kernel(x_ref, w_ref, out_ref, stat_ref, *, oh, ow, stride, cdt):
    """3x3 conv (input already zero-padded) for one image + per-channel sum/sumsq.

    x_ref:    (1, H+2, W+2, Cin) f32
    w_ref:    (9, Cin, OCp)      compute dtype, tap order k = kh*3 + kw
    out_ref:  (1, OH, OW, OCp)   f32 raw conv output (pre-BN)
    stat_ref: (1, 2, OCp)        f32 [sum; sum of squares] over this image's rows
    """
    cin = x_ref.shape[3]
    ocp = w_ref.shape[2]
    acc = jnp.zeros((oh * ow, ocp), jnp.float32)
    for kh in range(3):
        for kw in range(3):
            tap = x_ref[0, _ds(kh, oh, stride), _ds(kw, ow, stride), :]   # (oh, ow, cin)
            acc = acc + jnp.dot(tap.reshape(oh * ow, cin).astype(cdt),
                                w_ref[kh * 3 + kw],
                                preferred_element_type=jnp.float32)
    out_ref[0] = acc.reshape(oh, ow, ocp)
    stat_ref[0] = jnp.concatenate(
        [jnp.sum(acc, axis=0, keepdims=True),
         jnp.sum(acc * acc, axis=0, keepdims=True)], axis=0)


def _bnrelu_conv_stats_kernel(y_ref, scale_ref, shift_ref, w_ref,
                              out_ref, stat_ref, pad_ref, *, oh, ow, cdt):
    """Fused BN1+ReLU1 -> zero-pad halo (VMEM scratch) -> 3x3 conv2 -> stats (one image).

    y_ref:        (1, OH, OW, OCp) f32   raw conv-1 output
    scale/shift:  (1, OCp)         f32   folded BN-1 affine
    w_ref:        (9, OCp, OCp)    compute dtype
    out_ref:      (1, OH, OW, OCp) f32   raw conv-2 output
    stat_ref:     (1, 2, OCp)      f32
    pad_ref:      VMEM scratch (OH+2, OW+2, OCp) f32
    """
    ocp = w_ref.shape[2]
    act = jnp.maximum(y_ref[0] * scale_ref[...] + shift_ref[...], 0.0)   # f32
    pad_ref[...] = jnp.zeros_like(pad_ref)
    pad_ref[pl.ds(1, oh), pl.ds(1, ow), :] = act
    acc = jnp.zeros((oh * ow, ocp), jnp.float32)
    for kh in range(3):
        for kw in range(3):
            tap = pad_ref[pl.ds(kh, oh), pl.ds(kw, ow), :]                # (oh, ow, ocp)
            acc = acc + jnp.dot(tap.reshape(oh * ow, ocp).astype(cdt),
                                w_ref[kh * 3 + kw],
                                preferred_element_type=jnp.float32)
    out_ref[0] = acc.reshape(oh, ow, ocp)
    stat_ref[0] = jnp.concatenate(
        [jnp.sum(acc, axis=0, keepdims=True),
         jnp.sum(acc * acc, axis=0, keepdims=True)], axis=0)


def _bn_relu_kernel(y_ref, scale_ref, shift_ref, o_ref):
    """Lane-dense, row-tiled normalize + ReLU (final BN2/ReLU2)."""
    o_ref[...] = jnp.maximum(y_ref[...] * scale_ref[...] + shift_ref[...], 0.0)


# ------------------------------ pallas_call wrappers ------------------------ #
def _conv_stats_call(xpad, w, n, oh, ow, stride, ocp, cdt):
    _, hp, wp, cin = xpad.shape
    kern = functools.partial(_conv_stats_kernel, oh=oh, ow=ow, stride=stride, cdt=cdt)
    flops = 2 * n * oh * ow * 9 * cin * ocp
    bytes_acc = (xpad.size * xpad.dtype.itemsize + w.size * w.dtype.itemsize
                 + n * oh * ow * ocp * 4 + n * 2 * ocp * 4)
    return pl.pallas_call(
        kern,
        out_shape=(jax.ShapeDtypeStruct((n, oh, ow, ocp), jnp.float32),
                   jax.ShapeDtypeStruct((n, 2, ocp), jnp.float32)),
        grid=(n,),
        in_specs=[pl.BlockSpec((1, hp, wp, cin), lambda i: (i, 0, 0, 0)),
                  pl.BlockSpec((9, cin, ocp), lambda i: (0, 0, 0))],
        out_specs=(pl.BlockSpec((1, oh, ow, ocp), lambda i: (i, 0, 0, 0)),
                   pl.BlockSpec((1, 2, ocp), lambda i: (i, 0, 0))),
        compiler_params=pltpu.CompilerParams(
            dimension_semantics=("parallel",), vmem_limit_bytes=VMEM_LIMIT),
        cost_estimate=pl.CostEstimate(flops=flops, transcendentals=0,
                                      bytes_accessed=bytes_acc),
    )(xpad, w)


def _bnrelu_conv_stats_call(yraw, scale, shift, w, n, oh, ow, ocp, cdt):
    kern = functools.partial(_bnrelu_conv_stats_kernel, oh=oh, ow=ow, cdt=cdt)
    flops = 2 * n * oh * ow * 9 * ocp * ocp
    bytes_acc = (yraw.size * 4 + w.size * w.dtype.itemsize
                 + n * oh * ow * ocp * 4 + n * 2 * ocp * 4)
    return pl.pallas_call(
        kern,
        out_shape=(jax.ShapeDtypeStruct((n, oh, ow, ocp), jnp.float32),
                   jax.ShapeDtypeStruct((n, 2, ocp), jnp.float32)),
        grid=(n,),
        in_specs=[pl.BlockSpec((1, oh, ow, ocp), lambda i: (i, 0, 0, 0)),
                  pl.BlockSpec((1, ocp), lambda i: (0, 0)),
                  pl.BlockSpec((1, ocp), lambda i: (0, 0)),
                  pl.BlockSpec((9, ocp, ocp), lambda i: (0, 0, 0))],
        out_specs=(pl.BlockSpec((1, oh, ow, ocp), lambda i: (i, 0, 0, 0)),
                   pl.BlockSpec((1, 2, ocp), lambda i: (i, 0, 0))),
        scratch_shapes=[pltpu.VMEM((oh + 2, ow + 2, ocp), jnp.float32)],
        compiler_params=pltpu.CompilerParams(
            dimension_semantics=("parallel",), vmem_limit_bytes=VMEM_LIMIT),
        cost_estimate=pl.CostEstimate(flops=flops, transcendentals=0,
                                      bytes_accessed=bytes_acc),
    )(yraw, scale, shift, w)


def _pick_row_tile(p, target=1024):
    """Largest multiple of 8 <= target that divides p (else the whole extent)."""
    t = min(target, p)
    t -= t % 8
    while t >= 8:
        if p % t == 0:
            return t
        t -= 8
    return p


def _bn_relu_call(y2d, scale, shift):
    p, ocp = y2d.shape
    tile = _pick_row_tile(p)
    return pl.pallas_call(
        _bn_relu_kernel,
        out_shape=jax.ShapeDtypeStruct((p, ocp), jnp.float32),
        grid=(p // tile,),
        in_specs=[pl.BlockSpec((tile, ocp), lambda i: (i, 0)),
                  pl.BlockSpec((1, ocp), lambda i: (0, 0)),
                  pl.BlockSpec((1, ocp), lambda i: (0, 0))],
        out_specs=pl.BlockSpec((tile, ocp), lambda i: (i, 0)),
        compiler_params=pltpu.CompilerParams(
            dimension_semantics=("parallel",), vmem_limit_bytes=VMEM_LIMIT),
    )(y2d, scale, shift)


# --------------------------------- JAX glue --------------------------------- #
def _pad_vec(v, ocp):
    return jnp.pad(v.astype(jnp.float32), (0, ocp - v.shape[0]))


def _w_to_taps(w_oihw, ocp, icp=None, dtype=jnp.float32):
    """torch Conv2d weight (OC, IC, 3, 3) -> (9, ICp, OCp), tap order k = kh*3 + kw."""
    oc, ic = w_oihw.shape[0], w_oihw.shape[1]
    icp = ic if icp is None else icp
    w = jnp.transpose(w_oihw, (2, 3, 1, 0)).reshape(9, ic, oc)
    w = jnp.pad(w, ((0, 0), (0, icp - ic), (0, ocp - oc)))
    return w.astype(dtype)


def _bn_coeffs(pstats, gamma_p, beta_p, count):
    """Fold per-image sum/sumsq partials into per-channel scale/shift (training-mode BN)."""
    s = jnp.sum(pstats[:, 0, :], axis=0)
    sq = jnp.sum(pstats[:, 1, :], axis=0)
    mean = s / count
    var = jnp.maximum(sq / count - mean * mean, 0.0)   # biased batch variance
    scale = gamma_p * jax.lax.rsqrt(var + EPS)
    shift = beta_p - mean * scale
    return scale[None, :], shift[None, :]


def non_residual_block(x_nchw, params, stride, compute_dtype=jnp.bfloat16):
    """Forward pass of NonResidualBlock. compute_dtype is the MXU operand dtype."""
    x = jnp.transpose(x_nchw, (0, 2, 3, 1)).astype(jnp.float32)   # NCHW -> NHWC
    n, h, w_, _ = x.shape
    oc = params["w1"].shape[0]
    ocp = _round_up(oc, LANE)
    oh = (h + 2 - 3) // stride + 1
    ow = (w_ + 2 - 3) // stride + 1
    count = n * oh * ow

    w1 = _w_to_taps(params["w1"], ocp, dtype=compute_dtype)            # (9, Cin, OCp)
    w2 = _w_to_taps(params["w2"], ocp, icp=ocp, dtype=compute_dtype)   # (9, OCp, OCp)
    g1, b1 = _pad_vec(params["g1"], ocp), _pad_vec(params["be1"], ocp)
    g2, b2 = _pad_vec(params["g2"], ocp), _pad_vec(params["be2"], ocp)
    # Conv biases are intentionally not applied: training-mode BN right after each conv
    # cancels them exactly in (y - mean).

    # Stage 1: conv1 + per-image BN-stat partials (zero halo applied here).
    xpad = jnp.pad(x, ((0, 0), (1, 1), (1, 1), (0, 0)))
    yraw1, pstats1 = _conv_stats_call(xpad, w1, n, oh, ow, stride, ocp, compute_dtype)
    scale1, shift1 = _bn_coeffs(pstats1, g1, b1, count)

    # Stage 2: fused BN1 + ReLU1 + conv2 + BN-stat partials (halo built in VMEM scratch).
    yraw2, pstats2 = _bnrelu_conv_stats_call(yraw1, scale1, shift1, w2,
                                             n, oh, ow, ocp, compute_dtype)
    scale2, shift2 = _bn_coeffs(pstats2, g2, b2, count)

    # Stage 3: lane-dense row-tiled BN2 + ReLU2 over the flattened rows.
    out = _bn_relu_call(yraw2.reshape(count, ocp), scale2, shift2)
    out = out[:, :oc].reshape(n, oh, ow, oc)
    return jnp.transpose(out, (0, 3, 1, 2))                           # NHWC -> NCHW
    # TODO(synk): BatchNorm running_mean/var buffer updates (training-mode side effect
    # of the torch module, not part of the returned tensor) are not produced.


def init_params(key, in_channels, out_channels):
    k1, k2, k3, k4 = jax.random.split(key, 4)
    fan1 = in_channels * 9
    fan2 = out_channels * 9
    w1 = jax.random.uniform(k1, (out_channels, in_channels, 3, 3), jnp.float32,
                            -1.0, 1.0) / jnp.sqrt(float(fan1))
    b1 = jax.random.uniform(k2, (out_channels,), jnp.float32, -1.0, 1.0) / jnp.sqrt(float(fan1))
    w2 = jax.random.uniform(k3, (out_channels, out_channels, 3, 3), jnp.float32,
                            -1.0, 1.0) / jnp.sqrt(float(fan2))
    b2 = jax.random.uniform(k4, (out_channels,), jnp.float32, -1.0, 1.0) / jnp.sqrt(float(fan2))
    return dict(
        w1=w1, b1=b1,
        g1=jnp.ones((out_channels,), jnp.float32), be1=jnp.zeros((out_channels,), jnp.float32),
        w2=w2, b2=b2,
        g2=jnp.ones((out_channels,), jnp.float32), be2=jnp.zeros((out_channels,), jnp.float32),
    )


# ------------------------------ pure-JAX reference --------------------------- #
def ref_forward(x, params, stride):
    def conv(x, w, b, s):
        y = jax.lax.conv_general_dilated(
            x, w, (s, s), ((1, 1), (1, 1)),
            dimension_numbers=("NCHW", "OIHW", "NCHW"))
        return y + b[None, :, None, None]

    def bn_relu(y, g, be):
        mean = jnp.mean(y, axis=(0, 2, 3), keepdims=True)
        var = jnp.mean(jnp.square(y - mean), axis=(0, 2, 3), keepdims=True)
        y = (y - mean) * jax.lax.rsqrt(var + EPS) * g[None, :, None, None] + be[None, :, None, None]
        return jnp.maximum(y, 0.0)

    y = bn_relu(conv(x, params["w1"], params["b1"], stride), params["g1"], params["be1"])
    y = bn_relu(conv(y, params["w2"], params["b2"], 1), params["g2"], params["be2"])
    return y


if __name__ == "__main__":
    N, Cin, H, W = 2, 4, 16, 16
    Cout, stride = 8, 1

    key = jax.random.PRNGKey(0)
    kx, kp = jax.random.split(key)
    x = jax.random.normal(kx, (N, Cin, H, W), jnp.float32)
    params = init_params(kp, Cin, Cout)

    ref = ref_forward(x, params, stride)

    # f32 compute path: tight check of the module semantics.
    fwd_f32 = jax.jit(functools.partial(non_residual_block, stride=stride,
                                        compute_dtype=jnp.float32))
    out_f32 = jax.block_until_ready(fwd_f32(x, params))
    assert out_f32.shape == ref.shape, (out_f32.shape, ref.shape)
    err_f32 = float(jnp.max(jnp.abs(out_f32 - ref)))
    assert jnp.allclose(out_f32, ref, rtol=1e-3, atol=1e-3), err_f32

    # Default bf16 MXU path (f32 accumulation + f32 BN math): looser tolerance vs f32 ref.
    fwd_bf16 = jax.jit(functools.partial(non_residual_block, stride=stride))
    out_bf16 = jax.block_until_ready(fwd_bf16(x, params))
    err_bf16 = float(jnp.max(jnp.abs(out_bf16 - ref)))
    assert jnp.allclose(out_bf16, ref, rtol=5e-2, atol=5e-2), err_bf16

    print("KERNEL_OK")
</pallas_src>

<mosaic_0001>
module attributes {stable_mosaic.version = 11 : i64} {
  func.func @_conv_stats_kernel(%arg0: i32, %arg1: memref<1x18x18x4xf32, #tpu.memory_space<vmem>>, %arg2: memref<9x4x128xf32, #tpu.memory_space<vmem>>, %arg3: memref<1x16x16x128xf32, #tpu.memory_space<vmem>>, %arg4: memref<1x2x128xf32, #tpu.memory_space<vmem>>) attributes {dimension_semantics = [#tpu.dimension_semantics<parallel>], iteration_bounds = array<i64: 2>, scalar_prefetch = 0 : i64, scratch_operands = 0 : i64, tpu.core_type = #tpu.core_type<tc>, window_params = [{transform_indices = @transform_0, window_bounds = array<i64: 1, 18, 18, 4>}, {pipeline_mode = #tpu.pipeline_mode<synchronous>, transform_indices = @transform_1, window_bounds = array<i64: 9, 4, 128>}, {transform_indices = @transform_2, window_bounds = array<i64: 1, 16, 16, 128>}, {transform_indices = @transform_3, window_bounds = array<i64: 1, 2, 128>}]} {
    %cst = arith.constant 0.000000e+00 : f32
    %0 = vector.broadcast %cst : f32 to vector<256x128xf32>
    %c0 = arith.constant 0 : index
    %c0_0 = arith.constant 0 : index
    %c0_1 = arith.constant 0 : index
    %c0_2 = arith.constant 0 : index
    %1 = vector.load %arg1[%c0, %c0_0, %c0_1, %c0_2] : memref<1x18x18x4xf32, #tpu.memory_space<vmem>>, vector<1x16x16x4xf32>
    %2 = vector.shape_cast %1 : vector<1x16x16x4xf32> to vector<16x16x4xf32>
    %3 = vector.shape_cast %2 : vector<16x16x4xf32> to vector<256x4xf32>
    %c0_3 = arith.constant 0 : index
    %c0_4 = arith.constant 0 : index
    %c0_5 = arith.constant 0 : index
    %4 = vector.load %arg2[%c0_3, %c0_4, %c0_5] : memref<9x4x128xf32, #tpu.memory_space<vmem>>, vector<1x4x128xf32>
    %5 = vector.shape_cast %4 : vector<1x4x128xf32> to vector<4x128xf32>
    %cst_6 = arith.constant dense<0.000000e+00> : vector<256x128xf32>
    %6 = tpu.matmul %3, %5, %cst_6 {dimension_numbers = #tpu.dot_dimension_numbers<[1], [0], [0], [1], [0, 0, 1, 1], [], []>} : vector<256x4xf32>, vector<4x128xf32>, vector<256x128xf32> -> vector<256x128xf32>
    %7 = arith.addf %0, %6 : vector<256x128xf32>
    %c0_7 = arith.constant 0 : index
    %c0_8 = arith.constant 0 : index
    %c1 = arith.constant 1 : index
    %c0_9 = arith.constant 0 : index
    %8 = vector.load %arg1[%c0_7, %c0_8, %c1, %c0_9] : memref<1x18x18x4xf32, #tpu.memory_space<vmem>>, vector<1x16x16x4xf32>
    %9 = vector.shape_cast %8 : vector<1x16x16x4xf32> to vector<16x16x4xf32>
    %10 = vector.shape_cast %9 : vector<16x16x4xf32> to vector<256x4xf32>
    %c1_10 = arith.constant 1 : index
    %c0_11 = arith.constant 0 : index
    %c0_12 = arith.constant 0 : index
    %11 = vector.load %arg2[%c1_10, %c0_11, %c0_12] : memref<9x4x128xf32, #tpu.memory_space<vmem>>, vector<1x4x128xf32>
    %12 = vector.shape_cast %11 : vector<1x4x128xf32> to vector<4x128xf32>
    %cst_13 = arith.constant dense<0.000000e+00> : vector<256x128xf32>
    %13 = tpu.matmul %10, %12, %cst_13 {dimension_numbers = #tpu.dot_dimension_numbers<[1], [0], [0], [1], [0, 0, 1, 1], [], []>} : vector<256x4xf32>, vector<4x128xf32>, vector<256x128xf32> -> vector<256x128xf32>
    %14 = arith.addf %7, %13 : vector<256x128xf32>
    %c0_14 = arith.constant 0 : index
    %c0_15 = arith.constant 0 : index
    %c2 = arith.constant 2 : index
    %c0_16 = arith.constant 0 : index
    %15 = vector.load %arg1[%c0_14, %c0_15, %c2, %c0_16] : memref<1x18x18x4xf32, #tpu.memory_space<vmem>>, vector<1x16x16x4xf32>
    %16 = vector.shape_cast %15 : vector<1x16x16x4xf32> to vector<16x16x4xf32>
    %17 = vector.shape_cast %16 : vector<16x16x4xf32> to vector<256x4xf32>
    %c2_17 = arith.constant 2 : index
    %c0_18 = arith.constant 0 : index
    %c0_19 = arith.constant 0 : index
    %18 = vector.load %arg2[%c2_17, %c0_18, %c0_19] : memref<9x4x128xf32, #tpu.memory_space<vmem>>, vector<1x4x128xf32>
    %19 = vector.shape_cast %18 : vector<1x4x128xf32> to vector<4x128xf32>
    %cst_20 = arith.constant dense<0.000000e+00> : vector<256x128xf32>
    %20 = tpu.matmul %17, %19, %cst_20 {dimension_numbers = #tpu.dot_dimension_numbers<[1], [0], [0], [1], [0, 0, 1, 1], [], []>} : vector<256x4xf32>, vector<4x128xf32>, vector<256x128xf32> -> vector<256x128xf32>
    %21 = arith.addf %14, %20 : vector<256x128xf32>
    %c0_21 = arith.constant 0 : index
    %c1_22 = arith.constant 1 : index
    %c0_23 = arith.constant 0 : index
    %c0_24 = arith.constant 0 : index
    %22 = vector.load %arg1[%c0_21, %c1_22, %c0_23, %c0_24] : memref<1x18x18x4xf32, #tpu.memory_space<vmem>>, vector<1x16x16x4xf32>
    %23 = vector.shape_cast %22 : vector<1x16x16x4xf32> to vector<16x16x4xf32>
    %24 = vector.shape_cast %23 : vector<16x16x4xf32> to vector<256x4xf32>
    %c3 = arith.constant 3 : index
    %c0_25 = arith.constant 0 : index
    %c0_26 = arith.constant 0 : index
    %25 = vector.load %arg2[%c3, %c0_25, %c0_26] : memref<9x4x128xf32, #tpu.memory_space<vmem>>, vector<1x4x128xf32>
    %26 = vector.shape_cast %25 : vector<1x4x128xf32> to vector<4x128xf32>
    %cst_27 = arith.constant dense<0.000000e+00> : vector<256x128xf32>
    %27 = tpu.matmul %24, %26, %cst_27 {dimension_numbers = #tpu.dot_dimension_numbers<[1], [0], [0], [1], [0, 0, 1, 1], [], []>} : vector<256x4xf32>, vector<4x128xf32>, vector<256x128xf32> -> vector<256x128xf32>
    %28 = arith.addf %21, %27 : vector<256x128xf32>
    %c0_28 = arith.constant 0 : index
    %c1_29 = arith.constant 1 : index
    %c1_30 = arith.constant 1 : index
    %c0_31 = arith.constant 0 : index
    %29 = vector.load %arg1[%c0_28, %c1_29, %c1_30, %c0_31] : memref<1x18x18x4xf32, #tpu.memory_space<vmem>>, vector<1x16x16x4xf32>
    %30 = vector.shape_cast %29 : vector<1x16x16x4xf32> to vector<16x16x4xf32>
    %31 = vector.shape_cast %30 : vector<16x16x4xf32> to vector<256x4xf32>
    %c4 = arith.constant 4 : index
    %c0_32 = arith.constant 0 : index
    %c0_33 = arith.constant 0 : index
    %32 = vector.load %arg2[%c4, %c0_32, %c0_33] : memref<9x4x128xf32, #tpu.memory_space<vmem>>, vector<1x4x128xf32>
    %33 = vector.shape_cast %32 : vector<1x4x128xf32> to vector<4x128xf32>
    %cst_34 = arith.constant dense<0.000000e+00> : vector<256x128xf32>
    %34 = tpu.matmul %31, %33, %cst_34 {dimension_numbers = #tpu.dot_dimension_numbers<[1], [0], [0], [1], [0, 0, 1, 1], [], []>} : vector<256x4xf32>, vector<4x128xf32>, vector<256x128xf32> -> vector<256x128xf32>
    %35 = arith.addf %28, %34 : vector<256x128xf32>
    %c0_35 = arith.constant 0 : index
    %c1_36 = arith.constant 1 : index
    %c2_37 = arith.constant 2 : index
    %c0_38 = arith.constant 0 : index
    %36 = vector.load %arg1[%c0_35, %c1_36, %c2_37, %c0_38] : memref<1x18x18x4xf32, #tpu.memory_space<vmem>>, vector<1x16x16x4xf32>
    %37 = vector.shape_cast %36 : vector<1x16x16x4xf32> to vector<16x16x4xf32>
    %38 = vector.shape_cast %37 : vector<16x16x4xf32> to vector<256x4xf32>
    %c5 = arith.constant 5 : index
    %c0_39 = arith.constant 0 : index
    %c0_40 = arith.constant 0 : index
    %39 = vector.load %arg2[%c5, %c0_39, %c0_40] : memref<9x4x128xf32, #tpu.memory_space<vmem>>, vector<1x4x128xf32>
    %40 = vector.shape_cast %39 : vector<1x4x128xf32> to vector<4x128xf32>
    %cst_41 = arith.constant dense<0.000000e+00> : vector<256x128xf32>
    %41 = tpu.matmul %38, %40, %cst_41 {dimension_numbers = #tpu.dot_dimension_numbers<[1], [0], [0], [1], [0, 0, 1, 1], [], []>} : vector<256x4xf32>, vector<4x128xf32>, vector<256x128xf32> -> vector<256x128xf32>
    %42 = arith.addf %35, %41 : vector<256x128xf32>
    %c0_42 = arith.constant 0 : index
    %c2_43 = arith.constant 2 : index
    %c0_44 = arith.constant 0 : index
    %c0_45 = arith.constant 0 : index
    %43 = vector.load %arg1[%c0_42, %c2_43, %c0_44, %c0_45] : memref<1x18x18x4xf32, #tpu.memory_space<vmem>>, vector<1x16x16x4xf32>
    %44 = vector.shape_cast %43 : vector<1x16x16x4xf32> to vector<16x16x4xf32>
    %45 = vector.shape_cast %44 : vector<16x16x4xf32> to vector<256x4xf32>
    %c6 = arith.constant 6 : index
    %c0_46 = arith.constant 0 : index
    %c0_47 = arith.constant 0 : index
    %46 = vector.load %arg2[%c6, %c0_46, %c0_47] : memref<9x4x128xf32, #tpu.memory_space<vmem>>, vector<1x4x128xf32>
    %47 = vector.shape_cast %46 : vector<1x4x128xf32> to vector<4x128xf32>
    %cst_48 = arith.constant dense<0.000000e+00> : vector<256x128xf32>
    %48 = tpu.matmul %45, %47, %cst_48 {dimension_numbers = #tpu.dot_dimension_numbers<[1], [0], [0], [1], [0, 0, 1, 1], [], []>} : vector<256x4xf32>, vector<4x128xf32>, vector<256x128xf32> -> vector<256x128xf32>
    %49 = arith.addf %42, %48 : vector<256x128xf32>
    %c0_49 = arith.constant 0 : index
    %c2_50 = arith.constant 2 : index
    %c1_51 = arith.constant 1 : index
    %c0_52 = arith.constant 0 : index
    %50 = vector.load %arg1[%c0_49, %c2_50, %c1_51, %c0_52] : memref<1x18x18x4xf32, #tpu.memory_space<vmem>>, vector<1x16x16x4xf32>
    %51 = vector.shape_cast %50 : vector<1x16x16x4xf32> to vector<16x16x4xf32>
    %52 = vector.shape_cast %51 : vector<16x16x4xf32> to vector<256x4xf32>
    %c7 = arith.constant 7 : index
    %c0_53 = arith.constant 0 : index
    %c0_54 = arith.constant 0 : index
    %53 = vector.load %arg2[%c7, %c0_53, %c0_54] : memref<9x4x128xf32, #tpu.memory_space<vmem>>, vector<1x4x128xf32>
    %54 = vector.shape_cast %53 : vector<1x4x128xf32> to vector<4x128xf32>
    %cst_55 = arith.constant dense<0.000000e+00> : vector<256x128xf32>
    %55 = tpu.matmul %52, %54, %cst_55 {dimension_numbers = #tpu.dot_dimension_numbers<[1], [0], [0], [1], [0, 0, 1, 1], [], []>} : vector<256x4xf32>, vector<4x128xf32>, vector<256x128xf32> -> vector<256x128xf32>
    %56 = arith.addf %49, %55 : vector<256x128xf32>
    %c0_56 = arith.constant 0 : index
    %c2_57 = arith.constant 2 : index
    %c2_58 = arith.constant 2 : index
    %c0_59 = arith.constant 0 : index
    %57 = vector.load %arg1[%c0_56, %c2_57, %c2_58, %c0_59] : memref<1x18x18x4xf32, #tpu.memory_space<vmem>>, vector<1x16x16x4xf32>
    %58 = vector.shape_cast %57 : vector<1x16x16x4xf32> to vector<16x16x4xf32>
    %59 = vector.shape_cast %58 : vector<16x16x4xf32> to vector<256x4xf32>
    %c8 = arith.constant 8 : index
    %c0_60 = arith.constant 0 : index
    %c0_61 = arith.constant 0 : index
    %60 = vector.load %arg2[%c8, %c0_60, %c0_61] : memref<9x4x128xf32, #tpu.memory_space<vmem>>, vector<1x4x128xf32>
    %61 = vector.shape_cast %60 : vector<1x4x128xf32> to vector<4x128xf32>
    %cst_62 = arith.constant dense<0.000000e+00> : vector<256x128xf32>
    %62 = tpu.matmul %59, %61, %cst_62 {dimension_numbers = #tpu.dot_dimension_numbers<[1], [0], [0], [1], [0, 0, 1, 1], [], []>} : vector<256x4xf32>, vector<4x128xf32>, vector<256x128xf32> -> vector<256x128xf32>
    %63 = arith.addf %56, %62 : vector<256x128xf32>
    %64 = vector.shape_cast %63 : vector<256x128xf32> to vector<16x16x128xf32>
    %c0_63 = arith.constant 0 : index
    %c0_64 = arith.constant 0 : index
    %c0_65 = arith.constant 0 : index
    %c0_66 = arith.constant 0 : index
    %65 = vector.load %arg3[%c0_63, %c0_64, %c0_65, %c0_66] : memref<1x16x16x128xf32, #tpu.memory_space<vmem>>, vector<1x16x16x128xf32>
    %66 = vector.shape_cast %65 : vector<1x16x16x128xf32> to vector<16x16x128xf32>
    %67 = vector.shape_cast %64 : vector<16x16x128xf32> to vector<1x16x16x128xf32>
    tpu.vector_store %arg3[%c0_63, %c0_64, %c0_65, %c0_66], %67 {strides = array<i32>} : memref<1x16x16x128xf32, #tpu.memory_space<vmem>>, vector<1x16x16x128xf32>,
    %cst_67 = arith.constant dense<0.000000e+00> : vector<128xf32>
    %68 = vector.multi_reduction <add>, %63, %cst_67 [0] : vector<256x128xf32> to vector<128xf32>
    %69 = vector.shape_cast %68 : vector<128xf32> to vector<1x128xf32>
    %70 = arith.mulf %63, %63 : vector<256x128xf32>
    %cst_68 = arith.constant dense<0.000000e+00> : vector<128xf32>
    %71 = vector.multi_reduction <add>, %70, %cst_68 [0] : vector<256x128xf32> to vector<128xf32>
    %72 = vector.shape_cast %71 : vector<128xf32> to vector<1x128xf32>
    %73 = tpu.concatenate %69, %72 in 0 : vector<1x128xf32>, vector<1x128xf32> -> vector<2x128xf32>
    %c0_69 = arith.constant 0 : index
    %c0_70 = arith.constant 0 : index
    %c0_71 = arith.constant 0 : index
    %74 = vector.load %arg4[%c0_69, %c0_70, %c0_71] : memref<1x2x128xf32, #tpu.memory_space<vmem>>, vector<1x2x128xf32>
    %75 = vector.shape_cast %74 : vector<1x2x128xf32> to vector<2x128xf32>
    %76 = vector.shape_cast %73 : vector<2x128xf32> to vector<1x2x128xf32>
    tpu.vector_store %arg4[%c0_69, %c0_70, %c0_71], %76 {strides = array<i32>} : memref<1x2x128xf32, #tpu.memory_space<vmem>>, vector<1x2x128xf32>,
    return
  }
  func.func @transform_0(%arg0: i32) -> (i32, i32, i32, i32) {
    %c0_i32 = arith.constant 0 : i32
    %c0_i32_0 = arith.constant 0 : i32
    %c0_i32_1 = arith.constant 0 : i32
    %c0_i32_2 = arith.constant 0 : i32
    return %arg0, %c0_i32, %c0_i32_0, %c0_i32_1 : i32, i32, i32, i32
  }
  func.func @transform_1(%arg0: i32) -> (i32, i32, i32) {
    %c0_i32 = arith.constant 0 : i32
    %c0_i32_0 = arith.constant 0 : i32
    %c0_i32_1 = arith.constant 0 : i32
    %c0_i32_2 = arith.constant 0 : i32
    return %c0_i32, %c0_i32_0, %c0_i32_1 : i32, i32, i32
  }
  func.func @transform_2(%arg0: i32) -> (i32, i32, i32, i32) {
    %c0_i32 = arith.constant 0 : i32
    %c0_i32_0 = arith.constant 0 : i32
    %c0_i32_1 = arith.constant 0 : i32
    %c0_i32_2 = arith.constant 0 : i32
    return %arg0, %c0_i32, %c0_i32_0, %c0_i32_1 : i32, i32, i32, i32
  }
  func.func @transform_3(%arg0: i32) -> (i32, i32, i32) {
    %c0_i32 = arith.constant 0 : i32
    %c0_i32_0 = arith.constant 0 : i32
    %c0_i32_1 = arith.constant 0 : i32
    return %arg0, %c0_i32, %c0_i32_0 : i32, i32, i32
  }
}

module attributes {stable_mosaic.version = 11 : i64} {
  func.func @_bnrelu_conv_stats_kernel(%arg0: i32, %arg1: memref<1x16x16x128xf32, #tpu.memory_space<vmem>>, %arg2: memref<1x128xf32, #tpu.memory_space<vmem>>, %arg3: memref<1x128xf32, #tpu.memory_space<vmem>>, %arg4: memref<9x128x128xf32, #tpu.memory_space<vmem>>, %arg5: memref<1x16x16x128xf32, #tpu.memory_space<vmem>>, %arg6: memref<1x2x128xf32, #tpu.memory_space<vmem>>, %arg7: memref<18x18x128xf32, #tpu.memory_space<vmem>>) attributes {dimension_semantics = [#tpu.dimension_semantics<parallel>], iteration_bounds = array<i64: 2>, scalar_prefetch = 0 : i64, scratch_operands = 1 : i64, tpu.core_type = #tpu.core_type<tc>, window_params = [{transform_indices = @transform_0, window_bounds = array<i64: 1, 16, 16, 128>}, {pipeline_mode = #tpu.pipeline_mode<synchronous>, transform_indices = @transform_1, window_bounds = array<i64: 1, 128>}, {pipeline_mode = #tpu.pipeline_mode<synchronous>, transform_indices = @transform_2, window_bounds = array<i64: 1, 128>}, {pipeline_mode = #tpu.pipeline_mode<synchronous>, transform_indices = @transform_3, window_bounds = array<i64: 9, 128, 128>}, {transform_indices = @transform_4, window_bounds = array<i64: 1, 16, 16, 128>}, {transform_indices = @transform_5, window_bounds = array<i64: 1, 2, 128>}]} {
    %c0 = arith.constant 0 : index
    %c0_0 = arith.constant 0 : index
    %c0_1 = arith.constant 0 : index
    %c0_2 = arith.constant 0 : index
    %0 = vector.load %arg1[%c0, %c0_0, %c0_1, %c0_2] : memref<1x16x16x128xf32, #tpu.memory_space<vmem>>, vector<1x16x16x128xf32>
    %1 = vector.shape_cast %0 : vector<1x16x16x128xf32> to vector<16x16x128xf32>
    %c0_3 = arith.constant 0 : index
    %c0_4 = arith.constant 0 : index
    %2 = vector.load %arg2[%c0_3, %c0_4] : memref<1x128xf32, #tpu.memory_space<vmem>>, vector<1x128xf32>
    %3 = vector.shape_cast %2 : vector<1x128xf32> to vector<1x1x128xf32>
    %4 = vector.broadcast %3 : vector<1x1x128xf32> to vector<16x16x128xf32>
    %5 = arith.mulf %1, %4 : vector<16x16x128xf32>
    %c0_5 = arith.constant 0 : index
    %c0_6 = arith.constant 0 : index
    %6 = vector.load %arg3[%c0_5, %c0_6] : memref<1x128xf32, #tpu.memory_space<vmem>>, vector<1x128xf32>
    %7 = vector.shape_cast %6 : vector<1x128xf32> to vector<1x1x128xf32>
    %8 = vector.broadcast %7 : vector<1x1x128xf32> to vector<16x16x128xf32>
    %9 = arith.addf %5, %8 : vector<16x16x128xf32>
    %cst = arith.constant 0.000000e+00 : f32
    %10 = vector.broadcast %cst : f32 to vector<16x16x128xf32>
    %11 = arith.maximumf %9, %10 : vector<16x16x128xf32>
    %cst_7 = arith.constant 0.000000e+00 : f32
    %12 = vector.broadcast %cst_7 : f32 to vector<18x18x128xf32>
    %c0_8 = arith.constant 0 : index
    %c0_9 = arith.constant 0 : index
    %c0_10 = arith.constant 0 : index
    %13 = vector.load %arg7[%c0_8, %c0_9, %c0_10] : memref<18x18x128xf32, #tpu.memory_space<vmem>>, vector<18x18x128xf32>
    tpu.vector_store %arg7[%c0_8, %c0_9, %c0_10], %12 {strides = array<i32>} : memref<18x18x128xf32, #tpu.memory_space<vmem>>, vector<18x18x128xf32>,
    %c1 = arith.constant 1 : index
    %c1_11 = arith.constant 1 : index
    %c0_12 = arith.constant 0 : index
    %14 = vector.load %arg7[%c1, %c1_11, %c0_12] : memref<18x18x128xf32, #tpu.memory_space<vmem>>, vector<16x16x128xf32>
    tpu.vector_store %arg7[%c1, %c1_11, %c0_12], %11 {strides = array<i32>} : memref<18x18x128xf32, #tpu.memory_space<vmem>>, vector<16x16x128xf32>,
    %cst_13 = arith.constant 0.000000e+00 : f32
    %15 = vector.broadcast %cst_13 : f32 to vector<256x128xf32>
    %c0_14 = arith.constant 0 : index
    %c0_15 = arith.constant 0 : index
    %c0_16 = arith.constant 0 : index
    %16 = vector.load %arg7[%c0_14, %c0_15, %c0_16] : memref<18x18x128xf32, #tpu.memory_space<vmem>>, vector<16x16x128xf32>
    %17 = vector.shape_cast %16 : vector<16x16x128xf32> to vector<256x128xf32>
    %c0_17 = arith.constant 0 : index
    %c0_18 = arith.constant 0 : index
    %c0_19 = arith.constant 0 : index
    %18 = vector.load %arg4[%c0_17, %c0_18, %c0_19] : memref<9x128x128xf32, #tpu.memory_space<vmem>>, vector<1x128x128xf32>
    %19 = vector.shape_cast %18 : vector<1x128x128xf32> to vector<128x128xf32>
    %cst_20 = arith.constant dense<0.000000e+00> : vector<256x128xf32>
    %20 = tpu.matmul %17, %19, %cst_20 {dimension_numbers = #tpu.dot_dimension_numbers<[1], [0], [0], [1], [0, 0, 1, 1], [], []>} : vector<256x128xf32>, vector<128x128xf32>, vector<256x128xf32> -> vector<256x128xf32>
    %21 = arith.addf %15, %20 : vector<256x128xf32>
    %c0_21 = arith.constant 0 : index
    %c1_22 = arith.constant 1 : index
    %c0_23 = arith.constant 0 : index
    %22 = vector.load %arg7[%c0_21, %c1_22, %c0_23] : memref<18x18x128xf32, #tpu.memory_space<vmem>>, vector<16x16x128xf32>
    %23 = vector.shape_cast %22 : vector<16x16x128xf32> to vector<256x128xf32>
    %c1_24 = arith.constant 1 : index
    %c0_25 = arith.constant 0 : index
    %c0_26 = arith.constant 0 : index
    %24 = vector.load %arg4[%c1_24, %c0_25, %c0_26] : memref<9x128x128xf32, #tpu.memory_space<vmem>>, vector<1x128x128xf32>
    %25 = vector.shape_cast %24 : vector<1x128x128xf32> to vector<128x128xf32>
    %cst_27 = arith.constant dense<0.000000e+00> : vector<256x128xf32>
    %26 = tpu.matmul %23, %25, %cst_27 {dimension_numbers = #tpu.dot_dimension_numbers<[1], [0], [0], [1], [0, 0, 1, 1], [], []>} : vector<256x128xf32>, vector<128x128xf32>, vector<256x128xf32> -> vector<256x128xf32>
    %27 = arith.addf %21, %26 : vector<256x128xf32>
    %c0_28 = arith.constant 0 : index
    %c2 = arith.constant 2 : index
    %c0_29 = arith.constant 0 : index
    %28 = vector.load %arg7[%c0_28, %c2, %c0_29] : memref<18x18x128xf32, #tpu.memory_space<vmem>>, vector<16x16x128xf32>
    %29 = vector.shape_cast %28 : vector<16x16x128xf32> to vector<256x128xf32>
    %c2_30 = arith.constant 2 : index
    %c0_31 = arith.constant 0 : index
    %c0_32 = arith.constant 0 : index
    %30 = vector.load %arg4[%c2_30, %c0_31, %c0_32] : memref<9x128x128xf32, #tpu.memory_space<vmem>>, vector<1x128x128xf32>
    %31 = vector.shape_cast %30 : vector<1x128x128xf32> to vector<128x128xf32>
    %cst_33 = arith.constant dense<0.000000e+00> : vector<256x128xf32>
    %32 = tpu.matmul %29, %31, %cst_33 {dimension_numbers = #tpu.dot_dimension_numbers<[1], [0], [0], [1], [0, 0, 1, 1], [], []>} : vector<256x128xf32>, vector<128x128xf32>, vector<256x128xf32> -> vector<256x128xf32>
    %33 = arith.addf %27, %32 : vector<256x128xf32>
    %c1_34 = arith.constant 1 : index
    %c0_35 = arith.constant 0 : index
    %c0_36 = arith.constant 0 : index
    %34 = vector.load %arg7[%c1_34, %c0_35, %c0_36] : memref<18x18x128xf32, #tpu.memory_space<vmem>>, vector<16x16x128xf32>
    %35 = vector.shape_cast %34 : vector<16x16x128xf32> to vector<256x128xf32>
    %c3 = arith.constant 3 : index
    %c0_37 = arith.constant 0 : index
    %c0_38 = arith.constant 0 : index
    %36 = vector.load %arg4[%c3, %c0_37, %c0_38] : memref<9x128x128xf32, #tpu.memory_space<vmem>>, vector<1x128x128xf32>
    %37 = vector.shape_cast %36 : vector<1x128x128xf32> to vector<128x128xf32>
    %cst_39 = arith.constant dense<0.000000e+00> : vector<256x128xf32>
    %38 = tpu.matmul %35, %37, %cst_39 {dimension_numbers = #tpu.dot_dimension_numbers<[1], [0], [0], [1], [0, 0, 1, 1], [], []>} : vector<256x128xf32>, vector<128x128xf32>, vector<256x128xf32> -> vector<256x128xf32>
    %39 = arith.addf %33, %38 : vector<256x128xf32>
    %c1_40 = arith.constant 1 : index
    %c1_41 = arith.constant 1 : index
    %c0_42 = arith.constant 0 : index
    %40 = vector.load %arg7[%c1_40, %c1_41, %c0_42] : memref<18x18x128xf32, #tpu.memory_space<vmem>>, vector<16x16x128xf32>
    %41 = vector.shape_cast %40 : vector<16x16x128xf32> to vector<256x128xf32>
    %c4 = arith.constant 4 : index
    %c0_43 = arith.constant 0 : index
    %c0_44 = arith.constant 0 : index
    %42 = vector.load %arg4[%c4, %c0_43, %c0_44] : memref<9x128x128xf32, #tpu.memory_space<vmem>>, vector<1x128x128xf32>
    %43 = vector.shape_cast %42 : vector<1x128x128xf32> to vector<128x128xf32>
    %cst_45 = arith.constant dense<0.000000e+00> : vector<256x128xf32>
    %44 = tpu.matmul %41, %43, %cst_45 {dimension_numbers = #tpu.dot_dimension_numbers<[1], [0], [0], [1], [0, 0, 1, 1], [], []>} : vector<256x128xf32>, vector<128x128xf32>, vector<256x128xf32> -> vector<256x128xf32>
    %45 = arith.addf %39, %44 : vector<256x128xf32>
    %c1_46 = arith.constant 1 : index
    %c2_47 = arith.constant 2 : index
    %c0_48 = arith.constant 0 : index
    %46 = vector.load %arg7[%c1_46, %c2_47, %c0_48] : memref<18x18x128xf32, #tpu.memory_space<vmem>>, vector<16x16x128xf32>
    %47 = vector.shape_cast %46 : vector<16x16x128xf32> to vector<256x128xf32>
    %c5 = arith.constant 5 : index
    %c0_49 = arith.constant 0 : index
    %c0_50 = arith.constant 0 : index
    %48 = vector.load %arg4[%c5, %c0_49, %c0_50] : memref<9x128x128xf32, #tpu.memory_space<vmem>>, vector<1x128x128xf32>
    %49 = vector.shape_cast %48 : vector<1x128x128xf32> to vector<128x128xf32>
    %cst_51 = arith.constant dense<0.000000e+00> : vector<256x128xf32>
    %50 = tpu.matmul %47, %49, %cst_51 {dimension_numbers = #tpu.dot_dimension_numbers<[1], [0], [0], [1], [0, 0, 1, 1], [], []>} : vector<256x128xf32>, vector<128x128xf32>, vector<256x128xf32> -> vector<256x128xf32>
    %51 = arith.addf %45, %50 : vector<256x128xf32>
    %c2_52 = arith.constant 2 : index
    %c0_53 = arith.constant 0 : index
    %c0_54 = arith.constant 0 : index
    %52 = vector.load %arg7[%c2_52, %c0_53, %c0_54] : memref<18x18x128xf32, #tpu.memory_space<vmem>>, vector<16x16x128xf32>
    %53 = vector.shape_cast %52 : vector<16x16x128xf32> to vector<256x128xf32>
    %c6 = arith.constant 6 : index
    %c0_55 = arith.constant 0 : index
    %c0_56 = arith.constant 0 : index
    %54 = vector.load %arg4[%c6, %c0_55, %c0_56] : memref<9x128x128xf32, #tpu.memory_space<vmem>>, vector<1x128x128xf32>
    %55 = vector.shape_cast %54 : vector<1x128x128xf32> to vector<128x128xf32>
    %cst_57 = arith.constant dense<0.000000e+00> : vector<256x128xf32>
    %56 = tpu.matmul %53, %55, %cst_57 {dimension_numbers = #tpu.dot_dimension_numbers<[1], [0], [0], [1], [0, 0, 1, 1], [], []>} : vector<256x128xf32>, vector<128x128xf32>, vector<256x128xf32> -> vector<256x128xf32>
    %57 = arith.addf %51, %56 : vector<256x128xf32>
    %c2_58 = arith.constant 2 : index
    %c1_59 = arith.constant 1 : index
    %c0_60 = arith.constant 0 : index
    %58 = vector.load %arg7[%c2_58, %c1_59, %c0_60] : memref<18x18x128xf32, #tpu.memory_space<vmem>>, vector<16x16x128xf32>
    %59 = vector.shape_cast %58 : vector<16x16x128xf32> to vector<256x128xf32>
    %c7 = arith.constant 7 : index
    %c0_61 = arith.constant 0 : index
    %c0_62 = arith.constant 0 : index
    %60 = vector.load %arg4[%c7, %c0_61, %c0_62] : memref<9x128x128xf32, #tpu.memory_space<vmem>>, vector<1x128x128xf32>
    %61 = vector.shape_cast %60 : vector<1x128x128xf32> to vector<128x128xf32>
    %cst_63 = arith.constant dense<0.000000e+00> : vector<256x128xf32>
    %62 = tpu.matmul %59, %61, %cst_63 {dimension_numbers = #tpu.dot_dimension_numbers<[1], [0], [0], [1], [0, 0, 1, 1], [], []>} : vector<256x128xf32>, vector<128x128xf32>, vector<256x128xf32> -> vector<256x128xf32>
    %63 = arith.addf %57, %62 : vector<256x128xf32>
    %c2_64 = arith.constant 2 : index
    %c2_65 = arith.constant 2 : index
    %c0_66 = arith.constant 0 : index
    %64 = vector.load %arg7[%c2_64, %c2_65, %c0_66] : memref<18x18x128xf32, #tpu.memory_space<vmem>>, vector<16x16x128xf32>
    %65 = vector.shape_cast %64 : vector<16x16x128xf32> to vector<256x128xf32>
    %c8 = arith.constant 8 : index
    %c0_67 = arith.constant 0 : index
    %c0_68 = arith.constant 0 : index
    %66 = vector.load %arg4[%c8, %c0_67, %c0_68] : memref<9x128x128xf32, #tpu.memory_space<vmem>>, vector<1x128x128xf32>
    %67 = vector.shape_cast %66 : vector<1x128x128xf32> to vector<128x128xf32>
    %cst_69 = arith.constant dense<0.000000e+00> : vector<256x128xf32>
    %68 = tpu.matmul %65, %67, %cst_69 {dimension_numbers = #tpu.dot_dimension_numbers<[1], [0], [0], [1], [0, 0, 1, 1], [], []>} : vector<256x128xf32>, vector<128x128xf32>, vector<256x128xf32> -> vector<256x128xf32>
    %69 = arith.addf %63, %68 : vector<256x128xf32>
    %70 = vector.shape_cast %69 : vector<256x128xf32> to vector<16x16x128xf32>
    %c0_70 = arith.constant 0 : index
    %c0_71 = arith.constant 0 : index
    %c0_72 = arith.constant 0 : index
    %c0_73 = arith.constant 0 : index
    %71 = vector.load %arg5[%c0_70, %c0_71, %c0_72, %c0_73] : memref<1x16x16x128xf32, #tpu.memory_space<vmem>>, vector<1x16x16x128xf32>
    %72 = vector.shape_cast %71 : vector<1x16x16x128xf32> to vector<16x16x128xf32>
    %73 = vector.shape_cast %70 : vector<16x16x128xf32> to vector<1x16x16x128xf32>
    tpu.vector_store %arg5[%c0_70, %c0_71, %c0_72, %c0_73], %73 {strides = array<i32>} : memref<1x16x16x128xf32, #tpu.memory_space<vmem>>, vector<1x16x16x128xf32>,
    %cst_74 = arith.constant dense<0.000000e+00> : vector<128xf32>
    %74 = vector.multi_reduction <add>, %69, %cst_74 [0] : vector<256x128xf32> to vector<128xf32>
    %75 = vector.shape_cast %74 : vector<128xf32> to vector<1x128xf32>
    %76 = arith.mulf %69, %69 : vector<256x128xf32>
    %cst_75 = arith.constant dense<0.000000e+00> : vector<128xf32>
    %77 = vector.multi_reduction <add>, %76, %cst_75 [0] : vector<256x128xf32> to vector<128xf32>
    %78 = vector.shape_cast %77 : vector<128xf32> to vector<1x128xf32>
    %79 = tpu.concatenate %75, %78 in 0 : vector<1x128xf32>, vector<1x128xf32> -> vector<2x128xf32>
    %c0_76 = arith.constant 0 : index
    %c0_77 = arith.constant 0 : index
    %c0_78 = arith.constant 0 : index
    %80 = vector.load %arg6[%c0_76, %c0_77, %c0_78] : memref<1x2x128xf32, #tpu.memory_space<vmem>>, vector<1x2x128xf32>
    %81 = vector.shape_cast %80 : vector<1x2x128xf32> to vector<2x128xf32>
    %82 = vector.shape_cast %79 : vector<2x128xf32> to vector<1x2x128xf32>
    tpu.vector_store %arg6[%c0_76, %c0_77, %c0_78], %82 {strides = array<i32>} : memref<1x2x128xf32, #tpu.memory_space<vmem>>, vector<1x2x128xf32>,
    return
  }
  func.func @transform_0(%arg0: i32) -> (i32, i32, i32, i32) {
    %c0_i32 = arith.constant 0 : i32
    %c0_i32_0 = arith.constant 0 : i32
    %c0_i32_1 = arith.constant 0 : i32
    %c0_i32_2 = arith.constant 0 : i32
    return %arg0, %c0_i32, %c0_i32_0, %c0_i32_1 : i32, i32, i32, i32
  }
  func.func @transform_1(%arg0: i32) -> (i32, i32) {
    %c0_i32 = arith.constant 0 : i32
    %c0_i32_0 = arith.constant 0 : i32
    %c0_i32_1 = arith.constant 0 : i32
    return %c0_i32, %c0_i32_0 : i32, i32
  }
  func.func @transform_2(%arg0: i32) -> (i32, i32) {
    %c0_i32 = arith.constant 0 : i32
    %c0_i32_0 = arith.constant 0 : i32
    %c0_i32_1 = arith.constant 0 : i32
    return %c0_i32, %c0_i32_0 : i32, i32
  }
  func.func @transform_3(%arg0: i32) -> (i32, i32, i32) {
    %c0_i32 = arith.constant 0 : i32
    %c0_i32_0 = arith.constant 0 : i32
    %c0_i32_1 = arith.constant 0 : i32
    %c0_i32_2 = arith.constant 0 : i32
    return %c0_i32, %c0_i32_0, %c0_i32_1 : i32, i32, i32
  }
  func.func @transform_4(%arg0: i32) -> (i32, i32, i32, i32) {
    %c0_i32 = arith.constant 0 : i32
    %c0_i32_0 = arith.constant 0 : i32
    %c0_i32_1 = arith.constant 0 : i32
    %c0_i32_2 = arith.constant 0 : i32
    return %arg0, %c0_i32, %c0_i32_0, %c0_i32_1 : i32, i32, i32, i32
  }
  func.func @transform_5(%arg0: i32) -> (i32, i32, i32) {
    %c0_i32 = arith.constant 0 : i32
    %c0_i32_0 = arith.constant 0 : i32
    %c0_i32_1 = arith.constant 0 : i32
    return %arg0, %c0_i32, %c0_i32_0 : i32, i32, i32
  }
}

module attributes {stable_mosaic.version = 11 : i64} {
  func.func @_bn_relu_kernel(%arg0: i32, %arg1: memref<512x128xf32, #tpu.memory_space<vmem>>, %arg2: memref<1x128xf32, #tpu.memory_space<vmem>>, %arg3: memref<1x128xf32, #tpu.memory_space<vmem>>, %arg4: memref<512x128xf32, #tpu.memory_space<vmem>>) attributes {dimension_semantics = [#tpu.dimension_semantics<parallel>], iteration_bounds = array<i64: 1>, scalar_prefetch = 0 : i64, scratch_operands = 0 : i64, tpu.core_type = #tpu.core_type<tc>, window_params = [{transform_indices = @transform_0, window_bounds = array<i64: 512, 128>}, {pipeline_mode = #tpu.pipeline_mode<synchronous>, transform_indices = @transform_1, window_bounds = array<i64: 1, 128>}, {pipeline_mode = #tpu.pipeline_mode<synchronous>, transform_indices = @transform_2, window_bounds = array<i64: 1, 128>}, {transform_indices = @transform_3, window_bounds = array<i64: 512, 128>}]} {
    %c0 = arith.constant 0 : index
    %c0_0 = arith.constant 0 : index
    %0 = vector.load %arg1[%c0, %c0_0] : memref<512x128xf32, #tpu.memory_space<vmem>>, vector<512x128xf32>
    %c0_1 = arith.constant 0 : index
    %c0_2 = arith.constant 0 : index
    %1 = vector.load %arg2[%c0_1, %c0_2] : memref<1x128xf32, #tpu.memory_space<vmem>>, vector<1x128xf32>
    %2 = vector.broadcast %1 : vector<1x128xf32> to vector<512x128xf32>
    %3 = arith.mulf %0, %2 : vector<512x128xf32>
    %c0_3 = arith.constant 0 : index
    %c0_4 = arith.constant 0 : index
    %4 = vector.load %arg3[%c0_3, %c0_4] : memref<1x128xf32, #tpu.memory_space<vmem>>, vector<1x128xf32>
    %5 = vector.broadcast %4 : vector<1x128xf32> to vector<512x128xf32>
    %6 = arith.addf %3, %5 : vector<512x128xf32>
    %cst = arith.constant 0.000000e+00 : f32
    %7 = vector.broadcast %cst : f32 to vector<512x128xf32>
    %8 = arith.maximumf %6, %7 : vector<512x128xf32>
    %c0_5 = arith.constant 0 : index
    %c0_6 = arith.constant 0 : index
    %9 = vector.load %arg4[%c0_5, %c0_6] : memref<512x128xf32, #tpu.memory_space<vmem>>, vector<512x128xf32>
    tpu.vector_store %arg4[%c0_5, %c0_6], %8 {strides = array<i32>} : memref<512x128xf32, #tpu.memory_space<vmem>>, vector<512x128xf32>,
    return
  }
  func.func @transform_0(%arg0: i32) -> (i32, i32) {
    %c0_i32 = arith.constant 0 : i32
    %c0_i32_0 = arith.constant 0 : i32
    return %arg0, %c0_i32 : i32, i32
  }
  func.func @transform_1(%arg0: i32) -> (i32, i32) {
    %c0_i32 = arith.constant 0 : i32
    %c0_i32_0 = arith.constant 0 : i32
    %c0_i32_1 = arith.constant 0 : i32
    return %c0_i32, %c0_i32_0 : i32, i32
  }
  func.func @transform_2(%arg0: i32) -> (i32, i32) {
    %c0_i32 = arith.constant 0 : i32
    %c0_i32_0 = arith.constant 0 : i32
    %c0_i32_1 = arith.constant 0 : i32
    return %c0_i32, %c0_i32_0 : i32, i32
  }
  func.func @transform_3(%arg0: i32) -> (i32, i32) {
    %c0_i32 = arith.constant 0 : i32
    %c0_i32_0 = arith.constant 0 : i32
    return %arg0, %c0_i32 : i32, i32
  }
}

</mosaic_0001>

<llo_original>
// kernel: non_residual_block.5
$region0: #{non_residual_block.5}
  #allocation0 [shape = 'u32[]', space=smem, size = 0x4, offset = 0x4, fixed_abs, tag = 'smem constant byte address 0x4 - core index']
  #allocation1 [shape = 'u32[72,128]{1,0:T(1,128)}', space=vmem, size = 0x9000, scoped, tag = 'internal scratch']
  %s0 = inlined_call_operand.vmem [shape: f32[512,128], index: 0, kind: input, shape index: {}]
  %s1 = inlined_call_operand.vmem [shape: f32[1,128], index: 1, kind: input, shape index: {}]
  %s2 = inlined_call_operand.vmem [shape: f32[1,128], index: 2, kind: input, shape index: {}]
  %s3 = inlined_call_operand.vmem [shape: f32[512,128], index: 3, kind: output, shape index: {}]
  %s4 = sld [smem:[#allocation0]]
  $region22: #{non_residual_block.5} parent=0
    _
  %s6 = ssub.s32 1, %s4
  %s7 = scalar_select 0, %s6, %s4
  // Predicated region
  $region2: #{non_residual_block.5} parent=0 // pred_check
    _
  $region3: #{non_residual_block.5} parent=0 // pred_check_branch
    %9 = sbr.rel (0) target = $region5
  $region4: #{non_residual_block.5} parent=0 // pred_region
    _
  $region5: #{non_residual_block.5} parent=0 // pred_fallthru
    _
  // Predicated region
  $region6: #{non_residual_block.5} parent=0 // pred_check
    _
  $region7: #{non_residual_block.5} parent=0 // pred_check_branch
    %11 = sbr.rel (0) target = $region9
  $region8: #{non_residual_block.5} parent=0 // pred_region
    _
  $region9: #{non_residual_block.5} parent=0 // pred_fallthru
    _
  // Predicated region
  $region10: #{non_residual_block.5} parent=0 // pred_check
    _
  $region11: #{non_residual_block.5} parent=0 // pred_check_branch
    %13 = sbr.rel (0) target = $region13
  $region12: #{non_residual_block.5} parent=0 // pred_region
    _
  $region13: #{non_residual_block.5} parent=0 // pred_fallthru
    _
  %v14 = vld [vmem:[%s0] sm:$0xff]
  %v15 = vld [vmem:[%s0 + $0x8] sm:$0xff]
  %v16 = vld [vmem:[%s0 + $0x10] sm:$0xff]
  %v17 = vld [vmem:[%s0 + $0x18] sm:$0xff]
  %v18 = vld [vmem:[%s0 + $0x20] sm:$0xff]
  %v19 = vld [vmem:[%s0 + $0x28] sm:$0xff]
  %v20 = vld [vmem:[%s0 + $0x30] sm:$0xff]
  %v21 = vld [vmem:[%s0 + $0x38] sm:$0xff]
  %v22 = vld [vmem:[%s0 + $0x40] sm:$0xff]
  %v23 = vld [vmem:[%s0 + $0x48] sm:$0xff]
  %v24 = vld [vmem:[%s0 + $0x50] sm:$0xff]
  %v25 = vld [vmem:[%s0 + $0x58] sm:$0xff]
  %v26 = vld [vmem:[%s0 + $0x60] sm:$0xff]
  %v27 = vld [vmem:[%s0 + $0x68] sm:$0xff]
  %v28 = vld [vmem:[%s0 + $0x70] sm:$0xff]
  %v29 = vld [vmem:[%s0 + $0x78] sm:$0xff]
  %v30 = vld [vmem:[%s0 + $0x80] sm:$0xff]
  %v31 = vld [vmem:[%s0 + $0x88] sm:$0xff]
  %v32 = vld [vmem:[%s0 + $0x90] sm:$0xff]
  %v33 = vld [vmem:[%s0 + $0x98] sm:$0xff]
  %v34 = vld [vmem:[%s0 + $0xa0] sm:$0xff]
  %v35 = vld [vmem:[%s0 + $0xa8] sm:$0xff]
  %v36 = vld [vmem:[%s0 + $0xb0] sm:$0xff]
  %v37 = vld [vmem:[%s0 + $0xb8] sm:$0xff]
  %v38 = vld [vmem:[%s0 + $0xc0] sm:$0xff]
  %v39 = vld [vmem:[%s0 + $0xc8] sm:$0xff]
  %v40 = vld [vmem:[%s0 + $0xd0] sm:$0xff]
  %v41 = vld [vmem:[%s0 + $0xd8] sm:$0xff]
  %v42 = vld [vmem:[%s0 + $0xe0] sm:$0xff]
  %v43 = vld [vmem:[%s0 + $0xe8] sm:$0xff]
  %v44 = vld [vmem:[%s0 + $0xf0] sm:$0xff]
  %v45 = vld [vmem:[%s0 + $0xf8] sm:$0xff]
  %v46 = vld [vmem:[%s0 + $0x100] sm:$0xff]
  %v47 = vld [vmem:[%s0 + $0x108] sm:$0xff]
  %v48 = vld [vmem:[%s0 + $0x110] sm:$0xff]
  %v49 = vld [vmem:[%s0 + $0x118] sm:$0xff]
  %v50 = vld [vmem:[%s0 + $0x120] sm:$0xff]
  %v51 = vld [vmem:[%s0 + $0x128] sm:$0xff]
  %v52 = vld [vmem:[%s0 + $0x130] sm:$0xff]
  %v53 = vld [vmem:[%s0 + $0x138] sm:$0xff]
  %v54 = vld [vmem:[%s0 + $0x140] sm:$0xff]
  %v55 = vld [vmem:[%s0 + $0x148] sm:$0xff]
  %v56 = vld [vmem:[%s0 + $0x150] sm:$0xff]
  %v57 = vld [vmem:[%s0 + $0x158] sm:$0xff]
  %v58 = vld [vmem:[%s0 + $0x160] sm:$0xff]
  %v59 = vld [vmem:[%s0 + $0x168] sm:$0xff]
  %v60 = vld [vmem:[%s0 + $0x170] sm:$0xff]
  %v61 = vld [vmem:[%s0 + $0x178] sm:$0xff]
  %v62 = vld [vmem:[%s0 + $0x180] sm:$0xff]
  %v63 = vld [vmem:[%s0 + $0x188] sm:$0xff]
  %v64 = vld [vmem:[%s0 + $0x190] sm:$0xff]
  %v65 = vld [vmem:[%s0 + $0x198] sm:$0xff]
  %v66 = vld [vmem:[%s0 + $0x1a0] sm:$0xff]
  %v67 = vld [vmem:[%s0 + $0x1a8] sm:$0xff]
  %v68 = vld [vmem:[%s0 + $0x1b0] sm:$0xff]
  %v69 = vld [vmem:[%s0 + $0x1b8] sm:$0xff]
  %v70 = vld [vmem:[%s0 + $0x1c0] sm:$0xff]
  %v71 = vld [vmem:[%s0 + $0x1c8] sm:$0xff]
  %v72 = vld [vmem:[%s0 + $0x1d0] sm:$0xff]
  %v73 = vld [vmem:[%s0 + $0x1d8] sm:$0xff]
  %v74 = vld [vmem:[%s0 + $0x1e0] sm:$0xff]
  %v75 = vld [vmem:[%s0 + $0x1e8] sm:$0xff]
  %v76 = vld [vmem:[%s0 + $0x1f0] sm:$0xff]
  %v77 = vld [vmem:[%s0 + $0x1f8] sm:$0xff]
  %v78 = vld [vmem:[%s1] sm:$0x1]
  %v80 = vperm.slane %v78, 0
  %v82 = vmul.f32 %v14, %v80
  %v83 = vmul.f32 %v15, %v80
  %v84 = vmul.f32 %v16, %v80
  %v85 = vmul.f32 %v17, %v80
  %v86 = vmul.f32 %v18, %v80
  %v87 = vmul.f32 %v19, %v80
  %v88 = vmul.f32 %v20, %v80
  %v89 = vmul.f32 %v21, %v80
  %v90 = vmul.f32 %v22, %v80
  %v91 = vmul.f32 %v23, %v80
  %v92 = vmul.f32 %v24, %v80
  %v93 = vmul.f32 %v25, %v80
  %v94 = vmul.f32 %v26, %v80
  %v95 = vmul.f32 %v27, %v80
  %v96 = vmul.f32 %v28, %v80
  %v97 = vmul.f32 %v29, %v80
  %v98 = vmul.f32 %v30, %v80
  %v99 = vmul.f32 %v31, %v80
  %v100 = vmul.f32 %v32, %v80
  %v101 = vmul.f32 %v33, %v80
  %v102 = vmul.f32 %v34, %v80
  %v103 = vmul.f32 %v35, %v80
  %v104 = vmul.f32 %v36, %v80
  %v105 = vmul.f32 %v37, %v80
  %v106 = vmul.f32 %v38, %v80
  %v107 = vmul.f32 %v39, %v80
  %v108 = vmul.f32 %v40, %v80
  %v109 = vmul.f32 %v41, %v80
  %v110 = vmul.f32 %v42, %v80
  %v111 = vmul.f32 %v43, %v80
  %v112 = vmul.f32 %v44, %v80
  %v113 = vmul.f32 %v45, %v80
  %v114 = vmul.f32 %v46, %v80
  %v115 = vmul.f32 %v47, %v80
  %v116 = vmul.f32 %v48, %v80
  %v117 = vmul.f32 %v49, %v80
  %v118 = vmul.f32 %v50, %v80
  %v119 = vmul.f32 %v51, %v80
  %v120 = vmul.f32 %v52, %v80
  %v121 = vmul.f32 %v53, %v80
  %v122 = vmul.f32 %v54, %v80
  %v123 = vmul.f32 %v55, %v80
  %v124 = vmul.f32 %v56, %v80
  %v125 = vmul.f32 %v57, %v80
  %v126 = vmul.f32 %v58, %v80
  %v127 = vmul.f32 %v59, %v80
  %v128 = vmul.f32 %v60, %v80
  %v129 = vmul.f32 %v61, %v80
  %v130 = vmul.f32 %v62, %v80
  %v131 = vmul.f32 %v63, %v80
  %v132 = vmul.f32 %v64, %v80
  %v133 = vmul.f32 %v65, %v80
  %v134 = vmul.f32 %v66, %v80
  %v135 = vmul.f32 %v67, %v80
  %v136 = vmul.f32 %v68, %v80
  %v137 = vmul.f32 %v69, %v80
  %v138 = vmul.f32 %v70, %v80
  %v139 = vmul.f32 %v71, %v80
  %v140 = vmul.f32 %v72, %v80
  %v141 = vmul.f32 %v73, %v80
  %v142 = vmul.f32 %v74, %v80
  %v143 = vmul.f32 %v75, %v80
  %v144 = vmul.f32 %v76, %v80
  %v145 = vmul.f32 %v77, %v80
  %v146 = vld [vmem:[%s2] sm:$0x1]
  %v148 = vperm.slane %v146, 0
  %v150 = vadd.f32 %v82, %v148
  %v151 = vadd.f32 %v83, %v148
  %v152 = vadd.f32 %v84, %v148
  %v153 = vadd.f32 %v85, %v148
  %v154 = vadd.f32 %v86, %v148
  %v155 = vadd.f32 %v87, %v148
  %v156 = vadd.f32 %v88, %v148
  %v157 = vadd.f32 %v89, %v148
  %v158 = vadd.f32 %v90, %v148
  %v159 = vadd.f32 %v91, %v148
  %v160 = vadd.f32 %v92, %v148
  %v161 = vadd.f32 %v93, %v148
  %v162 = vadd.f32 %v94, %v148
  %v163 = vadd.f32 %v95, %v148
  %v164 = vadd.f32 %v96, %v148
  %v165 = vadd.f32 %v97, %v148
  %v166 = vadd.f32 %v98, %v148
  %v167 = vadd.f32 %v99, %v148
  %v168 = vadd.f32 %v100, %v148
  %v169 = vadd.f32 %v101, %v148
  %v170 = vadd.f32 %v102, %v148
  %v171 = vadd.f32 %v103, %v148
  %v172 = vadd.f32 %v104, %v148
  %v173 = vadd.f32 %v105, %v148
  %v174 = vadd.f32 %v106, %v148
  %v175 = vadd.f32 %v107, %v148
  %v176 = vadd.f32 %v108, %v148
  %v177 = vadd.f32 %v109, %v148
  %v178 = vadd.f32 %v110, %v148
  %v179 = vadd.f32 %v111, %v148
  %v180 = vadd.f32 %v112, %v148
  %v181 = vadd.f32 %v113, %v148
  %v182 = vadd.f32 %v114, %v148
  %v183 = vadd.f32 %v115, %v148
  %v184 = vadd.f32 %v116, %v148
  %v185 = vadd.f32 %v117, %v148
  %v186 = vadd.f32 %v118, %v148
  %v187 = vadd.f32 %v119, %v148
  %v188 = vadd.f32 %v120, %v148
  %v189 = vadd.f32 %v121, %v148
  %v190 = vadd.f32 %v122, %v148
  %v191 = vadd.f32 %v123, %v148
  %v192 = vadd.f32 %v124, %v148
  %v193 = vadd.f32 %v125, %v148
  %v194 = vadd.f32 %v126, %v148
  %v195 = vadd.f32 %v127, %v148
  %v196 = vadd.f32 %v128, %v148
  %v197 = vadd.f32 %v129, %v148
  %v198 = vadd.f32 %v130, %v148
  %v199 = vadd.f32 %v131, %v148
  %v200 = vadd.f32 %v132, %v148
  %v201 = vadd.f32 %v133, %v148
  %v202 = vadd.f32 %v134, %v148
  %v203 = vadd.f32 %v135, %v148
  %v204 = vadd.f32 %v136, %v148
  %v205 = vadd.f32 %v137, %v148
  %v206 = vadd.f32 %v138, %v148
  %v207 = vadd.f32 %v139, %v148
  %v208 = vadd.f32 %v140, %v148
  %v209 = vadd.f32 %v141, %v148
  %v210 = vadd.f32 %v142, %v148
  %v211 = vadd.f32 %v143, %v148
  %v212 = vadd.f32 %v144, %v148
  %v213 = vadd.f32 %v145, %v148
  %v214 = vmax.f32 %v150, 0.0
  %v215 = vmax.f32 %v151, 0.0
  %v216 = vmax.f32 %v152, 0.0
  %v217 = vmax.f32 %v153, 0.0
  %v218 = vmax.f32 %v154, 0.0
  %v219 = vmax.f32 %v155, 0.0
  %v220 = vmax.f32 %v156, 0.0
  %v221 = vmax.f32 %v157, 0.0
  %v222 = vmax.f32 %v158, 0.0
  %v223 = vmax.f32 %v159, 0.0
  %v224 = vmax.f32 %v160, 0.0
  %v225 = vmax.f32 %v161, 0.0
  %v226 = vmax.f32 %v162, 0.0
  %v227 = vmax.f32 %v163, 0.0
  %v228 = vmax.f32 %v164, 0.0
  %v229 = vmax.f32 %v165, 0.0
  %v230 = vmax.f32 %v166, 0.0
  %v231 = vmax.f32 %v167, 0.0
  %v232 = vmax.f32 %v168, 0.0
  %v233 = vmax.f32 %v169, 0.0
  %v234 = vmax.f32 %v170, 0.0
  %v235 = vmax.f32 %v171, 0.0
  %v236 = vmax.f32 %v172, 0.0
  %v237 = vmax.f32 %v173, 0.0
  %v238 = vmax.f32 %v174, 0.0
  %v239 = vmax.f32 %v175, 0.0
  %v240 = vmax.f32 %v176, 0.0
  %v241 = vmax.f32 %v177, 0.0
  %v242 = vmax.f32 %v178, 0.0
  %v243 = vmax.f32 %v179, 0.0
  %v244 = vmax.f32 %v180, 0.0
  %v245 = vmax.f32 %v181, 0.0
  %v246 = vmax.f32 %v182, 0.0
  %v247 = vmax.f32 %v183, 0.0
  %v248 = vmax.f32 %v184, 0.0
  %v249 = vmax.f32 %v185, 0.0
  %v250 = vmax.f32 %v186, 0.0
  %v251 = vmax.f32 %v187, 0.0
  %v252 = vmax.f32 %v188, 0.0
  %v253 = vmax.f32 %v189, 0.0
  %v254 = vmax.f32 %v190, 0.0
  %v255 = vmax.f32 %v191, 0.0
  %v256 = vmax.f32 %v192, 0.0
  %v257 = vmax.f32 %v193, 0.0
  %v258 = vmax.f32 %v194, 0.0
  %v259 = vmax.f32 %v195, 0.0
  %v260 = vmax.f32 %v196, 0.0
  %v261 = vmax.f32 %v197, 0.0
  %v262 = vmax.f32 %v198, 0.0
  %v263 = vmax.f32 %v199, 0.0
  %v264 = vmax.f32 %v200, 0.0
  %v265 = vmax.f32 %v201, 0.0
  %v266 = vmax.f32 %v202, 0.0
  %v267 = vmax.f32 %v203, 0.0
  %v268 = vmax.f32 %v204, 0.0
  %v269 = vmax.f32 %v205, 0.0
  %v270 = vmax.f32 %v206, 0.0
  %v271 = vmax.f32 %v207, 0.0
  %v272 = vmax.f32 %v208, 0.0
  %v273 = vmax.f32 %v209, 0.0
  %v274 = vmax.f32 %v210, 0.0
  %v275 = vmax.f32 %v211, 0.0
  %v276 = vmax.f32 %v212, 0.0
  %v277 = vmax.f32 %v213, 0.0
  %278 = vst [vmem:[%s3] sm:$0xff] %v214
  %279 = vst [vmem:[%s3 + $0x8] sm:$0xff] %v215
  %280 = vst [vmem:[%s3 + $0x10] sm:$0xff] %v216
  %281 = vst [vmem:[%s3 + $0x18] sm:$0xff] %v217
  %282 = vst [vmem:[%s3 + $0x20] sm:$0xff] %v218
  %283 = vst [vmem:[%s3 + $0x28] sm:$0xff] %v219
  %284 = vst [vmem:[%s3 + $0x30] sm:$0xff] %v220
  %285 = vst [vmem:[%s3 + $0x38] sm:$0xff] %v221
  %286 = vst [vmem:[%s3 + $0x40] sm:$0xff] %v222
  %287 = vst [vmem:[%s3 + $0x48] sm:$0xff] %v223
  %288 = vst [vmem:[%s3 + $0x50] sm:$0xff] %v224
  %289 = vst [vmem:[%s3 + $0x58] sm:$0xff] %v225
  %290 = vst [vmem:[%s3 + $0x60] sm:$0xff] %v226
  %291 = vst [vmem:[%s3 + $0x68] sm:$0xff] %v227
  %292 = vst [vmem:[%s3 + $0x70] sm:$0xff] %v228
  %293 = vst [vmem:[%s3 + $0x78] sm:$0xff] %v229
  %294 = vst [vmem:[%s3 + $0x80] sm:$0xff] %v230
  %295 = vst [vmem:[%s3 + $0x88] sm:$0xff] %v231
  %296 = vst [vmem:[%s3 + $0x90] sm:$0xff] %v232
  %297 = vst [vmem:[%s3 + $0x98] sm:$0xff] %v233
  %298 = vst [vmem:[%s3 + $0xa0] sm:$0xff] %v234
  %299 = vst [vmem:[%s3 + $0xa8] sm:$0xff] %v235
  %300 = vst [vmem:[%s3 + $0xb0] sm:$0xff] %v236
  %301 = vst [vmem:[%s3 + $0xb8] sm:$0xff] %v237
  %302 = vst [vmem:[%s3 + $0xc0] sm:$0xff] %v238
  %303 = vst [vmem:[%s3 + $0xc8] sm:$0xff] %v239
  %304 = vst [vmem:[%s3 + $0xd0] sm:$0xff] %v240
  %305 = vst [vmem:[%s3 + $0xd8] sm:$0xff] %v241
  %306 = vst [vmem:[%s3 + $0xe0] sm:$0xff] %v242
  %307 = vst [vmem:[%s3 + $0xe8] sm:$0xff] %v243
  %308 = vst [vmem:[%s3 + $0xf0] sm:$0xff] %v244
  %309 = vst [vmem:[%s3 + $0xf8] sm:$0xff] %v245
  %310 = vst [vmem:[%s3 + $0x100] sm:$0xff] %v246
  %311 = vst [vmem:[%s3 + $0x108] sm:$0xff] %v247
  %312 = vst [vmem:[%s3 + $0x110] sm:$0xff] %v248
  %313 = vst [vmem:[%s3 + $0x118] sm:$0xff] %v249
  %314 = vst [vmem:[%s3 + $0x120] sm:$0xff] %v250
  %315 = vst [vmem:[%s3 + $0x128] sm:$0xff] %v251
  %316 = vst [vmem:[%s3 + $0x130] sm:$0xff] %v252
  %317 = vst [vmem:[%s3 + $0x138] sm:$0xff] %v253
  %318 = vst [vmem:[%s3 + $0x140] sm:$0xff] %v254
  %319 = vst [vmem:[%s3 + $0x148] sm:$0xff] %v255
  %320 = vst [vmem:[%s3 + $0x150] sm:$0xff] %v256
  %321 = vst [vmem:[%s3 + $0x158] sm:$0xff] %v257
  %322 = vst [vmem:[%s3 + $0x160] sm:$0xff] %v258
  %323 = vst [vmem:[%s3 + $0x168] sm:$0xff] %v259
  %324 = vst [vmem:[%s3 + $0x170] sm:$0xff] %v260
  %325 = vst [vmem:[%s3 + $0x178] sm:$0xff] %v261
  %326 = vst [vmem:[%s3 + $0x180] sm:$0xff] %v262
  %327 = vst [vmem:[%s3 + $0x188] sm:$0xff] %v263
  %328 = vst [vmem:[%s3 + $0x190] sm:$0xff] %v264
  %329 = vst [vmem:[%s3 + $0x198] sm:$0xff] %v265
  %330 = vst [vmem:[%s3 + $0x1a0] sm:$0xff] %v266
  %331 = vst [vmem:[%s3 + $0x1a8] sm:$0xff] %v267
  %332 = vst [vmem:[%s3 + $0x1b0] sm:$0xff] %v268
  %333 = vst [vmem:[%s3 + $0x1b8] sm:$0xff] %v269
  %334 = vst [vmem:[%s3 + $0x1c0] sm:$0xff] %v270
  %335 = vst [vmem:[%s3 + $0x1c8] sm:$0xff] %v271
  %336 = vst [vmem:[%s3 + $0x1d0] sm:$0xff] %v272
  %337 = vst [vmem:[%s3 + $0x1d8] sm:$0xff] %v273
  %338 = vst [vmem:[%s3 + $0x1e0] sm:$0xff] %v274
  %339 = vst [vmem:[%s3 + $0x1e8] sm:$0xff] %v275
  %340 = vst [vmem:[%s3 + $0x1f0] sm:$0xff] %v276
  %341 = vst [vmem:[%s3 + $0x1f8] sm:$0xff] %v277
  // Predicated region
  $region14: #{non_residual_block.5} parent=0 // pred_check
    _
  $region15: #{non_residual_block.5} parent=0 // pred_check_branch
    %343 = sbr.rel (0) target = $region17
  $region16: #{non_residual_block.5} parent=0 // pred_region
    _
  $region17: #{non_residual_block.5} parent=0 // pred_fallthru
    _
  // Predicated region
  $region18: #{non_residual_block.5} parent=0 // pred_check
    _
  $region19: #{non_residual_block.5} parent=0 // pred_check_branch
    %345 = sbr.rel (0) target = $region21
  $region20: #{non_residual_block.5} parent=0 // pred_region
    _
  $region21: #{non_residual_block.5} parent=0 // pred_fallthru
    _

// kernel: non_residual_block.4
$region0: #{non_residual_block.4}
  #allocation0 [shape = 'u32[]', space=smem, size = 0x4, offset = 0x4, fixed_abs, tag = 'smem constant byte address 0x4 - core index']
  #allocation1 [shape = 'u32[72,128]{1,0:T(1,128)}', space=vmem, size = 0x9000, scoped, tag = 'internal scratch']
  #allocation2 [shape = 'f32[18,18,128]{2,1,0:T(8,128)}', space=vmem, size = 0x36000, scoped, tag = 'scratch operand']
  %s0 = inlined_call_operand.vmem [shape: f32[2,16,16,128], index: 0, kind: input, shape index: {}]
  %s1 = inlined_call_operand.vmem [shape: f32[1,128], index: 1, kind: input, shape index: {}]
  %s2 = inlined_call_operand.vmem [shape: f32[1,128], index: 2, kind: input, shape index: {}]
  %s3 = inlined_call_operand.vmem [shape: f32[9,128,128], index: 3, kind: input, shape index: {}]
  %s4 = inlined_call_operand.vmem [shape: f32[2,16,16,128], index: 4, kind: output, shape index: {0}]
  %s5 = inlined_call_operand.vmem [shape: f32[2,2,128], index: 5, kind: output, shape index: {1}]
  %6 = xla_tuple %s4, %s5
  %s7 = sld [smem:[#allocation0]]
  $region57: #{non_residual_block.4} parent=0
    _
  %s9 = ssub.s32 1, %s7
  %s10 = scalar_select 0, %s9, %s7
  loop: start=0, step=1, limit=4
  $region2: #{non_residual_block.4} parent=0 // loop_pre_header
    _
  $region3: #{non_residual_block.4} parent=0 // loop_header
    %s12 = sphi 0, %s16
    %p13 = scmp.ge.s32.totalorder %s12, 4
    %s22 = sphi 0, %s24
    %s25 = sphi 0, %s22
    %s26 = sphi 0, %s25
    %s42 = sphi 0, %s26
    %s46 = sphi 0, %s46
    %s48 = sphi 0, %s46
    %s49 = sphi 0, %s48
    %s63 = sphi 0, %s49
    %s67 = sphi 0, %s67
    %s69 = sphi 0, %s67
    %s70 = sphi 0, %s69
    %s84 = sphi 0, %s70
    %s88 = sphi 0, %s88
    %s90 = sphi 0, %s88
    %s91 = sphi 0, %s90
    %s105 = sphi 0, %s91
    %s111 = sphi 0, %s113
    %s114 = sphi 0, %s111
    %s115 = sphi 0, %s114
    %s131 = sphi 0, %s115
    %s137 = sphi 0, %s139
    %s140 = sphi 0, %s137
    %s141 = sphi 0, %s140
    %s157 = sphi 0, %s141
  $region4: #{non_residual_block.4} parent=0 // loop_header_branch
    %15 = sbr.rel (%p13) target = $region8
  $region5: #{non_residual_block.4} parent=0 // loop_body
    %s17 = ssub.s32 %s12, 1
    %s18 = ssub.s32 %s12, 2
    %s19 = sadd.s32 %s12, 1
    %s20 = ssub.s32 %s12, %s19
    %p21 = scmp.eq.s32.totalorder %s20, 0
    %s23 = sadd.s32 %s22, 1
    %s24 = scalar_select %p21, %s22, %s23
    %p27 = pneg %p21
    %p28 = scmp.eq.s32.totalorder %s12, 1
    %p29 = por %p27, %p28
    %p30 = scmp.ne.s32.totalorder %s22, %s25
    %p31 = scmp.eq.s32.totalorder %s12, 0
    %p32 = por %p30, %p31
    %p33 = scmp.ne.s32.totalorder %s22, %s25
    %p34 = scmp.eq.s32.totalorder %s17, 1
    %p35 = por %p33, %p34
    %p36 = scmp.ne.s32.totalorder %s25, %s26
    %p37 = scmp.eq.s32.totalorder %s17, 0
    %p38 = por %p36, %p37
    %p39 = scmp.ne.s32.totalorder %s25, %s26
    %p40 = scmp.eq.s32.totalorder %s18, 1
    %p41 = por %p39, %p40
    %p43 = scmp.ne.s32.totalorder %s26, %s42
    %p44 = scmp.eq.s32.totalorder %s18, 0
    %p45 = por %p43, %p44
    %s47 = sadd.s32 %s46, 1
    %p50 = scmp.eq.s32.totalorder %s12, 1
    %p51 = scmp.ne.s32.totalorder %s46, %s48
    %p52 = scmp.eq.s32.totalorder %s12, 0
    %p53 = por %p51, %p52
    %p54 = scmp.ne.s32.totalorder %s46, %s48
    %p55 = scmp.eq.s32.totalorder %s17, 1
    %p56 = por %p54, %p55
    %p57 = scmp.ne.s32.totalorder %s48, %s49
    %p58 = scmp.eq.s32.totalorder %s17, 0
    %p59 = por %p57, %p58
    %p60 = scmp.ne.s32.totalorder %s48, %s49
    %p61 = scmp.eq.s32.totalorder %s18, 1
    %p62 = por %p60, %p61
    %p64 = scmp.ne.s32.totalorder %s49, %s63
    %p65 = scmp.eq.s32.totalorder %s18, 0
    %p66 = por %p64, %p65
    %s68 = sadd.s32 %s67, 1
    %p71 = scmp.eq.s32.totalorder %s12, 1
    %p72 = scmp.ne.s32.totalorder %s67, %s69
    %p73 = scmp.eq.s32.totalorder %s12, 0
    %p74 = por %p72, %p73
    %p75 = scmp.ne.s32.totalorder %s67, %s69
    %p76 = scmp.eq.s32.totalorder %s17, 1
    %p77 = por %p75, %p76
    %p78 = scmp.ne.s32.totalorder %s69, %s70
    %p79 = scmp.eq.s32.totalorder %s17, 0
    %p80 = por %p78, %p79
    %p81 = scmp.ne.s32.totalorder %s69, %s70
    %p82 = scmp.eq.s32.totalorder %s18, 1
    %p83 = por %p81, %p82
    %p85 = scmp.ne.s32.totalorder %s70, %s84
    %p86 = scmp.eq.s32.totalorder %s18, 0
    %p87 = por %p85, %p86
    %s89 = sadd.s32 %s88, 1
    %p92 = scmp.eq.s32.totalorder %s12, 1
    %p93 = scmp.ne.s32.totalorder %s88, %s90
    %p94 = scmp.eq.s32.totalorder %s12, 0
    %p95 = por %p93, %p94
    %p96 = scmp.ne.s32.totalorder %s88, %s90
    %p97 = scmp.eq.s32.totalorder %s17, 1
    %p98 = por %p96, %p97
    %p99 = scmp.ne.s32.totalorder %s90, %s91
    %p100 = scmp.eq.s32.totalorder %s17, 0
    %p101 = por %p99, %p100
    %p102 = scmp.ne.s32.totalorder %s90, %s91
    %p103 = scmp.eq.s32.totalorder %s18, 1
    %p104 = por %p102, %p103
    %p106 = scmp.ne.s32.totalorder %s91, %s105
    %p107 = scmp.eq.s32.totalorder %s18, 0
    %p108 = por %p106, %p107
    %s109 = ssub.s32 %s12, %s19
    %p110 = scmp.eq.s32.totalorder %s109, 0
    %s112 = sadd.s32 %s111, 1
    %s113 = scalar_select %p110, %s111, %s112
    %p116 = pneg %p110
    %p117 = scmp.eq.s32.totalorder %s12, 1
    %p118 = por %p116, %p117
    %p119 = scmp.ne.s32.totalorder %s111, %s114
    %p120 = scmp.eq.s32.totalorder %s12, 0
    %p121 = por %p119, %p120
    %p122 = scmp.ne.s32.totalorder %s111, %s114
    %p123 = scmp.eq.s32.totalorder %s17, 1
    %p124 = por %p122, %p123
    %p125 = scmp.ne.s32.totalorder %s114, %s115
    %p126 = scmp.eq.s32.totalorder %s17, 0
    %p127 = por %p125, %p126
    %p128 = scmp.ne.s32.totalorder %s114, %s115
    %p129 = scmp.eq.s32.totalorder %s18, 1
    %p130 = por %p128, %p129
    %p132 = scmp.ne.s32.totalorder %s115, %s131
    %p133 = scmp.eq.s32.totalorder %s18, 0
    %p134 = por %p132, %p133
    %s135 = ssub.s32 %s12, %s19
    %p136 = scmp.eq.s32.totalorder %s135, 0
    %s138 = sadd.s32 %s137, 1
    %s139 = scalar_select %p136, %s137, %s138
    %p142 = pneg %p136
    %p143 = scmp.eq.s32.totalorder %s12, 1
    %p144 = por %p142, %p143
    %p145 = scmp.ne.s32.totalorder %s137, %s140
    %p146 = scmp.eq.s32.totalorder %s12, 0
    %p147 = por %p145, %p146
    %p148 = scmp.ne.s32.totalorder %s137, %s140
    %p149 = scmp.eq.s32.totalorder %s17, 1
    %p150 = por %p148, %p149
    %p151 = scmp.ne.s32.totalorder %s140, %s141
    %p152 = scmp.eq.s32.totalorder %s17, 0
    %p153 = por %p151, %p152
    %p154 = scmp.ne.s32.totalorder %s140, %s141
    %p155 = scmp.eq.s32.totalorder %s18, 1
    %p156 = por %p154, %p155
    %p158 = scmp.ne.s32.totalorder %s141, %s157
    %p159 = scmp.eq.s32.totalorder %s18, 0
    %p160 = por %p158, %p159
    %p161 = scmp.le.s32.totalorder 1, %s12
    %p162 = scmp.lt.s32.totalorder %s12, 3
    %p163 = pnand %p161, %p162
    %p164 = pneg %p163
    // Predicated region
    $region9: #{non_residual_block.4} parent=5 // pred_check
      _
    $region10: #{non_residual_block.4} parent=5 // pred_check_branch
      %166 = sbr.rel (%p163) target = $region12
    $region11: #{non_residual_block.4} parent=5 // pred_region
      %s167 = ssub.s32 %s12, 1
      // Predicated region
      $region13: #{non_residual_block.4} parent=11 // pred_check
        %p168 = pneg %p59
      $region14: #{non_residual_block.4} parent=11 // pred_check_branch
        %170 = sbr.rel (%p168) target = $region16
      $region15: #{non_residual_block.4} parent=11 // pred_region
        _
      $region16: #{non_residual_block.4} parent=11 // pred_fallthru
        _
      // Predicated region
      $region17: #{non_residual_block.4} parent=11 // pred_check
        %p171 = pneg %p80
      $region18: #{non_residual_block.4} parent=11 // pred_check_branch
        %173 = sbr.rel (%p171) target = $region20
      $region19: #{non_residual_block.4} parent=11 // pred_region
        _
      $region20: #{non_residual_block.4} parent=11 // pred_fallthru
        _
      // Predicated region
      $region21: #{non_residual_block.4} parent=11 // pred_check
        %p174 = pneg %p101
      $region22: #{non_residual_block.4} parent=11 // pred_check_branch
        %176 = sbr.rel (%p174) target = $region24
      $region23: #{non_residual_block.4} parent=11 // pred_region
        _
      $region24: #{non_residual_block.4} parent=11 // pred_fallthru
        _
    $region12: #{non_residual_block.4} parent=5 // pred_fallthru
      _
    %p177 = scmp.lt.s32.totalorder %s12, 2
    // Predicated region
    $region25: #{non_residual_block.4} parent=5 // pred_check
      %p178 = pneg %p177
    $region26: #{non_residual_block.4} parent=5 // pred_check_branch
      %180 = sbr.rel (%p178) target = $region28
    $region27: #{non_residual_block.4} parent=5 // pred_region
      // Predicated region
      $region29: #{non_residual_block.4} parent=27 // pred_check
        %p181 = pneg %p32
      $region30: #{non_residual_block.4} parent=27 // pred_check_branch
        %183 = sbr.rel (%p181) target = $region32
      $region31: #{non_residual_block.4} parent=27 // pred_region
        %p184 = scmp.lt.s32.totalorder %s12, 1
        %s185 = scalar_select %p184, %s12, 1
        %s186 = smul.addr %s185, 32
        %s187 = smul.addr %s186, 8
        %s188 = scalar_lea.vmem %s0, %s187
      $region32: #{non_residual_block.4} parent=27 // pred_fallthru
        _
    $region28: #{non_residual_block.4} parent=5 // pred_fallthru
      _
    %p189 = scmp.le.s32.totalorder 1, %s12
    %p190 = scmp.lt.s32.totalorder %s12, 3
    %p191 = pnand %p189, %p190
    %p192 = pneg %p191
    // Predicated region
    $region33: #{non_residual_block.4} parent=5 // pred_check
      _
    $region34: #{non_residual_block.4} parent=5 // pred_check_branch
      %194 = sbr.rel (%p191) target = $region36
    $region35: #{non_residual_block.4} parent=5 // pred_region
      %s195 = ssub.s32 %s12, 1
      %p196 = scmp.lt.s32.totalorder %s17, 1
      %s197 = scalar_select %p196, %s17, 1
      %s198 = smul.addr %s197, 32
      %s199 = smul.addr %s198, 8
      %s200 = scalar_lea.vmem %s0, %s199
      %p201 = pneg %p38
      %p202 = pneg %p35
      %p203 = pneg %p59
      %p204 = pneg %p56
      %p205 = pneg %p80
      %p206 = pneg %p77
      %p207 = pneg %p101
      %p208 = pneg %p98
      %p209 = pneg %p127
      %p210 = pneg %p124
      %p211 = scmp.lt.s32.totalorder %s17, 1
      %s212 = scalar_select %p211, %s17, 1
      %s213 = smul.addr %s212, 32
      %s214 = smul.addr %s213, 8
      %s215 = scalar_lea.vmem %s4, %s214
      %p216 = pneg %p153
      %p217 = pneg %p150
      %p218 = scmp.lt.s32.totalorder %s17, 1
      %s219 = scalar_select %p218, %s17, 1
      %s220 = smul.addr %s219, 2
      %s221 = scalar_lea.vmem %s5, %s220
      %p222 = scmp.lt.s32.totalorder %s17, 1
      %s223 = scalar_select %p222, %s17, 1
      %s224 = smul.addr %s223, 32
      %s225 = smul.addr %s224, 8
      %s226 = scalar_lea.vmem %s0, %s225
      %p227 = scmp.lt.s32.totalorder %s17, 1
      %s228 = scalar_select %p227, %s17, 1
      %s229 = smul.addr %s228, 32
      %s230 = smul.addr %s229, 8
      %s231 = scalar_lea.vmem %s4, %s230
      %p232 = scmp.lt.s32.totalorder %s17, 1
      %s233 = scalar_select %p232, %s17, 1
      %s234 = smul.addr %s233, 2
      %s235 = scalar_lea.vmem %s5, %s234
      %v236 = vld [vmem:[%s226] sm:$0xff]
      %v237 = vld [vmem:[%s226 + $0x8] sm:$0xff]
      %v238 = vld [vmem:[%s226 + $0x10] sm:$0xff]
      %v239 = vld [vmem:[%s226 + $0x18] sm:$0xff]
      %v240 = vld [vmem:[%s226 + $0x20] sm:$0xff]
      %v241 = vld [vmem:[%s226 + $0x28] sm:$0xff]
      %v242 = vld [vmem:[%s226 + $0x30] sm:$0xff]
      %v243 = vld [vmem:[%s226 + $0x38] sm:$0xff]
      %v244 = vld [vmem:[%s226 + $0x40] sm:$0xff]
      %v245 = vld [vmem:[%s226 + $0x48] sm:$0xff]
      %v246 = vld [vmem:[%s226 + $0x50] sm:$0xff]
      %v247 = vld [vmem:[%s226 + $0x58] sm:$0xff]
      %v248 = vld [vmem:[%s226 + $0x60] sm:$0xff]
      %v249 = vld [vmem:[%s226 + $0x68] sm:$0xff]
      %v250 = vld [vmem:[%s226 + $0x70] sm:$0xff]
      %v251 = vld [vmem:[%s226 + $0x78] sm:$0xff]
      %v252 = vld [vmem:[%s226 + $0x80] sm:$0xff]
      %v253 = vld [vmem:[%s226 + $0x88] sm:$0xff]
      %v254 = vld [vmem:[%s226 + $0x90] sm:$0xff]
      %v255 = vld [vmem:[%s226 + $0x98] sm:$0xff]
      %v256 = vld [vmem:[%s226 + $0xa0] sm:$0xff]
      %v257 = vld [vmem:[%s226 + $0xa8] sm:$0xff]
      %v258 = vld [vmem:[%s226 + $0xb0] sm:$0xff]
      %v259 = vld [vmem:[%s226 + $0xb8] sm:$0xff]
      %v260 = vld [vmem:[%s226 + $0xc0] sm:$0xff]
      %v261 = vld [vmem:[%s226 + $0xc8] sm:$0xff]
      %v262 = vld [vmem:[%s226 + $0xd0] sm:$0xff]
      %v263 = vld [vmem:[%s226 + $0xd8] sm:$0xff]
      %v264 = vld [vmem:[%s226 + $0xe0] sm:$0xff]
      %v265 = vld [vmem:[%s226 + $0xe8] sm:$0xff]
      %v266 = vld [vmem:[%s226 + $0xf0] sm:$0xff]
      %v267 = vld [vmem:[%s226 + $0xf8] sm:$0xff]
      %v268 = vld [vmem:[%s1] sm:$0x1]
      %v270 = vperm.slane %v268, 0
      %v272 = vmul.f32 %v236, %v270
      %v273 = vmul.f32 %v237, %v270
      %v274 = vmul.f32 %v238, %v270
      %v275 = vmul.f32 %v239, %v270
      %v276 = vmul.f32 %v240, %v270
      %v277 = vmul.f32 %v241, %v270
      %v278 = vmul.f32 %v242, %v270
      %v279 = vmul.f32 %v243, %v270
      %v280 = vmul.f32 %v244, %v270
      %v281 = vmul.f32 %v245, %v270
      %v282 = vmul.f32 %v246, %v270
      %v283 = vmul.f32 %v247, %v270
      %v284 = vmul.f32 %v248, %v270
      %v285 = vmul.f32 %v249, %v270
      %v286 = vmul.f32 %v250, %v270
      %v287 = vmul.f32 %v251, %v270
      %v288 = vmul.f32 %v252, %v270
      %v289 = vmul.f32 %v253, %v270
      %v290 = vmul.f32 %v254, %v270
      %v291 = vmul.f32 %v255, %v270
      %v292 = vmul.f32 %v256, %v270
      %v293 = vmul.f32 %v257, %v270
      %v294 = vmul.f32 %v258, %v270
      %v295 = vmul.f32 %v259, %v270
      %v296 = vmul.f32 %v260, %v270
      %v297 = vmul.f32 %v261, %v270
      %v298 = vmul.f32 %v262, %v270
      %v299 = vmul.f32 %v263, %v270
      %v300 = vmul.f32 %v264, %v270
      %v301 = vmul.f32 %v265, %v270
      %v302 = vmul.f32 %v266, %v270
      %v303 = vmul.f32 %v267, %v270
      %v304 = vld [vmem:[%s2] sm:$0x1]
      %v306 = vperm.slane %v304, 0
      %v308 = vadd.f32 %v272, %v306
      %v309 = vadd.f32 %v273, %v306
      %v310 = vadd.f32 %v274, %v306
      %v311 = vadd.f32 %v275, %v306
      %v312 = vadd.f32 %v276, %v306
      %v313 = vadd.f32 %v277, %v306
      %v314 = vadd.f32 %v278, %v306
      %v315 = vadd.f32 %v279, %v306
      %v316 = vadd.f32 %v280, %v306
      %v317 = vadd.f32 %v281, %v306
      %v318 = vadd.f32 %v282, %v306
      %v319 = vadd.f32 %v283, %v306
      %v320 = vadd.f32 %v284, %v306
      %v321 = vadd.f32 %v285, %v306
      %v322 = vadd.f32 %v286, %v306
      %v323 = vadd.f32 %v287, %v306
      %v324 = vadd.f32 %v288, %v306
      %v325 = vadd.f32 %v289, %v306
      %v326 = vadd.f32 %v290, %v306
      %v327 = vadd.f32 %v291, %v306
      %v328 = vadd.f32 %v292, %v306
      %v329 = vadd.f32 %v293, %v306
      %v330 = vadd.f32 %v294, %v306
      %v331 = vadd.f32 %v295, %v306
      %v332 = vadd.f32 %v296, %v306
      %v333 = vadd.f32 %v297, %v306
      %v334 = vadd.f32 %v298, %v306
      %v335 = vadd.f32 %v299, %v306
      %v336 = vadd.f32 %v300, %v306
      %v337 = vadd.f32 %v301, %v306
      %v338 = vadd.f32 %v302, %v306
      %v339 = vadd.f32 %v303, %v306
      %v340 = vmax.f32 %v308, 0.0
      %v341 = vmax.f32 %v309, 0.0
      %v342 = vmax.f32 %v310, 0.0
      %v343 = vmax.f32 %v311, 0.0
      %v344 = vmax.f32 %v312, 0.0
      %v345 = vmax.f32 %v313, 0.0
      %v346 = vmax.f32 %v314, 0.0
      %v347 = vmax.f32 %v315, 0.0
      %v348 = vmax.f32 %v316, 0.0
      %v349 = vmax.f32 %v317, 0.0
      %v350 = vmax.f32 %v318, 0.0
      %v351 = vmax.f32 %v319, 0.0
      %v352 = vmax.f32 %v320, 0.0
      %v353 = vmax.f32 %v321, 0.0
      %v354 = vmax.f32 %v322, 0.0
      %v355 = vmax.f32 %v323, 0.0
      %v356 = vmax.f32 %v324, 0.0
      %v357 = vmax.f32 %v325, 0.0
      %v358 = vmax.f32 %v326, 0.0
      %v359 = vmax.f32 %v327, 0.0
      %v360 = vmax.f32 %v328, 0.0
      %v361 = vmax.f32 %v329, 0.0
      %v362 = vmax.f32 %v330, 0.0
      %v363 = vmax.f32 %v331, 0.0
      %v364 = vmax.f32 %v332, 0.0
      %v365 = vmax.f32 %v333, 0.0
      %v366 = vmax.f32 %v334, 0.0
      %v367 = vmax.f32 %v335, 0.0
      %v368 = vmax.f32 %v336, 0.0
      %v369 = vmax.f32 %v337, 0.0
      %v370 = vmax.f32 %v338, 0.0
      %v371 = vmax.f32 %v339, 0.0
      %372 = vst [vmem:[#allocation2] sm:$0xff] 0.0
      %373 = vst [vmem:[#allocation2 + $0x8] sm:$0xff] 0.0
      %374 = vst [vmem:[#allocation2 + $0x10] sm:$0x3] 0.0
      %375 = vst [vmem:[#allocation2 + $0x18] sm:$0xff] 0.0
      %376 = vst [vmem:[#allocation2 + $0x20] sm:$0xff] 0.0
      %377 = vst [vmem:[#allocation2 + $0x28] sm:$0x3] 0.0
      %378 = vst [vmem:[#allocation2 + $0x30] sm:$0xff] 0.0
      %379 = vst [vmem:[#allocation2 + $0x38] sm:$0xff] 0.0
      %380 = vst [vmem:[#allocation2 + $0x40] sm:$0x3] 0.0
      %381 = vst [vmem:[#allocation2 + $0x48] sm:$0xff] 0.0
      %382 = vst [vmem:[#allocation2 + $0x50] sm:$0xff] 0.0
      %383 = vst [vmem:[#allocation2 + $0x58] sm:$0x3] 0.0
      %384 = vst [vmem:[#allocation2 + $0x60] sm:$0xff] 0.0
      %385 = vst [vmem:[#allocation2 + $0x68] sm:$0xff] 0.0
      %386 = vst [vmem:[#allocation2 + $0x70] sm:$0x3] 0.0
      %387 = vst [vmem:[#allocation2 + $0x78] sm:$0xff] 0.0
      %388 = vst [vmem:[#allocation2 + $0x80] sm:$0xff] 0.0
      %389 = vst [vmem:[#allocation2 + $0x88] sm:$0x3] 0.0
      %390 = vst [vmem:[#allocation2 + $0x90] sm:$0xff] 0.0
      %391 = vst [vmem:[#allocation2 + $0x98] sm:$0xff] 0.0
      %392 = vst [vmem:[#allocation2 + $0xa0] sm:$0x3] 0.0
      %393 = vst [vmem:[#allocation2 + $0xa8] sm:$0xff] 0.0
      %394 = vst [vmem:[#allocation2 + $0xb0] sm:$0xff] 0.0
      %395 = vst [vmem:[#allocation2 + $0xb8] sm:$0x3] 0.0
      %396 = vst [vmem:[#allocation2 + $0xc0] sm:$0xff] 0.0
      %397 = vst [vmem:[#allocation2 + $0xc8] sm:$0xff] 0.0
      %398 = vst [vmem:[#allocation2 + $0xd0] sm:$0x3] 0.0
      %399 = vst [vmem:[#allocation2 + $0xd8] sm:$0xff] 0.0
      %400 = vst [vmem:[#allocation2 + $0xe0] sm:$0xff] 0.0
      %401 = vst [vmem:[#allocation2 + $0xe8] sm:$0x3] 0.0
      %402 = vst [vmem:[#allocation2 + $0xf0] sm:$0xff] 0.0
      %403 = vst [vmem:[#allocation2 + $0xf8] sm:$0xff] 0.0
      %404 = vst [vmem:[#allocation2 + $0x100] sm:$0x3] 0.0
      %405 = vst [vmem:[#allocation2 + $0x108] sm:$0xff] 0.0
      %406 = vst [vmem:[#allocation2 + $0x110] sm:$0xff] 0.0
      %407 = vst [vmem:[#allocation2 + $0x118] sm:$0x3] 0.0
      %408 = vst [vmem:[#allocation2 + $0x120] sm:$0xff] 0.0
      %409 = vst [vmem:[#allocation2 + $0x128] sm:$0xff] 0.0
      %410 = vst [vmem:[#allocation2 + $0x130] sm:$0x3] 0.0
      %411 = vst [vmem:[#allocation2 + $0x138] sm:$0xff] 0.0
      %412 = vst [vmem:[#allocation2 + $0x140] sm:$0xff] 0.0
      %413 = vst [vmem:[#allocation2 + $0x148] sm:$0x3] 0.0
      %414 = vst [vmem:[#allocation2 + $0x150] sm:$0xff] 0.0
      %415 = vst [vmem:[#allocation2 + $0x158] sm:$0xff] 0.0
      %416 = vst [vmem:[#allocation2 + $0x160] sm:$0x3] 0.0
      %417 = vst [vmem:[#allocation2 + $0x168] sm:$0xff] 0.0
      %418 = vst [vmem:[#allocation2 + $0x170] sm:$0xff] 0.0
      %419 = vst [vmem:[#allocation2 + $0x178] sm:$0x3] 0.0
      %420 = vst [vmem:[#allocation2 + $0x180] sm:$0xff] 0.0
      %421 = vst [vmem:[#allocation2 + $0x188] sm:$0xff] 0.0
      %422 = vst [vmem:[#allocation2 + $0x190] sm:$0x3] 0.0
      %423 = vst [vmem:[#allocation2 + $0x198] sm:$0xff] 0.0
      %424 = vst [vmem:[#allocation2 + $0x1a0] sm:$0xff] 0.0
      %425 = vst [vmem:[#allocation2 + $0x1a8] sm:$0x3] 0.0
      %s426 = scalar_lea.vmem [#allocation2], 24
      %427 = vst [vmem:[%s426 + $0x1] sm:$0xff] %v340
      %428 = vst [vmem:[%s426 + $0x9] sm:$0xff] %v341
      %429 = vst [vmem:[%s426 + $0x19] sm:$0xff] %v342
      %430 = vst [vmem:[%s426 + $0x21] sm:$0xff] %v343
      %431 = vst [vmem:[%s426 + $0x31] sm:$0xff] %v344
      %432 = vst [vmem:[%s426 + $0x39] sm:$0xff] %v345
      %433 = vst [vmem:[%s426 + $0x49] sm:$0xff] %v346
      %434 = vst [vmem:[%s426 + $0x51] sm:$0xff] %v347
      %435 = vst [vmem:[%s426 + $0x61] sm:$0xff] %v348
      %436 = vst [vmem:[%s426 + $0x69] sm:$0xff] %v349
      %437 = vst [vmem:[%s426 + $0x79] sm:$0xff] %v350
      %438 = vst [vmem:[%s426 + $0x81] sm:$0xff] %v351
      %439 = vst [vmem:[%s426 + $0x91] sm:$0xff] %v352
      %440 = vst [vmem:[%s426 + $0x99] sm:$0xff] %v353
      %441 = vst [vmem:[%s426 + $0xa9] sm:$0xff] %v354
      %442 = vst [vmem:[%s426 + $0xb1] sm:$0xff] %v355
      %443 = vst [vmem:[%s426 + $0xc1] sm:$0xff] %v356
      %444 = vst [vmem:[%s426 + $0xc9] sm:$0xff] %v357
      %445 = vst [vmem:[%s426 + $0xd9] sm:$0xff] %v358
      %446 = vst [vmem:[%s426 + $0xe1] sm:$0xff] %v359
      %447 = vst [vmem:[%s426 + $0xf1] sm:$0xff] %v360
      %448 = vst [vmem:[%s426 + $0xf9] sm:$0xff] %v361
      %449 = vst [vmem:[%s426 + $0x109] sm:$0xff] %v362
      %450 = vst [vmem:[%s426 + $0x111] sm:$0xff] %v363
      %451 = vst [vmem:[%s426 + $0x121] sm:$0xff] %v364
      %452 = vst [vmem:[%s426 + $0x129] sm:$0xff] %v365
      %453 = vst [vmem:[%s426 + $0x139] sm:$0xff] %v366
      %454 = vst [vmem:[%s426 + $0x141] sm:$0xff] %v367
      %455 = vst [vmem:[%s426 + $0x151] sm:$0xff] %v368
      %456 = vst [vmem:[%s426 + $0x159] sm:$0xff] %v369
      %457 = vst [vmem:[%s426 + $0x169] sm:$0xff] %v370
      %458 = vst [vmem:[%s426 + $0x171] sm:$0xff] %v371
      %v459 = vld [vmem:[#allocation2] sm:$0xff]
      %v460 = vld [vmem:[#allocation2 + $0x8] sm:$0xff]
      %v461 = vld [vmem:[#allocation2 + $0x18] sm:$0xff]
      %v462 = vld [vmem:[#allocation2 + $0x20] sm:$0xff]
      %v463 = vld [vmem:[#allocation2 + $0x30] sm:$0xff]
      %v464 = vld [vmem:[#allocation2 + $0x38] sm:$0xff]
      %v465 = vld [vmem:[#allocation2 + $0x48] sm:$0xff]
      %v466 = vld [vmem:[#allocation2 + $0x50] sm:$0xff]
      %v467 = vld [vmem:[#allocation2 + $0x60] sm:$0xff]
      %v468 = vld [vmem:[#allocation2 + $0x68] sm:$0xff]
      %v469 = vld [vmem:[#allocation2 + $0x78] sm:$0xff]
      %v470 = vld [vmem:[#allocation2 + $0x80] sm:$0xff]
      %v471 = vld [vmem:[#allocation2 + $0x90] sm:$0xff]
      %v472 = vld [vmem:[#allocation2 + $0x98] sm:$0xff]
      %v473 = vld [vmem:[#allocation2 + $0xa8] sm:$0xff]
      %v474 = vld [vmem:[#allocation2 + $0xb0] sm:$0xff]
      %v475 = vld [vmem:[#allocation2 + $0xc0] sm:$0xff]
      %v476 = vld [vmem:[#allocation2 + $0xc8] sm:$0xff]
      %v477 = vld [vmem:[#allocation2 + $0xd8] sm:$0xff]
      %v478 = vld [vmem:[#allocation2 + $0xe0] sm:$0xff]
      %v479 = vld [vmem:[#allocation2 + $0xf0] sm:$0xff]
      %v480 = vld [vmem:[#allocation2 + $0xf8] sm:$0xff]
      %v481 = vld [vmem:[#allocation2 + $0x108] sm:$0xff]
      %v482 = vld [vmem:[#allocation2 + $0x110] sm:$0xff]
      %v483 = vld [vmem:[#allocation2 + $0x120] sm:$0xff]
      %v484 = vld [vmem:[#allocation2 + $0x128] sm:$0xff]
      %v485 = vld [vmem:[#allocation2 + $0x138] sm:$0xff]
      %v486 = vld [vmem:[#allocation2 + $0x140] sm:$0xff]
      %v487 = vld [vmem:[#allocation2 + $0x150] sm:$0xff]
      %v488 = vld [vmem:[#allocation2 + $0x158] sm:$0xff]
      %v489 = vld [vmem:[#allocation2 + $0x168] sm:$0xff]
      %v490 = vld [vmem:[#allocation2 + $0x170] sm:$0xff]
      %v491 = vld [vmem:[%s3] sm:$0xff]
      %v492 = vld [vmem:[%s3 + $0x8] sm:$0xff]
      %v493 = vld [vmem:[%s3 + $0x10] sm:$0xff]
      %v494 = vld [vmem:[%s3 + $0x18] sm:$0xff]
      %v495 = vld [vmem:[%s3 + $0x20] sm:$0xff]
      %v496 = vld [vmem:[%s3 + $0x28] sm:$0xff]
      %v497 = vld [vmem:[%s3 + $0x30] sm:$0xff]
      %v498 = vld [vmem:[%s3 + $0x38] sm:$0xff]
      %v499 = vld [vmem:[%s3 + $0x40] sm:$0xff]
      %v500 = vld [vmem:[%s3 + $0x48] sm:$0xff]
      %v501 = vld [vmem:[%s3 + $0x50] sm:$0xff]
      %v502 = vld [vmem:[%s3 + $0x58] sm:$0xff]
      %v503 = vld [vmem:[%s3 + $0x60] sm:$0xff]
      %v504 = vld [vmem:[%s3 + $0x68] sm:$0xff]
      %v505 = vld [vmem:[%s3 + $0x70] sm:$0xff]
      %v506 = vld [vmem:[%s3 + $0x78] sm:$0xff]
      %v507 = vld [vmem:[#allocation2 + $0x1] sm:$0xff]
      %v508 = vld [vmem:[#allocation2 + $0x9] sm:$0xff]
      %v509 = vld [vmem:[#allocation2 + $0x19] sm:$0xff]
      %v510 = vld [vmem:[#allocation2 + $0x21] sm:$0xff]
      %v511 = vld [vmem:[#allocation2 + $0x31] sm:$0xff]
      %v512 = vld [vmem:[#allocation2 + $0x39] sm:$0xff]
      %v513 = vld [vmem:[#allocation2 + $0x49] sm:$0xff]
      %v514 = vld [vmem:[#allocation2 + $0x51] sm:$0xff]
      %v515 = vld [vmem:[#allocation2 + $0x61] sm:$0xff]
      %v516 = vld [vmem:[#allocation2 + $0x69] sm:$0xff]
      %v517 = vld [vmem:[#allocation2 + $0x79] sm:$0xff]
      %v518 = vld [vmem:[#allocation2 + $0x81] sm:$0xff]
      %v519 = vld [vmem:[#allocation2 + $0x91] sm:$0xff]
      %v520 = vld [vmem:[#allocation2 + $0x99] sm:$0xff]
      %v521 = vld [vmem:[#allocation2 + $0xa9] sm:$0xff]
      %v522 = vld [vmem:[#allocation2 + $0xb1] sm:$0xff]
      %v523 = vld [vmem:[#allocation2 + $0xc1] sm:$0xff]
      %v524 = vld [vmem:[#allocation2 + $0xc9] sm:$0xff]
      %v525 = vld [vmem:[#allocation2 + $0xd9] sm:$0xff]
      %v526 = vld [vmem:[#allocation2 + $0xe1] sm:$0xff]
      %v527 = vld [vmem:[#allocation2 + $0xf1] sm:$0xff]
      %v528 = vld [vmem:[#allocation2 + $0xf9] sm:$0xff]
      %v529 = vld [vmem:[#allocation2 + $0x109] sm:$0xff]
      %v530 = vld [vmem:[#allocation2 + $0x111] sm:$0xff]
      %v531 = vld [vmem:[#allocation2 + $0x121] sm:$0xff]
      %v532 = vld [vmem:[#allocation2 + $0x129] sm:$0xff]
      %v533 = vld [vmem:[#allocation2 + $0x139] sm:$0xff]
      %v534 = vld [vmem:[#allocation2 + $0x141] sm:$0xff]
      %v535 = vld [vmem:[#allocation2 + $0x151] sm:$0xff]
      %v536 = vld [vmem:[#allocation2 + $0x159] sm:$0xff]
      %v537 = vld [vmem:[#allocation2 + $0x169] sm:$0xff]
      %v538 = vld [vmem:[#allocation2 + $0x171] sm:$0xff]
      %s539 = scalar_lea.vmem %s3, 128
      %v540 = vld [vmem:[%s539] sm:$0xff]
      %v541 = vld [vmem:[%s539 + $0x8] sm:$0xff]
      %v542 = vld [vmem:[%s539 + $0x10] sm:$0xff]
      %v543 = vld [vmem:[%s539 + $0x18] sm:$0xff]
      %v544 = vld [vmem:[%s539 + $0x20] sm:$0xff]
      %v545 = vld [vmem:[%s539 + $0x28] sm:$0xff]
      %v546 = vld [vmem:[%s539 + $0x30] sm:$0xff]
      %v547 = vld [vmem:[%s539 + $0x38] sm:$0xff]
      %v548 = vld [vmem:[%s539 + $0x40] sm:$0xff]
      %v549 = vld [vmem:[%s539 + $0x48] sm:$0xff]
      %v550 = vld [vmem:[%s539 + $0x50] sm:$0xff]
      %v551 = vld [vmem:[%s539 + $0x58] sm:$0xff]
      %v552 = vld [vmem:[%s539 + $0x60] sm:$0xff]
      %v553 = vld [vmem:[%s539 + $0x68] sm:$0xff]
      %v554 = vld [vmem:[%s539 + $0x70] sm:$0xff]
      %v555 = vld [vmem:[%s539 + $0x78] sm:$0xff]
      %556 = vmatpush.msra.mxu0 %v555
      %557 = vmatpush.msra.mxu0 %v554
      %558 = vmatpush.msra.mxu0 %v553
      %559 = vmatpush.msra.mxu0 %v552
      %560 = vmatpush.msra.mxu0 %v551
      %561 = vmatpush.msra.mxu0 %v550
      %562 = vmatpush.msra.mxu0 %v549
      %563 = vmatpush.msra.mxu0 %v548
      %564 = vmatpush.msra.mxu0 %v547
      %565 = vmatpush.msra.mxu0 %v546
      %566 = vmatpush.msra.mxu0 %v545
      %567 = vmatpush.msra.mxu0 %v544
      %568 = vmatpush.msra.mxu0 %v543
      %569 = vmatpush.msra.mxu0 %v542
      %570 = vmatpush.msra.mxu0 %v541
      %571 = vmatpush.msra.mxu0 %v540
      %572 = vmatmul.f32.gmra.mxu0 %v507
      %v573 = vpop.f32.mrf.mxu0
      %v574 = vadd.f32 0.0, %v573
      %575 = vmatmul.f32.gmra.mxu0 %v508
      %v576 = vpop.f32.mrf.mxu0
      %v577 = vadd.f32 0.0, %v576
      %578 = vmatmul.f32.gmra.mxu0 %v509
      %v579 = vpop.f32.mrf.mxu0
      %v580 = vadd.f32 0.0, %v579
      %581 = vmatmul.f32.gmra.mxu0 %v510
      %v582 = vpop.f32.mrf.mxu0
      %v583 = vadd.f32 0.0, %v582
      %584 = vmatmul.f32.gmra.mxu0 %v511
      %v585 = vpop.f32.mrf.mxu0
      %v586 = vadd.f32 0.0, %v585
      %587 = vmatmul.f32.gmra.mxu0 %v512
      %v588 = vpop.f32.mrf.mxu0
      %v589 = vadd.f32 0.0, %v588
      %590 = vmatmul.f32.gmra.mxu0 %v513
      %v591 = vpop.f32.mrf.mxu0
      %v592 = vadd.f32 0.0, %v591
      %593 = vmatmul.f32.gmra.mxu0 %v514
      %v594 = vpop.f32.mrf.mxu0
      %v595 = vadd.f32 0.0, %v594
      %596 = vmatmul.f32.gmra.mxu0 %v515
      %v597 = vpop.f32.mrf.mxu0
      %v598 = vadd.f32 0.0, %v597
      %599 = vmatmul.f32.gmra.mxu0 %v516
      %v600 = vpop.f32.mrf.mxu0
      %v601 = vadd.f32 0.0, %v600
      %602 = vmatmul.f32.gmra.mxu0 %v517
      %v603 = vpop.f32.mrf.mxu0
      %v604 = vadd.f32 0.0, %v603
      %605 = vmatmul.f32.gmra.mxu0 %v518
      %v606 = vpop.f32.mrf.mxu0
      %v607 = vadd.f32 0.0, %v606
      %608 = vmatmul.f32.gmra.mxu0 %v519
      %v609 = vpop.f32.mrf.mxu0
      %v610 = vadd.f32 0.0, %v609
      %611 = vmatmul.f32.gmra.mxu0 %v520
      %v612 = vpop.f32.mrf.mxu0
      %v613 = vadd.f32 0.0, %v612
      %614 = vmatmul.f32.gmra.mxu0 %v521
      %v615 = vpop.f32.mrf.mxu0
      %v616 = vadd.f32 0.0, %v615
      %617 = vmatmul.f32.gmra.mxu0 %v522
      %v618 = vpop.f32.mrf.mxu0
      %v619 = vadd.f32 0.0, %v618
      %620 = vmatmul.f32.gmra.mxu0 %v523
      %v621 = vpop.f32.mrf.mxu0
      %v622 = vadd.f32 0.0, %v621
      %623 = vmatmul.f32.gmra.mxu0 %v524
      %v624 = vpop.f32.mrf.mxu0
      %v625 = vadd.f32 0.0, %v624
      %626 = vmatmul.f32.gmra.mxu0 %v525
      %v627 = vpop.f32.mrf.mxu0
      %v628 = vadd.f32 0.0, %v627
      %629 = vmatmul.f32.gmra.mxu0 %v526
      %v630 = vpop.f32.mrf.mxu0
      %v631 = vadd.f32 0.0, %v630
      %632 = vmatmul.f32.gmra.mxu0 %v527
      %v633 = vpop.f32.mrf.mxu0
      %v634 = vadd.f32 0.0, %v633
      %635 = vmatmul.f32.gmra.mxu0 %v528
      %v636 = vpop.f32.mrf.mxu0
      %v637 = vadd.f32 0.0, %v636
      %638 = vmatmul.f32.gmra.mxu0 %v529
      %v639 = vpop.f32.mrf.mxu0
      %v640 = vadd.f32 0.0, %v639
      %641 = vmatmul.f32.gmra.mxu0 %v530
      %v642 = vpop.f32.mrf.mxu0
      %v643 = vadd.f32 0.0, %v642
      %644 = vmatmul.f32.gmra.mxu0 %v531
      %v645 = vpop.f32.mrf.mxu0
      %v646 = vadd.f32 0.0, %v645
      %647 = vmatmul.f32.gmra.mxu0 %v532
      %v648 = vpop.f32.mrf.mxu0
      %v649 = vadd.f32 0.0, %v648
      %650 = vmatmul.f32.gmra.mxu0 %v533
      %v651 = vpop.f32.mrf.mxu0
      %v652 = vadd.f32 0.0, %v651
      %653 = vmatmul.f32.gmra.mxu0 %v534
      %v654 = vpop.f32.mrf.mxu0
      %v655 = vadd.f32 0.0, %v654
      %656 = vmatmul.f32.gmra.mxu0 %v535
      %v657 = vpop.f32.mrf.mxu0
      %v658 = vadd.f32 0.0, %v657
      %659 = vmatmul.f32.gmra.mxu0 %v536
      %v660 = vpop.f32.mrf.mxu0
      %v661 = vadd.f32 0.0, %v660
      %662 = vmatmul.f32.gmra.mxu0 %v537
      %v663 = vpop.f32.mrf.mxu0
      %v664 = vadd.f32 0.0, %v663
      %665 = vmatmul.f32.gmra.mxu0 %v538
      %v666 = vpop.f32.mrf.mxu0
      %v667 = vadd.f32 0.0, %v666
      %668 = vdwg.mxu0
      %669 = vmatpush.msra.mxu0 %v506
      %670 = vmatpush.msra.mxu0 %v505
      %671 = vmatpush.msra.mxu0 %v504
      %672 = vmatpush.msra.mxu0 %v503
      %673 = vmatpush.msra.mxu0 %v502
      %674 = vmatpush.msra.mxu0 %v501
      %675 = vmatpush.msra.mxu0 %v500
      %676 = vmatpush.msra.mxu0 %v499
      %677 = vmatpush.msra.mxu0 %v498
      %678 = vmatpush.msra.mxu0 %v497
      %679 = vmatpush.msra.mxu0 %v496
      %680 = vmatpush.msra.mxu0 %v495
      %681 = vmatpush.msra.mxu0 %v494
      %682 = vmatpush.msra.mxu0 %v493
      %683 = vmatpush.msra.mxu0 %v492
      %684 = vmatpush.msra.mxu0 %v491
      %685 = vmatmul.f32.gmra.mxu0 %v459
      %v686 = vpop.f32.mrf.mxu0
      %v687 = vadd.f32 %v574, %v686
      %688 = vmatmul.f32.gmra.mxu0 %v460
      %v689 = vpop.f32.mrf.mxu0
      %v690 = vadd.f32 %v577, %v689
      %691 = vmatmul.f32.gmra.mxu0 %v461
      %v692 = vpop.f32.mrf.mxu0
      %v693 = vadd.f32 %v580, %v692
      %694 = vmatmul.f32.gmra.mxu0 %v462
      %v695 = vpop.f32.mrf.mxu0
      %v696 = vadd.f32 %v583, %v695
      %697 = vmatmul.f32.gmra.mxu0 %v463
      %v698 = vpop.f32.mrf.mxu0
      %v699 = vadd.f32 %v586, %v698
      %700 = vmatmul.f32.gmra.mxu0 %v464
      %v701 = vpop.f32.mrf.mxu0
      %v702 = vadd.f32 %v589, %v701
      %703 = vmatmul.f32.gmra.mxu0 %v465
      %v704 = vpop.f32.mrf.mxu0
      %v705 = vadd.f32 %v592, %v704
      %706 = vmatmul.f32.gmra.mxu0 %v466
      %v707 = vpop.f32.mrf.mxu0
      %v708 = vadd.f32 %v595, %v707
      %709 = vmatmul.f32.gmra.mxu0 %v467
      %v710 = vpop.f32.mrf.mxu0
      %v711 = vadd.f32 %v598, %v710
      %712 = vmatmul.f32.gmra.mxu0 %v468
      %v713 = vpop.f32.mrf.mxu0
      %v714 = vadd.f32 %v601, %v713
      %715 = vmatmul.f32.gmra.mxu0 %v469
      %v716 = vpop.f32.mrf.mxu0
      %v717 = vadd.f32 %v604, %v716
      %718 = vmatmul.f32.gmra.mxu0 %v470
      %v719 = vpop.f32.mrf.mxu0
      %v720 = vadd.f32 %v607, %v719
      %721 = vmatmul.f32.gmra.mxu0 %v471
      %v722 = vpop.f32.mrf.mxu0
      %v723 = vadd.f32 %v610, %v722
      %724 = vmatmul.f32.gmra.mxu0 %v472
      %v725 = vpop.f32.mrf.mxu0
      %v726 = vadd.f32 %v613, %v725
      %727 = vmatmul.f32.gmra.mxu0 %v473
      %v728 = vpop.f32.mrf.mxu0
      %v729 = vadd.f32 %v616, %v728
      %730 = vmatmul.f32.gmra.mxu0 %v474
      %v731 = vpop.f32.mrf.mxu0
      %v732 = vadd.f32 %v619, %v731
      %733 = vmatmul.f32.gmra.mxu0 %v475
      %v734 = vpop.f32.mrf.mxu0
      %v735 = vadd.f32 %v622, %v734
      %736 = vmatmul.f32.gmra.mxu0 %v476
      %v737 = vpop.f32.mrf.mxu0
      %v738 = vadd.f32 %v625, %v737
      %739 = vmatmul.f32.gmra.mxu0 %v477
      %v740 = vpop.f32.mrf.mxu0
      %v741 = vadd.f32 %v628, %v740
      %742 = vmatmul.f32.gmra.mxu0 %v478
      %v743 = vpop.f32.mrf.mxu0
      %v744 = vadd.f32 %v631, %v743
      %745 = vmatmul.f32.gmra.mxu0 %v479
      %v746 = vpop.f32.mrf.mxu0
      %v747 = vadd.f32 %v634, %v746
      %748 = vmatmul.f32.gmra.mxu0 %v480
      %v749 = vpop.f32.mrf.mxu0
      %v750 = vadd.f32 %v637, %v749
      %751 = vmatmul.f32.gmra.mxu0 %v481
      %v752 = vpop.f32.mrf.mxu0
      %v753 = vadd.f32 %v640, %v752
      %754 = vmatmul.f32.gmra.mxu0 %v482
      %v755 = vpop.f32.mrf.mxu0
      %v756 = vadd.f32 %v643, %v755
      %757 = vmatmul.f32.gmra.mxu0 %v483
      %v758 = vpop.f32.mrf.mxu0
      %v759 = vadd.f32 %v646, %v758
      %760 = vmatmul.f32.gmra.mxu0 %v484
      %v761 = vpop.f32.mrf.mxu0
      %v762 = vadd.f32 %v649, %v761
      %763 = vmatmul.f32.gmra.mxu0 %v485
      %v764 = vpop.f32.mrf.mxu0
      %v765 = vadd.f32 %v652, %v764
      %766 = vmatmul.f32.gmra.mxu0 %v486
      %v767 = vpop.f32.mrf.mxu0
      %v768 = vadd.f32 %v655, %v767
      %769 = vmatmul.f32.gmra.mxu0 %v487
      %v770 = vpop.f32.mrf.mxu0
      %v771 = vadd.f32 %v658, %v770
      %772 = vmatmul.f32.gmra.mxu0 %v488
      %v773 = vpop.f32.mrf.mxu0
      %v774 = vadd.f32 %v661, %v773
      %775 = vmatmul.f32.gmra.mxu0 %v489
      %v776 = vpop.f32.mrf.mxu0
      %v777 = vadd.f32 %v664, %v776
      %778 = vmatmul.f32.gmra.mxu0 %v490
      %v779 = vpop.f32.mrf.mxu0
      %v780 = vadd.f32 %v667, %v779
      %781 = vdwg.mxu0
      %v782 = vld [vmem:[#allocation2 + $0x2] sm:$0xff]
      %v783 = vld [vmem:[#allocation2 + $0xa] sm:$0xff]
      %v784 = vld [vmem:[#allocation2 + $0x1a] sm:$0xff]
      %v785 = vld [vmem:[#allocation2 + $0x22] sm:$0xff]
      %v786 = vld [vmem:[#allocation2 + $0x32] sm:$0xff]
      %v787 = vld [vmem:[#allocation2 + $0x3a] sm:$0xff]
      %v788 = vld [vmem:[#allocation2 + $0x4a] sm:$0xff]
      %v789 = vld [vmem:[#allocation2 + $0x52] sm:$0xff]
      %v790 = vld [vmem:[#allocation2 + $0x62] sm:$0xff]
      %v791 = vld [vmem:[#allocation2 + $0x6a] sm:$0xff]
      %v792 = vld [vmem:[#allocation2 + $0x7a] sm:$0xff]
      %v793 = vld [vmem:[#allocation2 + $0x82] sm:$0xff]
      %v794 = vld [vmem:[#allocation2 + $0x92] sm:$0xff]
      %v795 = vld [vmem:[#allocation2 + $0x9a] sm:$0xff]
      %v796 = vld [vmem:[#allocation2 + $0xaa] sm:$0xff]
      %v797 = vld [vmem:[#allocation2 + $0xb2] sm:$0xff]
      %v798 = vld [vmem:[#allocation2 + $0xc2] sm:$0xff]
      %v799 = vld [vmem:[#allocation2 + $0xca] sm:$0xff]
      %v800 = vld [vmem:[#allocation2 + $0xda] sm:$0xff]
      %v801 = vld [vmem:[#allocation2 + $0xe2] sm:$0xff]
      %v802 = vld [vmem:[#allocation2 + $0xf2] sm:$0xff]
      %v803 = vld [vmem:[#allocation2 + $0xfa] sm:$0xff]
      %v804 = vld [vmem:[#allocation2 + $0x10a] sm:$0xff]
      %v805 = vld [vmem:[#allocation2 + $0x112] sm:$0xff]
      %v806 = vld [vmem:[#allocation2 + $0x122] sm:$0xff]
      %v807 = vld [vmem:[#allocation2 + $0x12a] sm:$0xff]
      %v808 = vld [vmem:[#allocation2 + $0x13a] sm:$0xff]
      %v809 = vld [vmem:[#allocation2 + $0x142] sm:$0xff]
      %v810 = vld [vmem:[#allocation2 + $0x152] sm:$0xff]
      %v811 = vld [vmem:[#allocation2 + $0x15a] sm:$0xff]
      %v812 = vld [vmem:[#allocation2 + $0x16a] sm:$0xff]
      %v813 = vld [vmem:[#allocation2 + $0x172] sm:$0xff]
      %s814 = scalar_lea.vmem %s3, 256
      %v815 = vld [vmem:[%s814] sm:$0xff]
      %v816 = vld [vmem:[%s814 + $0x8] sm:$0xff]
      %v817 = vld [vmem:[%s814 + $0x10] sm:$0xff]
      %v818 = vld [vmem:[%s814 + $0x18] sm:$0xff]
      %v819 = vld [vmem:[%s814 + $0x20] sm:$0xff]
      %v820 = vld [vmem:[%s814 + $0x28] sm:$0xff]
      %v821 = vld [vmem:[%s814 + $0x30] sm:$0xff]
      %v822 = vld [vmem:[%s814 + $0x38] sm:$0xff]
      %v823 = vld [vmem:[%s814 + $0x40] sm:$0xff]
      %v824 = vld [vmem:[%s814 + $0x48] sm:$0xff]
      %v825 = vld [vmem:[%s814 + $0x50] sm:$0xff]
      %v826 = vld [vmem:[%s814 + $0x58] sm:$0xff]
      %v827 = vld [vmem:[%s814 + $0x60] sm:$0xff]
      %v828 = vld [vmem:[%s814 + $0x68] sm:$0xff]
      %v829 = vld [vmem:[%s814 + $0x70] sm:$0xff]
      %v830 = vld [vmem:[%s814 + $0x78] sm:$0xff]
      %831 = vmatpush.msra.mxu0 %v830
      %832 = vmatpush.msra.mxu0 %v829
      %833 = vmatpush.msra.mxu0 %v828
      %834 = vmatpush.msra.mxu0 %v827
      %835 = vmatpush.msra.mxu0 %v826
      %836 = vmatpush.msra.mxu0 %v825
      %837 = vmatpush.msra.mxu0 %v824
      %838 = vmatpush.msra.mxu0 %v823
      %839 = vmatpush.msra.mxu0 %v822
      %840 = vmatpush.msra.mxu0 %v821
      %841 = vmatpush.msra.mxu0 %v820
      %842 = vmatpush.msra.mxu0 %v819
      %843 = vmatpush.msra.mxu0 %v818
      %844 = vmatpush.msra.mxu0 %v817
      %845 = vmatpush.msra.mxu0 %v816
      %846 = vmatpush.msra.mxu0 %v815
      %847 = vmatmul.f32.gmra.mxu0 %v782
      %v848 = vpop.f32.mrf.mxu0
      %v849 = vadd.f32 0.0, %v848
      %850 = vmatmul.f32.gmra.mxu0 %v783
      %v851 = vpop.f32.mrf.mxu0
      %v852 = vadd.f32 0.0, %v851
      %853 = vmatmul.f32.gmra.mxu0 %v784
      %v854 = vpop.f32.mrf.mxu0
      %v855 = vadd.f32 0.0, %v854
      %856 = vmatmul.f32.gmra.mxu0 %v785
      %v857 = vpop.f32.mrf.mxu0
      %v858 = vadd.f32 0.0, %v857
      %859 = vmatmul.f32.gmra.mxu0 %v786
      %v860 = vpop.f32.mrf.mxu0
      %v861 = vadd.f32 0.0, %v860
      %862 = vmatmul.f32.gmra.mxu0 %v787
      %v863 = vpop.f32.mrf.mxu0
      %v864 = vadd.f32 0.0, %v863
      %865 = vmatmul.f32.gmra.mxu0 %v788
      %v866 = vpop.f32.mrf.mxu0
      %v867 = vadd.f32 0.0, %v866
      %868 = vmatmul.f32.gmra.mxu0 %v789
      %v869 = vpop.f32.mrf.mxu0
      %v870 = vadd.f32 0.0, %v869
      %871 = vmatmul.f32.gmra.mxu0 %v790
      %v872 = vpop.f32.mrf.mxu0
      %v873 = vadd.f32 0.0, %v872
      %874 = vmatmul.f32.gmra.mxu0 %v791
      %v875 = vpop.f32.mrf.mxu0
      %v876 = vadd.f32 0.0, %v875
      %877 = vmatmul.f32.gmra.mxu0 %v792
      %v878 = vpop.f32.mrf.mxu0
      %v879 = vadd.f32 0.0, %v878
      %880 = vmatmul.f32.gmra.mxu0 %v793
      %v881 = vpop.f32.mrf.mxu0
      %v882 = vadd.f32 0.0, %v881
      %883 = vmatmul.f32.gmra.mxu0 %v794
      %v884 = vpop.f32.mrf.mxu0
      %v885 = vadd.f32 0.0, %v884
      %886 = vmatmul.f32.gmra.mxu0 %v795
      %v887 = vpop.f32.mrf.mxu0
      %v888 = vadd.f32 0.0, %v887
      %889 = vmatmul.f32.gmra.mxu0 %v796
      %v890 = vpop.f32.mrf.mxu0
      %v891 = vadd.f32 0.0, %v890
      %892 = vmatmul.f32.gmra.mxu0 %v797
      %v893 = vpop.f32.mrf.mxu0
      %v894 = vadd.f32 0.0, %v893
      %895 = vmatmul.f32.gmra.mxu0 %v798
      %v896 = vpop.f32.mrf.mxu0
      %v897 = vadd.f32 0.0, %v896
      %898 = vmatmul.f32.gmra.mxu0 %v799
      %v899 = vpop.f32.mrf.mxu0
      %v900 = vadd.f32 0.0, %v899
      %901 = vmatmul.f32.gmra.mxu0 %v800
      %v902 = vpop.f32.mrf.mxu0
      %v903 = vadd.f32 0.0, %v902
      %904 = vmatmul.f32.gmra.mxu0 %v801
      %v905 = vpop.f32.mrf.mxu0
      %v906 = vadd.f32 0.0, %v905
      %907 = vmatmul.f32.gmra.mxu0 %v802
      %v908 = vpop.f32.mrf.mxu0
      %v909 = vadd.f32 0.0, %v908
      %910 = vmatmul.f32.gmra.mxu0 %v803
      %v911 = vpop.f32.mrf.mxu0
      %v912 = vadd.f32 0.0, %v911
      %913 = vmatmul.f32.gmra.mxu0 %v804
      %v914 = vpop.f32.mrf.mxu0
      %v915 = vadd.f32 0.0, %v914
      %916 = vmatmul.f32.gmra.mxu0 %v805
      %v917 = vpop.f32.mrf.mxu0
      %v918 = vadd.f32 0.0, %v917
      %919 = vmatmul.f32.gmra.mxu0 %v806
      %v920 = vpop.f32.mrf.mxu0
      %v921 = vadd.f32 0.0, %v920
      %922 = vmatmul.f32.gmra.mxu0 %v807
      %v923 = vpop.f32.mrf.mxu0
      %v924 = vadd.f32 0.0, %v923
      %925 = vmatmul.f32.gmra.mxu0 %v808
      %v926 = vpop.f32.mrf.mxu0
      %v927 = vadd.f32 0.0, %v926
      %928 = vmatmul.f32.gmra.mxu0 %v809
      %v929 = vpop.f32.mrf.mxu0
      %v930 = vadd.f32 0.0, %v929
      %931 = vmatmul.f32.gmra.mxu0 %v810
      %v932 = vpop.f32.mrf.mxu0
      %v933 = vadd.f32 0.0, %v932
      %934 = vmatmul.f32.gmra.mxu0 %v811
      %v935 = vpop.f32.mrf.mxu0
      %v936 = vadd.f32 0.0, %v935
      %937 = vmatmul.f32.gmra.mxu0 %v812
      %v938 = vpop.f32.mrf.mxu0
      %v939 = vadd.f32 0.0, %v938
      %940 = vmatmul.f32.gmra.mxu0 %v813
      %v941 = vpop.f32.mrf.mxu0
      %v942 = vadd.f32 0.0, %v941
      %943 = vdwg.mxu0
      %v944 = vadd.f32 %v687, %v849
      %v945 = vadd.f32 %v690, %v852
      %v946 = vadd.f32 %v693, %v855
      %v947 = vadd.f32 %v696, %v858
      %v948 = vadd.f32 %v699, %v861
      %v949 = vadd.f32 %v702, %v864
      %v950 = vadd.f32 %v705, %v867
      %v951 = vadd.f32 %v708, %v870
      %v952 = vadd.f32 %v711, %v873
      %v953 = vadd.f32 %v714, %v876
      %v954 = vadd.f32 %v717, %v879
      %v955 = vadd.f32 %v720, %v882
      %v956 = vadd.f32 %v723, %v885
      %v957 = vadd.f32 %v726, %v888
      %v958 = vadd.f32 %v729, %v891
      %v959 = vadd.f32 %v732, %v894
      %v960 = vadd.f32 %v735, %v897
      %v961 = vadd.f32 %v738, %v900
      %v962 = vadd.f32 %v741, %v903
      %v963 = vadd.f32 %v744, %v906
      %v964 = vadd.f32 %v747, %v909
      %v965 = vadd.f32 %v750, %v912
      %v966 = vadd.f32 %v753, %v915
      %v967 = vadd.f32 %v756, %v918
      %v968 = vadd.f32 %v759, %v921
      %v969 = vadd.f32 %v762, %v924
      %v970 = vadd.f32 %v765, %v927
      %v971 = vadd.f32 %v768, %v930
      %v972 = vadd.f32 %v771, %v933
      %v973 = vadd.f32 %v774, %v936
      %v974 = vadd.f32 %v777, %v939
      %v975 = vadd.f32 %v780, %v942
      %v976 = vld [vmem:[%s426] sm:$0xff]
      %v977 = vld [vmem:[%s426 + $0x8] sm:$0xff]
      %v978 = vld [vmem:[%s426 + $0x18] sm:$0xff]
      %v979 = vld [vmem:[%s426 + $0x20] sm:$0xff]
      %v980 = vld [vmem:[%s426 + $0x30] sm:$0xff]
      %v981 = vld [vmem:[%s426 + $0x38] sm:$0xff]
      %v982 = vld [vmem:[%s426 + $0x48] sm:$0xff]
      %v983 = vld [vmem:[%s426 + $0x50] sm:$0xff]
      %v984 = vld [vmem:[%s426 + $0x60] sm:$0xff]
      %v985 = vld [vmem:[%s426 + $0x68] sm:$0xff]
      %v986 = vld [vmem:[%s426 + $0x78] sm:$0xff]
      %v987 = vld [vmem:[%s426 + $0x80] sm:$0xff]
      %v988 = vld [vmem:[%s426 + $0x90] sm:$0xff]
      %v989 = vld [vmem:[%s426 + $0x98] sm:$0xff]
      %v990 = vld [vmem:[%s426 + $0xa8] sm:$0xff]
      %v991 = vld [vmem:[%s426 + $0xb0] sm:$0xff]
      %v992 = vld [vmem:[%s426 + $0xc0] sm:$0xff]
      %v993 = vld [vmem:[%s426 + $0xc8] sm:$0xff]
      %v994 = vld [vmem:[%s426 + $0xd8] sm:$0xff]
      %v995 = vld [vmem:[%s426 + $0xe0] sm:$0xff]
      %v996 = vld [vmem:[%s426 + $0xf0] sm:$0xff]
      %v997 = vld [vmem:[%s426 + $0xf8] sm:$0xff]
      %v998 = vld [vmem:[%s426 + $0x108] sm:$0xff]
      %v999 = vld [vmem:[%s426 + $0x110] sm:$0xff]
      %v1000 = vld [vmem:[%s426 + $0x120] sm:$0xff]
      %v1001 = vld [vmem:[%s426 + $0x128] sm:$0xff]
      %v1002 = vld [vmem:[%s426 + $0x138] sm:$0xff]
      %v1003 = vld [vmem:[%s426 + $0x140] sm:$0xff]
      %v1004 = vld [vmem:[%s426 + $0x150] sm:$0xff]
      %v1005 = vld [vmem:[%s426 + $0x158] sm:$0xff]
      %v1006 = vld [vmem:[%s426 + $0x168] sm:$0xff]
      %v1007 = vld [vmem:[%s426 + $0x170] sm:$0xff]
      %s1008 = scalar_lea.vmem %s3, 384
      %v1009 = vld [vmem:[%s1008] sm:$0xff]
      %v1010 = vld [vmem:[%s1008 + $0x8] sm:$0xff]
      %v1011 = vld [vmem:[%s1008 + $0x10] sm:$0xff]
      %v1012 = vld [vmem:[%s1008 + $0x18] sm:$0xff]
      %v1013 = vld [vmem:[%s1008 + $0x20] sm:$0xff]
      %v1014 = vld [vmem:[%s1008 + $0x28] sm:$0xff]
      %v1015 = vld [vmem:[%s1008 + $0x30] sm:$0xff]
      %v1016 = vld [vmem:[%s1008 + $0x38] sm:$0xff]
      %v1017 = vld [vmem:[%s1008 + $0x40] sm:$0xff]
      %v1018 = vld [vmem:[%s1008 + $0x48] sm:$0xff]
      %v1019 = vld [vmem:[%s1008 + $0x50] sm:$0xff]
      %v1020 = vld [vmem:[%s1008 + $0x58] sm:$0xff]
      %v1021 = vld [vmem:[%s1008 + $0x60] sm:$0xff]
      %v1022 = vld [vmem:[%s1008 + $0x68] sm:$0xff]
      %v1023 = vld [vmem:[%s1008 + $0x70] sm:$0xff]
      %v1024 = vld [vmem:[%s1008 + $0x78] sm:$0xff]
      %1025 = vmatpush.msra.mxu0 %v1024
      %1026 = vmatpush.msra.mxu0 %v1023
      %1027 = vmatpush.msra.mxu0 %v1022
      %1028 = vmatpush.msra.mxu0 %v1021
      %1029 = vmatpush.msra.mxu0 %v1020
      %1030 = vmatpush.msra.mxu0 %v1019
      %1031 = vmatpush.msra.mxu0 %v1018
      %1032 = vmatpush.msra.mxu0 %v1017
      %1033 = vmatpush.msra.mxu0 %v1016
      %1034 = vmatpush.msra.mxu0 %v1015
      %1035 = vmatpush.msra.mxu0 %v1014
      %1036 = vmatpush.msra.mxu0 %v1013
      %1037 = vmatpush.msra.mxu0 %v1012
      %1038 = vmatpush.msra.mxu0 %v1011
      %1039 = vmatpush.msra.mxu0 %v1010
      %1040 = vmatpush.msra.mxu0 %v1009
      %1041 = vmatmul.f32.gmra.mxu0 %v976
      %v1042 = vpop.f32.mrf.mxu0
      %v1043 = vadd.f32 0.0, %v1042
      %1044 = vmatmul.f32.gmra.mxu0 %v977
      %v1045 = vpop.f32.mrf.mxu0
      %v1046 = vadd.f32 0.0, %v1045
      %1047 = vmatmul.f32.gmra.mxu0 %v978
      %v1048 = vpop.f32.mrf.mxu0
      %v1049 = vadd.f32 0.0, %v1048
      %1050 = vmatmul.f32.gmra.mxu0 %v979
      %v1051 = vpop.f32.mrf.mxu0
      %v1052 = vadd.f32 0.0, %v1051
      %1053 = vmatmul.f32.gmra.mxu0 %v980
      %v1054 = vpop.f32.mrf.mxu0
      %v1055 = vadd.f32 0.0, %v1054
      %1056 = vmatmul.f32.gmra.mxu0 %v981
      %v1057 = vpop.f32.mrf.mxu0
      %v1058 = vadd.f32 0.0, %v1057
      %1059 = vmatmul.f32.gmra.mxu0 %v982
      %v1060 = vpop.f32.mrf.mxu0
      %v1061 = vadd.f32 0.0, %v1060
      %1062 = vmatmul.f32.gmra.mxu0 %v983
      %v1063 = vpop.f32.mrf.mxu0
      %v1064 = vadd.f32 0.0, %v1063
      %1065 = vmatmul.f32.gmra.mxu0 %v984
      %v1066 = vpop.f32.mrf.mxu0
      %v1067 = vadd.f32 0.0, %v1066
      %1068 = vmatmul.f32.gmra.mxu0 %v985
      %v1069 = vpop.f32.mrf.mxu0
      %v1070 = vadd.f32 0.0, %v1069
      %1071 = vmatmul.f32.gmra.mxu0 %v986
      %v1072 = vpop.f32.mrf.mxu0
      %v1073 = vadd.f32 0.0, %v1072
      %1074 = vmatmul.f32.gmra.mxu0 %v987
      %v1075 = vpop.f32.mrf.mxu0
      %v1076 = vadd.f32 0.0, %v1075
      %1077 = vmatmul.f32.gmra.mxu0 %v988
      %v1078 = vpop.f32.mrf.mxu0
      %v1079 = vadd.f32 0.0, %v1078
      %1080 = vmatmul.f32.gmra.mxu0 %v989
      %v1081 = vpop.f32.mrf.mxu0
      %v1082 = vadd.f32 0.0, %v1081
      %1083 = vmatmul.f32.gmra.mxu0 %v990
      %v1084 = vpop.f32.mrf.mxu0
      %v1085 = vadd.f32 0.0, %v1084
      %1086 = vmatmul.f32.gmra.mxu0 %v991
      %v1087 = vpop.f32.mrf.mxu0
      %v1088 = vadd.f32 0.0, %v1087
      %1089 = vmatmul.f32.gmra.mxu0 %v992
      %v1090 = vpop.f32.mrf.mxu0
      %v1091 = vadd.f32 0.0, %v1090
      %1092 = vmatmul.f32.gmra.mxu0 %v993
      %v1093 = vpop.f32.mrf.mxu0
      %v1094 = vadd.f32 0.0, %v1093
      %1095 = vmatmul.f32.gmra.mxu0 %v994
      %v1096 = vpop.f32.mrf.mxu0
      %v1097 = vadd.f32 0.0, %v1096
      %1098 = vmatmul.f32.gmra.mxu0 %v995
      %v1099 = vpop.f32.mrf.mxu0
      %v1100 = vadd.f32 0.0, %v1099
      %1101 = vmatmul.f32.gmra.mxu0 %v996
      %v1102 = vpop.f32.mrf.mxu0
      %v1103 = vadd.f32 0.0, %v1102
      %1104 = vmatmul.f32.gmra.mxu0 %v997
      %v1105 = vpop.f32.mrf.mxu0
      %v1106 = vadd.f32 0.0, %v1105
      %1107 = vmatmul.f32.gmra.mxu0 %v998
      %v1108 = vpop.f32.mrf.mxu0
      %v1109 = vadd.f32 0.0, %v1108
      %1110 = vmatmul.f32.gmra.mxu0 %v999
      %v1111 = vpop.f32.mrf.mxu0
      %v1112 = vadd.f32 0.0, %v1111
      %1113 = vmatmul.f32.gmra.mxu0 %v1000
      %v1114 = vpop.f32.mrf.mxu0
      %v1115 = vadd.f32 0.0, %v1114
      %1116 = vmatmul.f32.gmra.mxu0 %v1001
      %v1117 = vpop.f32.mrf.mxu0
      %v1118 = vadd.f32 0.0, %v1117
      %1119 = vmatmul.f32.gmra.mxu0 %v1002
      %v1120 = vpop.f32.mrf.mxu0
      %v1121 = vadd.f32 0.0, %v1120
      %1122 = vmatmul.f32.gmra.mxu0 %v1003
      %v1123 = vpop.f32.mrf.mxu0
      %v1124 = vadd.f32 0.0, %v1123
      %1125 = vmatmul.f32.gmra.mxu0 %v1004
      %v1126 = vpop.f32.mrf.mxu0
      %v1127 = vadd.f32 0.0, %v1126
      %1128 = vmatmul.f32.gmra.mxu0 %v1005
      %v1129 = vpop.f32.mrf.mxu0
      %v1130 = vadd.f32 0.0, %v1129
      %1131 = vmatmul.f32.gmra.mxu0 %v1006
      %v1132 = vpop.f32.mrf.mxu0
      %v1133 = vadd.f32 0.0, %v1132
      %1134 = vmatmul.f32.gmra.mxu0 %v1007
      %v1135 = vpop.f32.mrf.mxu0
      %v1136 = vadd.f32 0.0, %v1135
      %1137 = vdwg.mxu0
      %v1138 = vadd.f32 %v944, %v1043
      %v1139 = vadd.f32 %v945, %v1046
      %v1140 = vadd.f32 %v946, %v1049
      %v1141 = vadd.f32 %v947, %v1052
      %v1142 = vadd.f32 %v948, %v1055
      %v1143 = vadd.f32 %v949, %v1058
      %v1144 = vadd.f32 %v950, %v1061
      %v1145 = vadd.f32 %v951, %v1064
      %v1146 = vadd.f32 %v952, %v1067
      %v1147 = vadd.f32 %v953, %v1070
      %v1148 = vadd.f32 %v954, %v1073
      %v1149 = vadd.f32 %v955, %v1076
      %v1150 = vadd.f32 %v956, %v1079
      %v1151 = vadd.f32 %v957, %v1082
      %v1152 = vadd.f32 %v958, %v1085
      %v1153 = vadd.f32 %v959, %v1088
      %v1154 = vadd.f32 %v960, %v1091
      %v1155 = vadd.f32 %v961, %v1094
      %v1156 = vadd.f32 %v962, %v1097
      %v1157 = vadd.f32 %v963, %v1100
      %v1158 = vadd.f32 %v964, %v1103
      %v1159 = vadd.f32 %v965, %v1106
      %v1160 = vadd.f32 %v966, %v1109
      %v1161 = vadd.f32 %v967, %v1112
      %v1162 = vadd.f32 %v968, %v1115
      %v1163 = vadd.f32 %v969, %v1118
      %v1164 = vadd.f32 %v970, %v1121
      %v1165 = vadd.f32 %v971, %v1124
      %v1166 = vadd.f32 %v972, %v1127
      %v1167 = vadd.f32 %v973, %v1130
      %v1168 = vadd.f32 %v974, %v1133
      %v1169 = vadd.f32 %v975, %v1136
      %v1170 = vld [vmem:[%s426 + $0x1] sm:$0xff]
      %v1171 = vld [vmem:[%s426 + $0x9] sm:$0xff]
      %v1172 = vld [vmem:[%s426 + $0x19] sm:$0xff]
      %v1173 = vld [vmem:[%s426 + $0x21] sm:$0xff]
      %v1174 = vld [vmem:[%s426 + $0x31] sm:$0xff]
      %v1175 = vld [vmem:[%s426 + $0x39] sm:$0xff]
      %v1176 = vld [vmem:[%s426 + $0x49] sm:$0xff]
      %v1177 = vld [vmem:[%s426 + $0x51] sm:$0xff]
      %v1178 = vld [vmem:[%s426 + $0x61] sm:$0xff]
      %v1179 = vld [vmem:[%s426 + $0x69] sm:$0xff]
      %v1180 = vld [vmem:[%s426 + $0x79] sm:$0xff]
      %v1181 = vld [vmem:[%s426 + $0x81] sm:$0xff]
      %v1182 = vld [vmem:[%s426 + $0x91] sm:$0xff]
      %v1183 = vld [vmem:[%s426 + $0x99] sm:$0xff]
      %v1184 = vld [vmem:[%s426 + $0xa9] sm:$0xff]
      %v1185 = vld [vmem:[%s426 + $0xb1] sm:$0xff]
      %v1186 = vld [vmem:[%s426 + $0xc1] sm:$0xff]
      %v1187 = vld [vmem:[%s426 + $0xc9] sm:$0xff]
      %v1188 = vld [vmem:[%s426 + $0xd9] sm:$0xff]
      %v1189 = vld [vmem:[%s426 + $0xe1] sm:$0xff]
      %v1190 = vld [vmem:[%s426 + $0xf1] sm:$0xff]
      %v1191 = vld [vmem:[%s426 + $0xf9] sm:$0xff]
      %v1192 = vld [vmem:[%s426 + $0x109] sm:$0xff]
      %v1193 = vld [vmem:[%s426 + $0x111] sm:$0xff]
      %v1194 = vld [vmem:[%s426 + $0x121] sm:$0xff]
      %v1195 = vld [vmem:[%s426 + $0x129] sm:$0xff]
      %v1196 = vld [vmem:[%s426 + $0x139] sm:$0xff]
      %v1197 = vld [vmem:[%s426 + $0x141] sm:$0xff]
      %v1198 = vld [vmem:[%s426 + $0x151] sm:$0xff]
      %v1199 = vld [vmem:[%s426 + $0x159] sm:$0xff]
      %v1200 = vld [vmem:[%s426 + $0x169] sm:$0xff]
      %v1201 = vld [vmem:[%s426 + $0x171] sm:$0xff]
      %s1202 = scalar_lea.vmem %s3, 512
      %v1203 = vld [vmem:[%s1202] sm:$0xff]
      %v1204 = vld [vmem:[%s1202 + $0x8] sm:$0xff]
      %v1205 = vld [vmem:[%s1202 + $0x10] sm:$0xff]
      %v1206 = vld [vmem:[%s1202 + $0x18] sm:$0xff]
      %v1207 = vld [vmem:[%s1202 + $0x20] sm:$0xff]
      %v1208 = vld [vmem:[%s1202 + $0x28] sm:$0xff]
      %v1209 = vld [vmem:[%s1202 + $0x30] sm:$0xff]
      %v1210 = vld [vmem:[%s1202 + $0x38] sm:$0xff]
      %v1211 = vld [vmem:[%s1202 + $0x40] sm:$0xff]
      %v1212 = vld [vmem:[%s1202 + $0x48] sm:$0xff]
      %v1213 = vld [vmem:[%s1202 + $0x50] sm:$0xff]
      %v1214 = vld [vmem:[%s1202 + $0x58] sm:$0xff]
      %v1215 = vld [vmem:[%s1202 + $0x60] sm:$0xff]
      %v1216 = vld [vmem:[%s1202 + $0x68] sm:$0xff]
      %v1217 = vld [vmem:[%s1202 + $0x70] sm:$0xff]
      %v1218 = vld [vmem:[%s1202 + $0x78] sm:$0xff]
      %1219 = vmatpush.msra.mxu0 %v1218
      %1220 = vmatpush.msra.mxu0 %v1217
      %1221 = vmatpush.msra.mxu0 %v1216
      %1222 = vmatpush.msra.mxu0 %v1215
      %1223 = vmatpush.msra.mxu0 %v1214
      %1224 = vmatpush.msra.mxu0 %v1213
      %1225 = vmatpush.msra.mxu0 %v1212
      %1226 = vmatpush.msra.mxu0 %v1211
      %1227 = vmatpush.msra.mxu0 %v1210
      %1228 = vmatpush.msra.mxu0 %v1209
      %1229 = vmatpush.msra.mxu0 %v1208
      %1230 = vmatpush.msra.mxu0 %v1207
      %1231 = vmatpush.msra.mxu0 %v1206
      %1232 = vmatpush.msra.mxu0 %v1205
      %1233 = vmatpush.msra.mxu0 %v1204
      %1234 = vmatpush.msra.mxu0 %v1203
      %1235 = vmatmul.f32.gmra.mxu0 %v1170
      %v1236 = vpop.f32.mrf.mxu0
      %v1237 = vadd.f32 0.0, %v1236
      %1238 = vmatmul.f32.gmra.mxu0 %v1171
      %v1239 = vpop.f32.mrf.mxu0
      %v1240 = vadd.f32 0.0, %v1239
      %1241 = vmatmul.f32.gmra.mxu0 %v1172
      %v1242 = vpop.f32.mrf.mxu0
      %v1243 = vadd.f32 0.0, %v1242
      %1244 = vmatmul.f32.gmra.mxu0 %v1173
      %v1245 = vpop.f32.mrf.mxu0
      %v1246 = vadd.f32 0.0, %v1245
      %1247 = vmatmul.f32.gmra.mxu0 %v1174
      %v1248 = vpop.f32.mrf.mxu0
      %v1249 = vadd.f32 0.0, %v1248
      %1250 = vmatmul.f32.gmra.mxu0 %v1175
      %v1251 = vpop.f32.mrf.mxu0
      %v1252 = vadd.f32 0.0, %v1251
      %1253 = vmatmul.f32.gmra.mxu0 %v1176
      %v1254 = vpop.f32.mrf.mxu0
      %v1255 = vadd.f32 0.0, %v1254
      %1256 = vmatmul.f32.gmra.mxu0 %v1177
      %v1257 = vpop.f32.mrf.mxu0
      %v1258 = vadd.f32 0.0, %v1257
      %1259 = vmatmul.f32.gmra.mxu0 %v1178
      %v1260 = vpop.f32.mrf.mxu0
      %v1261 = vadd.f32 0.0, %v1260
      %1262 = vmatmul.f32.gmra.mxu0 %v1179
      %v1263 = vpop.f32.mrf.mxu0
      %v1264 = vadd.f32 0.0, %v1263
      %1265 = vmatmul.f32.gmra.mxu0 %v1180
      %v1266 = vpop.f32.mrf.mxu0
      %v1267 = vadd.f32 0.0, %v1266
      %1268 = vmatmul.f32.gmra.mxu0 %v1181
      %v1269 = vpop.f32.mrf.mxu0
      %v1270 = vadd.f32 0.0, %v1269
      %1271 = vmatmul.f32.gmra.mxu0 %v1182
      %v1272 = vpop.f32.mrf.mxu0
      %v1273 = vadd.f32 0.0, %v1272
      %1274 = vmatmul.f32.gmra.mxu0 %v1183
      %v1275 = vpop.f32.mrf.mxu0
      %v1276 = vadd.f32 0.0, %v1275
      %1277 = vmatmul.f32.gmra.mxu0 %v1184
      %v1278 = vpop.f32.mrf.mxu0
      %v1279 = vadd.f32 0.0, %v1278
      %1280 = vmatmul.f32.gmra.mxu0 %v1185
      %v1281 = vpop.f32.mrf.mxu0
      %v1282 = vadd.f32 0.0, %v1281
      %1283 = vmatmul.f32.gmra.mxu0 %v1186
      %v1284 = vpop.f32.mrf.mxu0
      %v1285 = vadd.f32 0.0, %v1284
      %1286 = vmatmul.f32.gmra.mxu0 %v1187
      %v1287 = vpop.f32.mrf.mxu0
      %v1288 = vadd.f32 0.0, %v1287
      %1289 = vmatmul.f32.gmra.mxu0 %v1188
      %v1290 = vpop.f32.mrf.mxu0
      %v1291 = vadd.f32 0.0, %v1290
      %1292 = vmatmul.f32.gmra.mxu0 %v1189
      %v1293 = vpop.f32.mrf.mxu0
      %v1294 = vadd.f32 0.0, %v1293
      %1295 = vmatmul.f32.gmra.mxu0 %v1190
      %v1296 = vpop.f32.mrf.mxu0
      %v1297 = vadd.f32 0.0, %v1296
      %1298 = vmatmul.f32.gmra.mxu0 %v1191
      %v1299 = vpop.f32.mrf.mxu0
      %v1300 = vadd.f32 0.0, %v1299
      %1301 = vmatmul.f32.gmra.mxu0 %v1192
      %v1302 = vpop.f32.mrf.mxu0
      %v1303 = vadd.f32 0.0, %v1302
      %1304 = vmatmul.f32.gmra.mxu0 %v1193
      %v1305 = vpop.f32.mrf.mxu0
      %v1306 = vadd.f32 0.0, %v1305
      %1307 = vmatmul.f32.gmra.mxu0 %v1194
      %v1308 = vpop.f32.mrf.mxu0
      %v1309 = vadd.f32 0.0, %v1308
      %1310 = vmatmul.f32.gmra.mxu0 %v1195
      %v1311 = vpop.f32.mrf.mxu0
      %v1312 = vadd.f32 0.0, %v1311
      %1313 = vmatmul.f32.gmra.mxu0 %v1196
      %v1314 = vpop.f32.mrf.mxu0
      %v1315 = vadd.f32 0.0, %v1314
      %1316 = vmatmul.f32.gmra.mxu0 %v1197
      %v1317 = vpop.f32.mrf.mxu0
      %v1318 = vadd.f32 0.0, %v1317
      %1319 = vmatmul.f32.gmra.mxu0 %v1198
      %v1320 = vpop.f32.mrf.mxu0
      %v1321 = vadd.f32 0.0, %v1320
      %1322 = vmatmul.f32.gmra.mxu0 %v1199
      %v1323 = vpop.f32.mrf.mxu0
      %v1324 = vadd.f32 0.0, %v1323
      %1325 = vmatmul.f32.gmra.mxu0 %v1200
      %v1326 = vpop.f32.mrf.mxu0
      %v1327 = vadd.f32 0.0, %v1326
      %1328 = vmatmul.f32.gmra.mxu0 %v1201
      %v1329 = vpop.f32.mrf.mxu0
      %v1330 = vadd.f32 0.0, %v1329
      %1331 = vdwg.mxu0
      %v1332 = vadd.f32 %v1138, %v1237
      %v1333 = vadd.f32 %v1139, %v1240
      %v1334 = vadd.f32 %v1140, %v1243
      %v1335 = vadd.f32 %v1141, %v1246
      %v1336 = vadd.f32 %v1142, %v1249
      %v1337 = vadd.f32 %v1143, %v1252
      %v1338 = vadd.f32 %v1144, %v1255
      %v1339 = vadd.f32 %v1145, %v1258
      %v1340 = vadd.f32 %v1146, %v1261
      %v1341 = vadd.f32 %v1147, %v1264
      %v1342 = vadd.f32 %v1148, %v1267
      %v1343 = vadd.f32 %v1149, %v1270
      %v1344 = vadd.f32 %v1150, %v1273
      %v1345 = vadd.f32 %v1151, %v1276
      %v1346 = vadd.f32 %v1152, %v1279
      %v1347 = vadd.f32 %v1153, %v1282
      %v1348 = vadd.f32 %v1154, %v1285
      %v1349 = vadd.f32 %v1155, %v1288
      %v1350 = vadd.f32 %v1156, %v1291
      %v1351 = vadd.f32 %v1157, %v1294
      %v1352 = vadd.f32 %v1158, %v1297
      %v1353 = vadd.f32 %v1159, %v1300
      %v1354 = vadd.f32 %v1160, %v1303
      %v1355 = vadd.f32 %v1161, %v1306
      %v1356 = vadd.f32 %v1162, %v1309
      %v1357 = vadd.f32 %v1163, %v1312
      %v1358 = vadd.f32 %v1164, %v1315
      %v1359 = vadd.f32 %v1165, %v1318
      %v1360 = vadd.f32 %v1166, %v1321
      %v1361 = vadd.f32 %v1167, %v1324
      %v1362 = vadd.f32 %v1168, %v1327
      %v1363 = vadd.f32 %v1169, %v1330
      %v1364 = vld [vmem:[%s426 + $0x2] sm:$0xff]
      %v1365 = vld [vmem:[%s426 + $0xa] sm:$0xff]
      %v1366 = vld [vmem:[%s426 + $0x1a] sm:$0xff]
      %v1367 = vld [vmem:[%s426 + $0x22] sm:$0xff]
      %v1368 = vld [vmem:[%s426 + $0x32] sm:$0xff]
      %v1369 = vld [vmem:[%s426 + $0x3a] sm:$0xff]
      %v1370 = vld [vmem:[%s426 + $0x4a] sm:$0xff]
      %v1371 = vld [vmem:[%s426 + $0x52] sm:$0xff]
      %v1372 = vld [vmem:[%s426 + $0x62] sm:$0xff]
      %v1373 = vld [vmem:[%s426 + $0x6a] sm:$0xff]
      %v1374 = vld [vmem:[%s426 + $0x7a] sm:$0xff]
      %v1375 = vld [vmem:[%s426 + $0x82] sm:$0xff]
      %v1376 = vld [vmem:[%s426 + $0x92] sm:$0xff]
      %v1377 = vld [vmem:[%s426 + $0x9a] sm:$0xff]
      %v1378 = vld [vmem:[%s426 + $0xaa] sm:$0xff]
      %v1379 = vld [vmem:[%s426 + $0xb2] sm:$0xff]
      %v1380 = vld [vmem:[%s426 + $0xc2] sm:$0xff]
      %v1381 = vld [vmem:[%s426 + $0xca] sm:$0xff]
      %v1382 = vld [vmem:[%s426 + $0xda] sm:$0xff]
      %v1383 = vld [vmem:[%s426 + $0xe2] sm:$0xff]
      %v1384 = vld [vmem:[%s426 + $0xf2] sm:$0xff]
      %v1385 = vld [vmem:[%s426 + $0xfa] sm:$0xff]
      %v1386 = vld [vmem:[%s426 + $0x10a] sm:$0xff]
      %v1387 = vld [vmem:[%s426 + $0x112] sm:$0xff]
      %v1388 = vld [vmem:[%s426 + $0x122] sm:$0xff]
      %v1389 = vld [vmem:[%s426 + $0x12a] sm:$0xff]
      %v1390 = vld [vmem:[%s426 + $0x13a] sm:$0xff]
      %v1391 = vld [vmem:[%s426 + $0x142] sm:$0xff]
      %v1392 = vld [vmem:[%s426 + $0x152] sm:$0xff]
      %v1393 = vld [vmem:[%s426 + $0x15a] sm:$0xff]
      %v1394 = vld [vmem:[%s426 + $0x16a] sm:$0xff]
      %v1395 = vld [vmem:[%s426 + $0x172] sm:$0xff]
      %s1396 = scalar_lea.vmem %s3, 640
      %v1397 = vld [vmem:[%s1396] sm:$0xff]
      %v1398 = vld [vmem:[%s1396 + $0x8] sm:$0xff]
      %v1399 = vld [vmem:[%s1396 + $0x10] sm:$0xff]
      %v1400 = vld [vmem:[%s1396 + $0x18] sm:$0xff]
      %v1401 = vld [vmem:[%s1396 + $0x20] sm:$0xff]
      %v1402 = vld [vmem:[%s1396 + $0x28] sm:$0xff]
      %v1403 = vld [vmem:[%s1396 + $0x30] sm:$0xff]
      %v1404 = vld [vmem:[%s1396 + $0x38] sm:$0xff]
      %v1405 = vld [vmem:[%s1396 + $0x40] sm:$0xff]
      %v1406 = vld [vmem:[%s1396 + $0x48] sm:$0xff]
      %v1407 = vld [vmem:[%s1396 + $0x50] sm:$0xff]
      %v1408 = vld [vmem:[%s1396 + $0x58] sm:$0xff]
      %v1409 = vld [vmem:[%s1396 + $0x60] sm:$0xff]
      %v1410 = vld [vmem:[%s1396 + $0x68] sm:$0xff]
      %v1411 = vld [vmem:[%s1396 + $0x70] sm:$0xff]
      %v1412 = vld [vmem:[%s1396 + $0x78] sm:$0xff]
      %1413 = vmatpush.msra.mxu0 %v1412
      %1414 = vmatpush.msra.mxu0 %v1411
      %1415 = vmatpush.msra.mxu0 %v1410
      %1416 = vmatpush.msra.mxu0 %v1409
      %1417 = vmatpush.msra.mxu0 %v1408
      %1418 = vmatpush.msra.mxu0 %v1407
      %1419 = vmatpush.msra.mxu0 %v1406
      %1420 = vmatpush.msra.mxu0 %v1405
      %1421 = vmatpush.msra.mxu0 %v1404
      %1422 = vmatpush.msra.mxu0 %v1403
      %1423 = vmatpush.msra.mxu0 %v1402
      %1424 = vmatpush.msra.mxu0 %v1401
      %1425 = vmatpush.msra.mxu0 %v1400
      %1426 = vmatpush.msra.mxu0 %v1399
      %1427 = vmatpush.msra.mxu0 %v1398
      %1428 = vmatpush.msra.mxu0 %v1397
      %1429 = vmatmul.f32.gmra.mxu0 %v1364
      %v1430 = vpop.f32.mrf.mxu0
      %v1431 = vadd.f32 0.0, %v1430
      %1432 = vmatmul.f32.gmra.mxu0 %v1365
      %v1433 = vpop.f32.mrf.mxu0
      %v1434 = vadd.f32 0.0, %v1433
      %1435 = vmatmul.f32.gmra.mxu0 %v1366
      %v1436 = vpop.f32.mrf.mxu0
      %v1437 = vadd.f32 0.0, %v1436
      %1438 = vmatmul.f32.gmra.mxu0 %v1367
      %v1439 = vpop.f32.mrf.mxu0
      %v1440 = vadd.f32 0.0, %v1439
      %1441 = vmatmul.f32.gmra.mxu0 %v1368
      %v1442 = vpop.f32.mrf.mxu0
      %v1443 = vadd.f32 0.0, %v1442
      %1444 = vmatmul.f32.gmra.mxu0 %v1369
      %v1445 = vpop.f32.mrf.mxu0
      %v1446 = vadd.f32 0.0, %v1445
      %1447 = vmatmul.f32.gmra.mxu0 %v1370
      %v1448 = vpop.f32.mrf.mxu0
      %v1449 = vadd.f32 0.0, %v1448
      %1450 = vmatmul.f32.gmra.mxu0 %v1371
      %v1451 = vpop.f32.mrf.mxu0
      %v1452 = vadd.f32 0.0, %v1451
      %1453 = vmatmul.f32.gmra.mxu0 %v1372
      %v1454 = vpop.f32.mrf.mxu0
      %v1455 = vadd.f32 0.0, %v1454
      %1456 = vmatmul.f32.gmra.mxu0 %v1373
      %v1457 = vpop.f32.mrf.mxu0
      %v1458 = vadd.f32 0.0, %v1457
      %1459 = vmatmul.f32.gmra.mxu0 %v1374
      %v1460 = vpop.f32.mrf.mxu0
      %v1461 = vadd.f32 0.0, %v1460
      %1462 = vmatmul.f32.gmra.mxu0 %v1375
      %v1463 = vpop.f32.mrf.mxu0
      %v1464 = vadd.f32 0.0, %v1463
      %1465 = vmatmul.f32.gmra.mxu0 %v1376
      %v1466 = vpop.f32.mrf.mxu0
      %v1467 = vadd.f32 0.0, %v1466
      %1468 = vmatmul.f32.gmra.mxu0 %v1377
      %v1469 = vpop.f32.mrf.mxu0
      %v1470 = vadd.f32 0.0, %v1469
      %1471 = vmatmul.f32.gmra.mxu0 %v1378
      %v1472 = vpop.f32.mrf.mxu0
      %v1473 = vadd.f32 0.0, %v1472
      %1474 = vmatmul.f32.gmra.mxu0 %v1379
      %v1475 = vpop.f32.mrf.mxu0
      %v1476 = vadd.f32 0.0, %v1475
      %1477 = vmatmul.f32.gmra.mxu0 %v1380
      %v1478 = vpop.f32.mrf.mxu0
      %v1479 = vadd.f32 0.0, %v1478
      %1480 = vmatmul.f32.gmra.mxu0 %v1381
      %v1481 = vpop.f32.mrf.mxu0
      %v1482 = vadd.f32 0.0, %v1481
      %1483 = vmatmul.f32.gmra.mxu0 %v1382
      %v1484 = vpop.f32.mrf.mxu0
      %v1485 = vadd.f32 0.0, %v1484
      %1486 = vmatmul.f32.gmra.mxu0 %v1383
      %v1487 = vpop.f32.mrf.mxu0
      %v1488 = vadd.f32 0.0, %v1487
      %1489 = vmatmul.f32.gmra.mxu0 %v1384
      %v1490 = vpop.f32.mrf.mxu0
      %v1491 = vadd.f32 0.0, %v1490
      %1492 = vmatmul.f32.gmra.mxu0 %v1385
      %v1493 = vpop.f32.mrf.mxu0
      %v1494 = vadd.f32 0.0, %v1493
      %1495 = vmatmul.f32.gmra.mxu0 %v1386
      %v1496 = vpop.f32.mrf.mxu0
      %v1497 = vadd.f32 0.0, %v1496
      %1498 = vmatmul.f32.gmra.mxu0 %v1387
      %v1499 = vpop.f32.mrf.mxu0
      %v1500 = vadd.f32 0.0, %v1499
      %1501 = vmatmul.f32.gmra.mxu0 %v1388
      %v1502 = vpop.f32.mrf.mxu0
      %v1503 = vadd.f32 0.0, %v1502
      %1504 = vmatmul.f32.gmra.mxu0 %v1389
      %v1505 = vpop.f32.mrf.mxu0
      %v1506 = vadd.f32 0.0, %v1505
      %1507 = vmatmul.f32.gmra.mxu0 %v1390
      %v1508 = vpop.f32.mrf.mxu0
      %v1509 = vadd.f32 0.0, %v1508
      %1510 = vmatmul.f32.gmra.mxu0 %v1391
      %v1511 = vpop.f32.mrf.mxu0
      %v1512 = vadd.f32 0.0, %v1511
      %1513 = vmatmul.f32.gmra.mxu0 %v1392
      %v1514 = vpop.f32.mrf.mxu0
      %v1515 = vadd.f32 0.0, %v1514
      %1516 = vmatmul.f32.gmra.mxu0 %v1393
      %v1517 = vpop.f32.mrf.mxu0
      %v1518 = vadd.f32 0.0, %v1517
      %1519 = vmatmul.f32.gmra.mxu0 %v1394
      %v1520 = vpop.f32.mrf.mxu0
      %v1521 = vadd.f32 0.0, %v1520
      %1522 = vmatmul.f32.gmra.mxu0 %v1395
      %v1523 = vpop.f32.mrf.mxu0
      %v1524 = vadd.f32 0.0, %v1523
      %1525 = vdwg.mxu0
      %v1526 = vadd.f32 %v1332, %v1431
      %v1527 = vadd.f32 %v1333, %v1434
      %v1528 = vadd.f32 %v1334, %v1437
      %v1529 = vadd.f32 %v1335, %v1440
      %v1530 = vadd.f32 %v1336, %v1443
      %v1531 = vadd.f32 %v1337, %v1446
      %v1532 = vadd.f32 %v1338, %v1449
      %v1533 = vadd.f32 %v1339, %v1452
      %v1534 = vadd.f32 %v1340, %v1455
      %v1535 = vadd.f32 %v1341, %v1458
      %v1536 = vadd.f32 %v1342, %v1461
      %v1537 = vadd.f32 %v1343, %v1464
      %v1538 = vadd.f32 %v1344, %v1467
      %v1539 = vadd.f32 %v1345, %v1470
      %v1540 = vadd.f32 %v1346, %v1473
      %v1541 = vadd.f32 %v1347, %v1476
      %v1542 = vadd.f32 %v1348, %v1479
      %v1543 = vadd.f32 %v1349, %v1482
      %v1544 = vadd.f32 %v1350, %v1485
      %v1545 = vadd.f32 %v1351, %v1488
      %v1546 = vadd.f32 %v1352, %v1491
      %v1547 = vadd.f32 %v1353, %v1494
      %v1548 = vadd.f32 %v1354, %v1497
      %v1549 = vadd.f32 %v1355, %v1500
      %v1550 = vadd.f32 %v1356, %v1503
      %v1551 = vadd.f32 %v1357, %v1506
      %v1552 = vadd.f32 %v1358, %v1509
      %v1553 = vadd.f32 %v1359, %v1512
      %v1554 = vadd.f32 %v1360, %v1515
      %v1555 = vadd.f32 %v1361, %v1518
      %v1556 = vadd.f32 %v1362, %v1521
      %v1557 = vadd.f32 %v1363, %v1524
      %s1558 = scalar_lea.vmem [#allocation2], 48
      %v1559 = vld [vmem:[%s1558] sm:$0xff]
      %v1560 = vld [vmem:[%s1558 + $0x8] sm:$0xff]
      %v1561 = vld [vmem:[%s1558 + $0x18] sm:$0xff]
      %v1562 = vld [vmem:[%s1558 + $0x20] sm:$0xff]
      %v1563 = vld [vmem:[%s1558 + $0x30] sm:$0xff]
      %v1564 = vld [vmem:[%s1558 + $0x38] sm:$0xff]
      %v1565 = vld [vmem:[%s1558 + $0x48] sm:$0xff]
      %v1566 = vld [vmem:[%s1558 + $0x50] sm:$0xff]
      %v1567 = vld [vmem:[%s1558 + $0x60] sm:$0xff]
      %v1568 = vld [vmem:[%s1558 + $0x68] sm:$0xff]
      %v1569 = vld [vmem:[%s1558 + $0x78] sm:$0xff]
      %v1570 = vld [vmem:[%s1558 + $0x80] sm:$0xff]
      %v1571 = vld [vmem:[%s1558 + $0x90] sm:$0xff]
      %v1572 = vld [vmem:[%s1558 + $0x98] sm:$0xff]
      %v1573 = vld [vmem:[%s1558 + $0xa8] sm:$0xff]
      %v1574 = vld [vmem:[%s1558 + $0xb0] sm:$0xff]
      %v1575 = vld [vmem:[%s1558 + $0xc0] sm:$0xff]
      %v1576 = vld [vmem:[%s1558 + $0xc8] sm:$0xff]
      %v1577 = vld [vmem:[%s1558 + $0xd8] sm:$0xff]
      %v1578 = vld [vmem:[%s1558 + $0xe0] sm:$0xff]
      %v1579 = vld [vmem:[%s1558 + $0xf0] sm:$0xff]
      %v1580 = vld [vmem:[%s1558 + $0xf8] sm:$0xff]
      %v1581 = vld [vmem:[%s1558 + $0x108] sm:$0xff]
      %v1582 = vld [vmem:[%s1558 + $0x110] sm:$0xff]
      %v1583 = vld [vmem:[%s1558 + $0x120] sm:$0xff]
      %v1584 = vld [vmem:[%s1558 + $0x128] sm:$0xff]
      %v1585 = vld [vmem:[%s1558 + $0x138] sm:$0xff]
      %v1586 = vld [vmem:[%s1558 + $0x140] sm:$0xff]
      %v1587 = vld [vmem:[%s1558 + $0x150] sm:$0xff]
      %v1588 = vld [vmem:[%s1558 + $0x158] sm:$0xff]
      %v1589 = vld [vmem:[%s1558 + $0x168] sm:$0xff]
      %v1590 = vld [vmem:[%s1558 + $0x170] sm:$0xff]
      %s1591 = scalar_lea.vmem %s3, 768
      %v1592 = vld [vmem:[%s1591] sm:$0xff]
      %v1593 = vld [vmem:[%s1591 + $0x8] sm:$0xff]
      %v1594 = vld [vmem:[%s1591 + $0x10] sm:$0xff]
      %v1595 = vld [vmem:[%s1591 + $0x18] sm:$0xff]
      %v1596 = vld [vmem:[%s1591 + $0x20] sm:$0xff]
      %v1597 = vld [vmem:[%s1591 + $0x28] sm:$0xff]
      %v1598 = vld [vmem:[%s1591 + $0x30] sm:$0xff]
      %v1599 = vld [vmem:[%s1591 + $0x38] sm:$0xff]
      %v1600 = vld [vmem:[%s1591 + $0x40] sm:$0xff]
      %v1601 = vld [vmem:[%s1591 + $0x48] sm:$0xff]
      %v1602 = vld [vmem:[%s1591 + $0x50] sm:$0xff]
      %v1603 = vld [vmem:[%s1591 + $0x58] sm:$0xff]
      %v1604 = vld [vmem:[%s1591 + $0x60] sm:$0xff]
      %v1605 = vld [vmem:[%s1591 + $0x68] sm:$0xff]
      %v1606 = vld [vmem:[%s1591 + $0x70] sm:$0xff]
      %v1607 = vld [vmem:[%s1591 + $0x78] sm:$0xff]
      %1608 = vmatpush.msra.mxu0 %v1607
      %1609 = vmatpush.msra.mxu0 %v1606
      %1610 = vmatpush.msra.mxu0 %v1605
      %1611 = vmatpush.msra.mxu0 %v1604
      %1612 = vmatpush.msra.mxu0 %v1603
      %1613 = vmatpush.msra.mxu0 %v1602
      %1614 = vmatpush.msra.mxu0 %v1601
      %1615 = vmatpush.msra.mxu0 %v1600
      %1616 = vmatpush.msra.mxu0 %v1599
      %1617 = vmatpush.msra.mxu0 %v1598
      %1618 = vmatpush.msra.mxu0 %v1597
      %1619 = vmatpush.msra.mxu0 %v1596
      %1620 = vmatpush.msra.mxu0 %v1595
      %1621 = vmatpush.msra.mxu0 %v1594
      %1622 = vmatpush.msra.mxu0 %v1593
      %1623 = vmatpush.msra.mxu0 %v1592
      %1624 = vmatmul.f32.gmra.mxu0 %v1559
      %v1625 = vpop.f32.mrf.mxu0
      %v1626 = vadd.f32 0.0, %v1625
      %1627 = vmatmul.f32.gmra.mxu0 %v1560
      %v1628 = vpop.f32.mrf.mxu0
      %v1629 = vadd.f32 0.0, %v1628
      %1630 = vmatmul.f32.gmra.mxu0 %v1561
      %v1631 = vpop.f32.mrf.mxu0
      %v1632 = vadd.f32 0.0, %v1631
      %1633 = vmatmul.f32.gmra.mxu0 %v1562
      %v1634 = vpop.f32.mrf.mxu0
      %v1635 = vadd.f32 0.0, %v1634
      %1636 = vmatmul.f32.gmra.mxu0 %v1563
      %v1637 = vpop.f32.mrf.mxu0
      %v1638 = vadd.f32 0.0, %v1637
      %1639 = vmatmul.f32.gmra.mxu0 %v1564
      %v1640 = vpop.f32.mrf.mxu0
      %v1641 = vadd.f32 0.0, %v1640
      %1642 = vmatmul.f32.gmra.mxu0 %v1565
      %v1643 = vpop.f32.mrf.mxu0
      %v1644 = vadd.f32 0.0, %v1643
      %1645 = vmatmul.f32.gmra.mxu0 %v1566
      %v1646 = vpop.f32.mrf.mxu0
      %v1647 = vadd.f32 0.0, %v1646
      %1648 = vmatmul.f32.gmra.mxu0 %v1567
      %v1649 = vpop.f32.mrf.mxu0
      %v1650 = vadd.f32 0.0, %v1649
      %1651 = vmatmul.f32.gmra.mxu0 %v1568
      %v1652 = vpop.f32.mrf.mxu0
      %v1653 = vadd.f32 0.0, %v1652
      %1654 = vmatmul.f32.gmra.mxu0 %v1569
      %v1655 = vpop.f32.mrf.mxu0
      %v1656 = vadd.f32 0.0, %v1655
      %1657 = vmatmul.f32.gmra.mxu0 %v1570
      %v1658 = vpop.f32.mrf.mxu0
      %v1659 = vadd.f32 0.0, %v1658
      %1660 = vmatmul.f32.gmra.mxu0 %v1571
      %v1661 = vpop.f32.mrf.mxu0
      %v1662 = vadd.f32 0.0, %v1661
      %1663 = vmatmul.f32.gmra.mxu0 %v1572
      %v1664 = vpop.f32.mrf.mxu0
      %v1665 = vadd.f32 0.0, %v1664
      %1666 = vmatmul.f32.gmra.mxu0 %v1573
      %v1667 = vpop.f32.mrf.mxu0
      %v1668 = vadd.f32 0.0, %v1667
      %1669 = vmatmul.f32.gmra.mxu0 %v1574
      %v1670 = vpop.f32.mrf.mxu0
      %v1671 = vadd.f32 0.0, %v1670
      %1672 = vmatmul.f32.gmra.mxu0 %v1575
      %v1673 = vpop.f32.mrf.mxu0
      %v1674 = vadd.f32 0.0, %v1673
      %1675 = vmatmul.f32.gmra.mxu0 %v1576
      %v1676 = vpop.f32.mrf.mxu0
      %v1677 = vadd.f32 0.0, %v1676
      %1678 = vmatmul.f32.gmra.mxu0 %v1577
      %v1679 = vpop.f32.mrf.mxu0
      %v1680 = vadd.f32 0.0, %v1679
      %1681 = vmatmul.f32.gmra.mxu0 %v1578
      %v1682 = vpop.f32.mrf.mxu0
      %v1683 = vadd.f32 0.0, %v1682
      %1684 = vmatmul.f32.gmra.mxu0 %v1579
      %v1685 = vpop.f32.mrf.mxu0
      %v1686 = vadd.f32 0.0, %v1685
      %1687 = vmatmul.f32.gmra.mxu0 %v1580
      %v1688 = vpop.f32.mrf.mxu0
      %v1689 = vadd.f32 0.0, %v1688
      %1690 = vmatmul.f32.gmra.mxu0 %v1581
      %v1691 = vpop.f32.mrf.mxu0
      %v1692 = vadd.f32 0.0, %v1691
      %1693 = vmatmul.f32.gmra.mxu0 %v1582
      %v1694 = vpop.f32.mrf.mxu0
      %v1695 = vadd.f32 0.0, %v1694
      %1696 = vmatmul.f32.gmra.mxu0 %v1583
      %v1697 = vpop.f32.mrf.mxu0
      %v1698 = vadd.f32 0.0, %v1697
      %1699 = vmatmul.f32.gmra.mxu0 %v1584
      %v1700 = vpop.f32.mrf.mxu0
      %v1701 = vadd.f32 0.0, %v1700
      %1702 = vmatmul.f32.gmra.mxu0 %v1585
      %v1703 = vpop.f32.mrf.mxu0
      %v1704 = vadd.f32 0.0, %v1703
      %1705 = vmatmul.f32.gmra.mxu0 %v1586
      %v1706 = vpop.f32.mrf.mxu0
      %v1707 = vadd.f32 0.0, %v1706
      %1708 = vmatmul.f32.gmra.mxu0 %v1587
      %v1709 = vpop.f32.mrf.mxu0
      %v1710 = vadd.f32 0.0, %v1709
      %1711 = vmatmul.f32.gmra.mxu0 %v1588
      %v1712 = vpop.f32.mrf.mxu0
      %v1713 = vadd.f32 0.0, %v1712
      %1714 = vmatmul.f32.gmra.mxu0 %v1589
      %v1715 = vpop.f32.mrf.mxu0
      %v1716 = vadd.f32 0.0, %v1715
      %1717 = vmatmul.f32.gmra.mxu0 %v1590
      %v1718 = vpop.f32.mrf.mxu0
      %v1719 = vadd.f32 0.0, %v1718
      %1720 = vdwg.mxu0
      %v1721 = vadd.f32 %v1526, %v1626
      %v1722 = vadd.f32 %v1527, %v1629
      %v1723 = vadd.f32 %v1528, %v1632
      %v1724 = vadd.f32 %v1529, %v1635
      %v1725 = vadd.f32 %v1530, %v1638
      %v1726 = vadd.f32 %v1531, %v1641
      %v1727 = vadd.f32 %v1532, %v1644
      %v1728 = vadd.f32 %v1533, %v1647
      %v1729 = vadd.f32 %v1534, %v1650
      %v1730 = vadd.f32 %v1535, %v1653
      %v1731 = vadd.f32 %v1536, %v1656
      %v1732 = vadd.f32 %v1537, %v1659
      %v1733 = vadd.f32 %v1538, %v1662
      %v1734 = vadd.f32 %v1539, %v1665
      %v1735 = vadd.f32 %v1540, %v1668
      %v1736 = vadd.f32 %v1541, %v1671
      %v1737 = vadd.f32 %v1542, %v1674
      %v1738 = vadd.f32 %v1543, %v1677
      %v1739 = vadd.f32 %v1544, %v1680
      %v1740 = vadd.f32 %v1545, %v1683
      %v1741 = vadd.f32 %v1546, %v1686
      %v1742 = vadd.f32 %v1547, %v1689
      %v1743 = vadd.f32 %v1548, %v1692
      %v1744 = vadd.f32 %v1549, %v1695
      %v1745 = vadd.f32 %v1550, %v1698
      %v1746 = vadd.f32 %v1551, %v1701
      %v1747 = vadd.f32 %v1552, %v1704
      %v1748 = vadd.f32 %v1553, %v1707
      %v1749 = vadd.f32 %v1554, %v1710
      %v1750 = vadd.f32 %v1555, %v1713
      %v1751 = vadd.f32 %v1556, %v1716
      %v1752 = vadd.f32 %v1557, %v1719
      %v1753 = vld [vmem:[%s1558 + $0x1] sm:$0xff]
      %v1754 = vld [vmem:[%s1558 + $0x9] sm:$0xff]
      %v1755 = vld [vmem:[%s1558 + $0x19] sm:$0xff]
      %v1756 = vld [vmem:[%s1558 + $0x21] sm:$0xff]
      %v1757 = vld [vmem:[%s1558 + $0x31] sm:$0xff]
      %v1758 = vld [vmem:[%s1558 + $0x39] sm:$0xff]
      %v1759 = vld [vmem:[%s1558 + $0x49] sm:$0xff]
      %v1760 = vld [vmem:[%s1558 + $0x51] sm:$0xff]
      %v1761 = vld [vmem:[%s1558 + $0x61] sm:$0xff]
      %v1762 = vld [vmem:[%s1558 + $0x69] sm:$0xff]
      %v1763 = vld [vmem:[%s1558 + $0x79] sm:$0xff]
      %v1764 = vld [vmem:[%s1558 + $0x81] sm:$0xff]
      %v1765 = vld [vmem:[%s1558 + $0x91] sm:$0xff]
      %v1766 = vld [vmem:[%s1558 + $0x99] sm:$0xff]
      %v1767 = vld [vmem:[%s1558 + $0xa9] sm:$0xff]
      %v1768 = vld [vmem:[%s1558 + $0xb1] sm:$0xff]
      %v1769 = vld [vmem:[%s1558 + $0xc1] sm:$0xff]
      %v1770 = vld [vmem:[%s1558 + $0xc9] sm:$0xff]
      %v1771 = vld [vmem:[%s1558 + $0xd9] sm:$0xff]
      %v1772 = vld [vmem:[%s1558 + $0xe1] sm:$0xff]
      %v1773 = vld [vmem:[%s1558 + $0xf1] sm:$0xff]
      %v1774 = vld [vmem:[%s1558 + $0xf9] sm:$0xff]
      %v1775 = vld [vmem:[%s1558 + $0x109] sm:$0xff]
      %v1776 = vld [vmem:[%s1558 + $0x111] sm:$0xff]
      %v1777 = vld [vmem:[%s1558 + $0x121] sm:$0xff]
      %v1778 = vld [vmem:[%s1558 + $0x129] sm:$0xff]
      %v1779 = vld [vmem:[%s1558 + $0x139] sm:$0xff]
      %v1780 = vld [vmem:[%s1558 + $0x141] sm:$0xff]
      %v1781 = vld [vmem:[%s1558 + $0x151] sm:$0xff]
      %v1782 = vld [vmem:[%s1558 + $0x159] sm:$0xff]
      %v1783 = vld [vmem:[%s1558 + $0x169] sm:$0xff]
      %v1784 = vld [vmem:[%s1558 + $0x171] sm:$0xff]
      %s1785 = scalar_lea.vmem %s3, 896
      %v1786 = vld [vmem:[%s1785] sm:$0xff]
      %v1787 = vld [vmem:[%s1785 + $0x8] sm:$0xff]
      %v1788 = vld [vmem:[%s1785 + $0x10] sm:$0xff]
      %v1789 = vld [vmem:[%s1785 + $0x18] sm:$0xff]
      %v1790 = vld [vmem:[%s1785 + $0x20] sm:$0xff]
      %v1791 = vld [vmem:[%s1785 + $0x28] sm:$0xff]
      %v1792 = vld [vmem:[%s1785 + $0x30] sm:$0xff]
      %v1793 = vld [vmem:[%s1785 + $0x38] sm:$0xff]
      %v1794 = vld [vmem:[%s1785 + $0x40] sm:$0xff]
      %v1795 = vld [vmem:[%s1785 + $0x48] sm:$0xff]
      %v1796 = vld [vmem:[%s1785 + $0x50] sm:$0xff]
      %v1797 = vld [vmem:[%s1785 + $0x58] sm:$0xff]
      %v1798 = vld [vmem:[%s1785 + $0x60] sm:$0xff]
      %v1799 = vld [vmem:[%s1785 + $0x68] sm:$0xff]
      %v1800 = vld [vmem:[%s1785 + $0x70] sm:$0xff]
      %v1801 = vld [vmem:[%s1785 + $0x78] sm:$0xff]
      %1802 = vmatpush.msra.mxu0 %v1801
      %1803 = vmatpush.msra.mxu0 %v1800
      %1804 = vmatpush.msra.mxu0 %v1799
      %1805 = vmatpush.msra.mxu0 %v1798
      %1806 = vmatpush.msra.mxu0 %v1797
      %1807 = vmatpush.msra.mxu0 %v1796
      %1808 = vmatpush.msra.mxu0 %v1795
      %1809 = vmatpush.msra.mxu0 %v1794
      %1810 = vmatpush.msra.mxu0 %v1793
      %1811 = vmatpush.msra.mxu0 %v1792
      %1812 = vmatpush.msra.mxu0 %v1791
      %1813 = vmatpush.msra.mxu0 %v1790
      %1814 = vmatpush.msra.mxu0 %v1789
      %1815 = vmatpush.msra.mxu0 %v1788
      %1816 = vmatpush.msra.mxu0 %v1787
      %1817 = vmatpush.msra.mxu0 %v1786
      %1818 = vmatmul.f32.gmra.mxu0 %v1753
      %v1819 = vpop.f32.mrf.mxu0
      %v1820 = vadd.f32 0.0, %v1819
      %1821 = vmatmul.f32.gmra.mxu0 %v1754
      %v1822 = vpop.f32.mrf.mxu0
      %v1823 = vadd.f32 0.0, %v1822
      %1824 = vmatmul.f32.gmra.mxu0 %v1755
      %v1825 = vpop.f32.mrf.mxu0
      %v1826 = vadd.f32 0.0, %v1825
      %1827 = vmatmul.f32.gmra.mxu0 %v1756
      %v1828 = vpop.f32.mrf.mxu0
      %v1829 = vadd.f32 0.0, %v1828
      %1830 = vmatmul.f32.gmra.mxu0 %v1757
      %v1831 = vpop.f32.mrf.mxu0
      %v1832 = vadd.f32 0.0, %v1831
      %1833 = vmatmul.f32.gmra.mxu0 %v1758
      %v1834 = vpop.f32.mrf.mxu0
      %v1835 = vadd.f32 0.0, %v1834
      %1836 = vmatmul.f32.gmra.mxu0 %v1759
      %v1837 = vpop.f32.mrf.mxu0
      %v1838 = vadd.f32 0.0, %v1837
      %1839 = vmatmul.f32.gmra.mxu0 %v1760
      %v1840 = vpop.f32.mrf.mxu0
      %v1841 = vadd.f32 0.0, %v1840
      %1842 = vmatmul.f32.gmra.mxu0 %v1761
      %v1843 = vpop.f32.mrf.mxu0
      %v1844 = vadd.f32 0.0, %v1843
      %1845 = vmatmul.f32.gmra.mxu0 %v1762
      %v1846 = vpop.f32.mrf.mxu0
      %v1847 = vadd.f32 0.0, %v1846
      %1848 = vmatmul.f32.gmra.mxu0 %v1763
      %v1849 = vpop.f32.mrf.mxu0
      %v1850 = vadd.f32 0.0, %v1849
      %1851 = vmatmul.f32.gmra.mxu0 %v1764
      %v1852 = vpop.f32.mrf.mxu0
      %v1853 = vadd.f32 0.0, %v1852
      %1854 = vmatmul.f32.gmra.mxu0 %v1765
      %v1855 = vpop.f32.mrf.mxu0
      %v1856 = vadd.f32 0.0, %v1855
      %1857 = vmatmul.f32.gmra.mxu0 %v1766
      %v1858 = vpop.f32.mrf.mxu0
      %v1859 = vadd.f32 0.0, %v1858
      %1860 = vmatmul.f32.gmra.mxu0 %v1767
      %v1861 = vpop.f32.mrf.mxu0
      %v1862 = vadd.f32 0.0, %v1861
      %1863 = vmatmul.f32.gmra.mxu0 %v1768
      %v1864 = vpop.f32.mrf.mxu0
      %v1865 = vadd.f32 0.0, %v1864
      %1866 = vmatmul.f32.gmra.mxu0 %v1769
      %v1867 = vpop.f32.mrf.mxu0
      %v1868 = vadd.f32 0.0, %v1867
      %1869 = vmatmul.f32.gmra.mxu0 %v1770
      %v1870 = vpop.f32.mrf.mxu0
      %v1871 = vadd.f32 0.0, %v1870
      %1872 = vmatmul.f32.gmra.mxu0 %v1771
      %v1873 = vpop.f32.mrf.mxu0
      %v1874 = vadd.f32 0.0, %v1873
      %1875 = vmatmul.f32.gmra.mxu0 %v1772
      %v1876 = vpop.f32.mrf.mxu0
      %v1877 = vadd.f32 0.0, %v1876
      %1878 = vmatmul.f32.gmra.mxu0 %v1773
      %v1879 = vpop.f32.mrf.mxu0
      %v1880 = vadd.f32 0.0, %v1879
      %1881 = vmatmul.f32.gmra.mxu0 %v1774
      %v1882 = vpop.f32.mrf.mxu0
      %v1883 = vadd.f32 0.0, %v1882
      %1884 = vmatmul.f32.gmra.mxu0 %v1775
      %v1885 = vpop.f32.mrf.mxu0
      %v1886 = vadd.f32 0.0, %v1885
      %1887 = vmatmul.f32.gmra.mxu0 %v1776
      %v1888 = vpop.f32.mrf.mxu0
      %v1889 = vadd.f32 0.0, %v1888
      %1890 = vmatmul.f32.gmra.mxu0 %v1777
      %v1891 = vpop.f32.mrf.mxu0
      %v1892 = vadd.f32 0.0, %v1891
      %1893 = vmatmul.f32.gmra.mxu0 %v1778
      %v1894 = vpop.f32.mrf.mxu0
      %v1895 = vadd.f32 0.0, %v1894
      %1896 = vmatmul.f32.gmra.mxu0 %v1779
      %v1897 = vpop.f32.mrf.mxu0
      %v1898 = vadd.f32 0.0, %v1897
      %1899 = vmatmul.f32.gmra.mxu0 %v1780
      %v1900 = vpop.f32.mrf.mxu0
      %v1901 = vadd.f32 0.0, %v1900
      %1902 = vmatmul.f32.gmra.mxu0 %v1781
      %v1903 = vpop.f32.mrf.mxu0
      %v1904 = vadd.f32 0.0, %v1903
      %1905 = vmatmul.f32.gmra.mxu0 %v1782
      %v1906 = vpop.f32.mrf.mxu0
      %v1907 = vadd.f32 0.0, %v1906
      %1908 = vmatmul.f32.gmra.mxu0 %v1783
      %v1909 = vpop.f32.mrf.mxu0
      %v1910 = vadd.f32 0.0, %v1909
      %1911 = vmatmul.f32.gmra.mxu0 %v1784
      %v1912 = vpop.f32.mrf.mxu0
      %v1913 = vadd.f32 0.0, %v1912
      %1914 = vdwg.mxu0
      %v1915 = vadd.f32 %v1721, %v1820
      %v1916 = vadd.f32 %v1722, %v1823
      %v1917 = vadd.f32 %v1723, %v1826
      %v1918 = vadd.f32 %v1724, %v1829
      %v1919 = vadd.f32 %v1725, %v1832
      %v1920 = vadd.f32 %v1726, %v1835
      %v1921 = vadd.f32 %v1727, %v1838
      %v1922 = vadd.f32 %v1728, %v1841
      %v1923 = vadd.f32 %v1729, %v1844
      %v1924 = vadd.f32 %v1730, %v1847
      %v1925 = vadd.f32 %v1731, %v1850
      %v1926 = vadd.f32 %v1732, %v1853
      %v1927 = vadd.f32 %v1733, %v1856
      %v1928 = vadd.f32 %v1734, %v1859
      %v1929 = vadd.f32 %v1735, %v1862
      %v1930 = vadd.f32 %v1736, %v1865
      %v1931 = vadd.f32 %v1737, %v1868
      %v1932 = vadd.f32 %v1738, %v1871
      %v1933 = vadd.f32 %v1739, %v1874
      %v1934 = vadd.f32 %v1740, %v1877
      %v1935 = vadd.f32 %v1741, %v1880
      %v1936 = vadd.f32 %v1742, %v1883
      %v1937 = vadd.f32 %v1743, %v1886
      %v1938 = vadd.f32 %v1744, %v1889
      %v1939 = vadd.f32 %v1745, %v1892
      %v1940 = vadd.f32 %v1746, %v1895
      %v1941 = vadd.f32 %v1747, %v1898
      %v1942 = vadd.f32 %v1748, %v1901
      %v1943 = vadd.f32 %v1749, %v1904
      %v1944 = vadd.f32 %v1750, %v1907
      %v1945 = vadd.f32 %v1751, %v1910
      %v1946 = vadd.f32 %v1752, %v1913
      %v1947 = vld [vmem:[%s1558 + $0x2] sm:$0xff]
      %v1948 = vld [vmem:[%s1558 + $0xa] sm:$0xff]
      %v1949 = vld [vmem:[%s1558 + $0x1a] sm:$0xff]
      %v1950 = vld [vmem:[%s1558 + $0x22] sm:$0xff]
      %v1951 = vld [vmem:[%s1558 + $0x32] sm:$0xff]
      %v1952 = vld [vmem:[%s1558 + $0x3a] sm:$0xff]
      %v1953 = vld [vmem:[%s1558 + $0x4a] sm:$0xff]
      %v1954 = vld [vmem:[%s1558 + $0x52] sm:$0xff]
      %v1955 = vld [vmem:[%s1558 + $0x62] sm:$0xff]
      %v1956 = vld [vmem:[%s1558 + $0x6a] sm:$0xff]
      %v1957 = vld [vmem:[%s1558 + $0x7a] sm:$0xff]
      %v1958 = vld [vmem:[%s1558 + $0x82] sm:$0xff]
      %v1959 = vld [vmem:[%s1558 + $0x92] sm:$0xff]
      %v1960 = vld [vmem:[%s1558 + $0x9a] sm:$0xff]
      %v1961 = vld [vmem:[%s1558 + $0xaa] sm:$0xff]
      %v1962 = vld [vmem:[%s1558 + $0xb2] sm:$0xff]
      %v1963 = vld [vmem:[%s1558 + $0xc2] sm:$0xff]
      %v1964 = vld [vmem:[%s1558 + $0xca] sm:$0xff]
      %v1965 = vld [vmem:[%s1558 + $0xda] sm:$0xff]
      %v1966 = vld [vmem:[%s1558 + $0xe2] sm:$0xff]
      %v1967 = vld [vmem:[%s1558 + $0xf2] sm:$0xff]
      %v1968 = vld [vmem:[%s1558 + $0xfa] sm:$0xff]
      %v1969 = vld [vmem:[%s1558 + $0x10a] sm:$0xff]
      %v1970 = vld [vmem:[%s1558 + $0x112] sm:$0xff]
      %v1971 = vld [vmem:[%s1558 + $0x122] sm:$0xff]
      %v1972 = vld [vmem:[%s1558 + $0x12a] sm:$0xff]
      %v1973 = vld [vmem:[%s1558 + $0x13a] sm:$0xff]
      %v1974 = vld [vmem:[%s1558 + $0x142] sm:$0xff]
      %v1975 = vld [vmem:[%s1558 + $0x152] sm:$0xff]
      %v1976 = vld [vmem:[%s1558 + $0x15a] sm:$0xff]
      %v1977 = vld [vmem:[%s1558 + $0x16a] sm:$0xff]
      %v1978 = vld [vmem:[%s1558 + $0x172] sm:$0xff]
      %s1979 = scalar_lea.vmem %s3, 1024
      %v1980 = vld [vmem:[%s1979] sm:$0xff]
      %v1981 = vld [vmem:[%s1979 + $0x8] sm:$0xff]
      %v1982 = vld [vmem:[%s1979 + $0x10] sm:$0xff]
      %v1983 = vld [vmem:[%s1979 + $0x18] sm:$0xff]
      %v1984 = vld [vmem:[%s1979 + $0x20] sm:$0xff]
      %v1985 = vld [vmem:[%s1979 + $0x28] sm:$0xff]
      %v1986 = vld [vmem:[%s1979 + $0x30] sm:$0xff]
      %v1987 = vld [vmem:[%s1979 + $0x38] sm:$0xff]
      %v1988 = vld [vmem:[%s1979 + $0x40] sm:$0xff]
      %v1989 = vld [vmem:[%s1979 + $0x48] sm:$0xff]
      %v1990 = vld [vmem:[%s1979 + $0x50] sm:$0xff]
      %v1991 = vld [vmem:[%s1979 + $0x58] sm:$0xff]
      %v1992 = vld [vmem:[%s1979 + $0x60] sm:$0xff]
      %v1993 = vld [vmem:[%s1979 + $0x68] sm:$0xff]
      %v1994 = vld [vmem:[%s1979 + $0x70] sm:$0xff]
      %v1995 = vld [vmem:[%s1979 + $0x78] sm:$0xff]
      %1996 = vmatpush.msra.mxu0 %v1995
      %1997 = vmatpush.msra.mxu0 %v1994
      %1998 = vmatpush.msra.mxu0 %v1993
      %1999 = vmatpush.msra.mxu0 %v1992
      %2000 = vmatpush.msra.mxu0 %v1991
      %2001 = vmatpush.msra.mxu0 %v1990
      %2002 = vmatpush.msra.mxu0 %v1989
      %2003 = vmatpush.msra.mxu0 %v1988
      %2004 = vmatpush.msra.mxu0 %v1987
      %2005 = vmatpush.msra.mxu0 %v1986
      %2006 = vmatpush.msra.mxu0 %v1985
      %2007 = vmatpush.msra.mxu0 %v1984
      %2008 = vmatpush.msra.mxu0 %v1983
      %2009 = vmatpush.msra.mxu0 %v1982
      %2010 = vmatpush.msra.mxu0 %v1981
      %2011 = vmatpush.msra.mxu0 %v1980
      %2012 = vmatmul.f32.gmra.mxu0 %v1947
      %v2013 = vpop.f32.mrf.mxu0
      %v2014 = vadd.f32 0.0, %v2013
      %2015 = vmatmul.f32.gmra.mxu0 %v1948
      %v2016 = vpop.f32.mrf.mxu0
      %v2017 = vadd.f32 0.0, %v2016
      %2018 = vmatmul.f32.gmra.mxu0 %v1949
      %v2019 = vpop.f32.mrf.mxu0
      %v2020 = vadd.f32 0.0, %v2019
      %2021 = vmatmul.f32.gmra.mxu0 %v1950
      %v2022 = vpop.f32.mrf.mxu0
      %v2023 = vadd.f32 0.0, %v2022
      %2024 = vmatmul.f32.gmra.mxu0 %v1951
      %v2025 = vpop.f32.mrf.mxu0
      %v2026 = vadd.f32 0.0, %v2025
      %2027 = vmatmul.f32.gmra.mxu0 %v1952
      %v2028 = vpop.f32.mrf.mxu0
      %v2029 = vadd.f32 0.0, %v2028
      %2030 = vmatmul.f32.gmra.mxu0 %v1953
      %v2031 = vpop.f32.mrf.mxu0
      %v2032 = vadd.f32 0.0, %v2031
      %2033 = vmatmul.f32.gmra.mxu0 %v1954
      %v2034 = vpop.f32.mrf.mxu0
      %v2035 = vadd.f32 0.0, %v2034
      %2036 = vmatmul.f32.gmra.mxu0 %v1955
      %v2037 = vpop.f32.mrf.mxu0
      %v2038 = vadd.f32 0.0, %v2037
      %2039 = vmatmul.f32.gmra.mxu0 %v1956
      %v2040 = vpop.f32.mrf.mxu0
      %v2041 = vadd.f32 0.0, %v2040
      %2042 = vmatmul.f32.gmra.mxu0 %v1957
      %v2043 = vpop.f32.mrf.mxu0
      %v2044 = vadd.f32 0.0, %v2043
      %2045 = vmatmul.f32.gmra.mxu0 %v1958
      %v2046 = vpop.f32.mrf.mxu0
      %v2047 = vadd.f32 0.0, %v2046
      %2048 = vmatmul.f32.gmra.mxu0 %v1959
      %v2049 = vpop.f32.mrf.mxu0
      %v2050 = vadd.f32 0.0, %v2049
      %2051 = vmatmul.f32.gmra.mxu0 %v1960
      %v2052 = vpop.f32.mrf.mxu0
      %v2053 = vadd.f32 0.0, %v2052
      %2054 = vmatmul.f32.gmra.mxu0 %v1961
      %v2055 = vpop.f32.mrf.mxu0
      %v2056 = vadd.f32 0.0, %v2055
      %2057 = vmatmul.f32.gmra.mxu0 %v1962
      %v2058 = vpop.f32.mrf.mxu0
      %v2059 = vadd.f32 0.0, %v2058
      %2060 = vmatmul.f32.gmra.mxu0 %v1963
      %v2061 = vpop.f32.mrf.mxu0
      %v2062 = vadd.f32 0.0, %v2061
      %2063 = vmatmul.f32.gmra.mxu0 %v1964
      %v2064 = vpop.f32.mrf.mxu0
      %v2065 = vadd.f32 0.0, %v2064
      %2066 = vmatmul.f32.gmra.mxu0 %v1965
      %v2067 = vpop.f32.mrf.mxu0
      %v2068 = vadd.f32 0.0, %v2067
      %2069 = vmatmul.f32.gmra.mxu0 %v1966
      %v2070 = vpop.f32.mrf.mxu0
      %v2071 = vadd.f32 0.0, %v2070
      %2072 = vmatmul.f32.gmra.mxu0 %v1967
      %v2073 = vpop.f32.mrf.mxu0
      %v2074 = vadd.f32 0.0, %v2073
      %2075 = vmatmul.f32.gmra.mxu0 %v1968
      %v2076 = vpop.f32.mrf.mxu0
      %v2077 = vadd.f32 0.0, %v2076
      %2078 = vmatmul.f32.gmra.mxu0 %v1969
      %v2079 = vpop.f32.mrf.mxu0
      %v2080 = vadd.f32 0.0, %v2079
      %2081 = vmatmul.f32.gmra.mxu0 %v1970
      %v2082 = vpop.f32.mrf.mxu0
      %v2083 = vadd.f32 0.0, %v2082
      %2084 = vmatmul.f32.gmra.mxu0 %v1971
      %v2085 = vpop.f32.mrf.mxu0
      %v2086 = vadd.f32 0.0, %v2085
      %2087 = vmatmul.f32.gmra.mxu0 %v1972
      %v2088 = vpop.f32.mrf.mxu0
      %v2089 = vadd.f32 0.0, %v2088
      %2090 = vmatmul.f32.gmra.mxu0 %v1973
      %v2091 = vpop.f32.mrf.mxu0
      %v2092 = vadd.f32 0.0, %v2091
      %2093 = vmatmul.f32.gmra.mxu0 %v1974
      %v2094 = vpop.f32.mrf.mxu0
      %v2095 = vadd.f32 0.0, %v2094
      %2096 = vmatmul.f32.gmra.mxu0 %v1975
      %v2097 = vpop.f32.mrf.mxu0
      %v2098 = vadd.f32 0.0, %v2097
      %2099 = vmatmul.f32.gmra.mxu0 %v1976
      %v2100 = vpop.f32.mrf.mxu0
      %v2101 = vadd.f32 0.0, %v2100
      %2102 = vmatmul.f32.gmra.mxu0 %v1977
      %v2103 = vpop.f32.mrf.mxu0
      %v2104 = vadd.f32 0.0, %v2103
      %2105 = vmatmul.f32.gmra.mxu0 %v1978
      %v2106 = vpop.f32.mrf.mxu0
      %v2107 = vadd.f32 0.0, %v2106
      %2108 = vdwg.mxu0
      %v2109 = vadd.f32 %v1915, %v2014
      %v2110 = vadd.f32 %v1916, %v2017
      %v2111 = vadd.f32 %v1917, %v2020
      %v2112 = vadd.f32 %v1918, %v2023
      %v2113 = vadd.f32 %v1919, %v2026
      %v2114 = vadd.f32 %v1920, %v2029
      %v2115 = vadd.f32 %v1921, %v2032
      %v2116 = vadd.f32 %v1922, %v2035
      %v2117 = vadd.f32 %v1923, %v2038
      %v2118 = vadd.f32 %v1924, %v2041
      %v2119 = vadd.f32 %v1925, %v2044
      %v2120 = vadd.f32 %v1926, %v2047
      %v2121 = vadd.f32 %v1927, %v2050
      %v2122 = vadd.f32 %v1928, %v2053
      %v2123 = vadd.f32 %v1929, %v2056
      %v2124 = vadd.f32 %v1930, %v2059
      %v2125 = vadd.f32 %v1931, %v2062
      %v2126 = vadd.f32 %v1932, %v2065
      %v2127 = vadd.f32 %v1933, %v2068
      %v2128 = vadd.f32 %v1934, %v2071
      %v2129 = vadd.f32 %v1935, %v2074
      %v2130 = vadd.f32 %v1936, %v2077
      %v2131 = vadd.f32 %v1937, %v2080
      %v2132 = vadd.f32 %v1938, %v2083
      %v2133 = vadd.f32 %v1939, %v2086
      %v2134 = vadd.f32 %v1940, %v2089
      %v2135 = vadd.f32 %v1941, %v2092
      %v2136 = vadd.f32 %v1942, %v2095
      %v2137 = vadd.f32 %v1943, %v2098
      %v2138 = vadd.f32 %v1944, %v2101
      %v2139 = vadd.f32 %v1945, %v2104
      %v2140 = vadd.f32 %v1946, %v2107
      %2141 = vst [vmem:[%s231] sm:$0xff] %v2109
      %2142 = vst [vmem:[%s231 + $0x8] sm:$0xff] %v2110
      %2143 = vst [vmem:[%s231 + $0x10] sm:$0xff] %v2111
      %2144 = vst [vmem:[%s231 + $0x18] sm:$0xff] %v2112
      %2145 = vst [vmem:[%s231 + $0x20] sm:$0xff] %v2113
      %2146 = vst [vmem:[%s231 + $0x28] sm:$0xff] %v2114
      %2147 = vst [vmem:[%s231 + $0x30] sm:$0xff] %v2115
      %2148 = vst [vmem:[%s231 + $0x38] sm:$0xff] %v2116
      %2149 = vst [vmem:[%s231 + $0x40] sm:$0xff] %v2117
      %2150 = vst [vmem:[%s231 + $0x48] sm:$0xff] %v2118
      %2151 = vst [vmem:[%s231 + $0x50] sm:$0xff] %v2119
      %2152 = vst [vmem:[%s231 + $0x58] sm:$0xff] %v2120
      %2153 = vst [vmem:[%s231 + $0x60] sm:$0xff] %v2121
      %2154 = vst [vmem:[%s231 + $0x68] sm:$0xff] %v2122
      %2155 = vst [vmem:[%s231 + $0x70] sm:$0xff] %v2123
      %2156 = vst [vmem:[%s231 + $0x78] sm:$0xff] %v2124
      %2157 = vst [vmem:[%s231 + $0x80] sm:$0xff] %v2125
      %2158 = vst [vmem:[%s231 + $0x88] sm:$0xff] %v2126
      %2159 = vst [vmem:[%s231 + $0x90] sm:$0xff] %v2127
      %2160 = vst [vmem:[%s231 + $0x98] sm:$0xff] %v2128
      %2161 = vst [vmem:[%s231 + $0xa0] sm:$0xff] %v2129
      %2162 = vst [vmem:[%s231 + $0xa8] sm:$0xff] %v2130
      %2163 = vst [vmem:[%s231 + $0xb0] sm:$0xff] %v2131
      %2164 = vst [vmem:[%s231 + $0xb8] sm:$0xff] %v2132
      %2165 = vst [vmem:[%s231 + $0xc0] sm:$0xff] %v2133
      %2166 = vst [vmem:[%s231 + $0xc8] sm:$0xff] %v2134
      %2167 = vst [vmem:[%s231 + $0xd0] sm:$0xff] %v2135
      %2168 = vst [vmem:[%s231 + $0xd8] sm:$0xff] %v2136
      %2169 = vst [vmem:[%s231 + $0xe0] sm:$0xff] %v2137
      %2170 = vst [vmem:[%s231 + $0xe8] sm:$0xff] %v2138
      %2171 = vst [vmem:[%s231 + $0xf0] sm:$0xff] %v2139
      %2172 = vst [vmem:[%s231 + $0xf8] sm:$0xff] %v2140
      %v2173 = vadd.f32 %v2109, %v2110
      %v2174 = vadd.f32 %v2173, %v2111
      %v2175 = vadd.f32 %v2174, %v2112
      %v2176 = vadd.f32 %v2175, %v2113
      %v2177 = vadd.f32 %v2176, %v2114
      %v2178 = vadd.f32 %v2177, %v2115
      %v2179 = vadd.f32 %v2178, %v2116
      %v2180 = vadd.f32 %v2179, %v2117
      %v2181 = vadd.f32 %v2180, %v2118
      %v2182 = vadd.f32 %v2181, %v2119
      %v2183 = vadd.f32 %v2182, %v2120
      %v2184 = vadd.f32 %v2183, %v2121
      %v2185 = vadd.f32 %v2184, %v2122
      %v2186 = vadd.f32 %v2185, %v2123
      %v2187 = vadd.f32 %v2186, %v2124
      %v2188 = vadd.f32 %v2187, %v2125
      %v2189 = vadd.f32 %v2188, %v2126
      %v2190 = vadd.f32 %v2189, %v2127
      %v2191 = vadd.f32 %v2190, %v2128
      %v2192 = vadd.f32 %v2191, %v2129
      %v2193 = vadd.f32 %v2192, %v2130
      %v2194 = vadd.f32 %v2193, %v2131
      %v2195 = vadd.f32 %v2194, %v2132
      %v2196 = vadd.f32 %v2195, %v2133
      %v2197 = vadd.f32 %v2196, %v2134
      %v2198 = vadd.f32 %v2197, %v2135
      %v2199 = vadd.f32 %v2198, %v2136
      %v2200 = vadd.f32 %v2199, %v2137
      %v2201 = vadd.f32 %v2200, %v2138
      %v2202 = vadd.f32 %v2201, %v2139
      %v2203 = vadd.f32 %v2202, %v2140
      %v2204 = vrot.slane %v2203, 4
      %v2205 = vadd.f32 %v2203, %v2204
      %v2206 = vrot.slane %v2205, 2
      %v2207 = vadd.f32 %v2205, %v2206
      %v2208 = vrot.slane %v2207, 1
      %v2209 = vadd.f32 %v2207, %v2208
      %v2210 = vmul.f32 %v2109, %v2109
      %v2211 = vmul.f32 %v2110, %v2110
      %v2212 = vmul.f32 %v2111, %v2111
      %v2213 = vmul.f32 %v2112, %v2112
      %v2214 = vmul.f32 %v2113, %v2113
      %v2215 = vmul.f32 %v2114, %v2114
      %v2216 = vmul.f32 %v2115, %v2115
      %v2217 = vmul.f32 %v2116, %v2116
      %v2218 = vmul.f32 %v2117, %v2117
      %v2219 = vmul.f32 %v2118, %v2118
      %v2220 = vmul.f32 %v2119, %v2119
      %v2221 = vmul.f32 %v2120, %v2120
      %v2222 = vmul.f32 %v2121, %v2121
      %v2223 = vmul.f32 %v2122, %v2122
      %v2224 = vmul.f32 %v2123, %v2123
      %v2225 = vmul.f32 %v2124, %v2124
      %v2226 = vmul.f32 %v2125, %v2125
      %v2227 = vmul.f32 %v2126, %v2126
      %v2228 = vmul.f32 %v2127, %v2127
      %v2229 = vmul.f32 %v2128, %v2128
      %v2230 = vmul.f32 %v2129, %v2129
      %v2231 = vmul.f32 %v2130, %v2130
      %v2232 = vmul.f32 %v2131, %v2131
      %v2233 = vmul.f32 %v2132, %v2132
      %v2234 = vmul.f32 %v2133, %v2133
      %v2235 = vmul.f32 %v2134, %v2134
      %v2236 = vmul.f32 %v2135, %v2135
      %v2237 = vmul.f32 %v2136, %v2136
      %v2238 = vmul.f32 %v2137, %v2137
      %v2239 = vmul.f32 %v2138, %v2138
      %v2240 = vmul.f32 %v2139, %v2139
      %v2241 = vmul.f32 %v2140, %v2140
      %v2242 = vadd.f32 %v2210, %v2211
      %v2243 = vadd.f32 %v2242, %v2212
      %v2244 = vadd.f32 %v2243, %v2213
      %v2245 = vadd.f32 %v2244, %v2214
      %v2246 = vadd.f32 %v2245, %v2215
      %v2247 = vadd.f32 %v2246, %v2216
      %v2248 = vadd.f32 %v2247, %v2217
      %v2249 = vadd.f32 %v2248, %v2218
      %v2250 = vadd.f32 %v2249, %v2219
      %v2251 = vadd.f32 %v2250, %v2220
      %v2252 = vadd.f32 %v2251, %v2221
      %v2253 = vadd.f32 %v2252, %v2222
      %v2254 = vadd.f32 %v2253, %v2223
      %v2255 = vadd.f32 %v2254, %v2224
      %v2256 = vadd.f32 %v2255, %v2225
      %v2257 = vadd.f32 %v2256, %v2226
      %v2258 = vadd.f32 %v2257, %v2227
      %v2259 = vadd.f32 %v2258, %v2228
      %v2260 = vadd.f32 %v2259, %v2229
      %v2261 = vadd.f32 %v2260, %v2230
      %v2262 = vadd.f32 %v2261, %v2231
      %v2263 = vadd.f32 %v2262, %v2232
      %v2264 = vadd.f32 %v2263, %v2233
      %v2265 = vadd.f32 %v2264, %v2234
      %v2266 = vadd.f32 %v2265, %v2235
      %v2267 = vadd.f32 %v2266, %v2236
      %v2268 = vadd.f32 %v2267, %v2237
      %v2269 = vadd.f32 %v2268, %v2238
      %v2270 = vadd.f32 %v2269, %v2239
      %v2271 = vadd.f32 %v2270, %v2240
      %v2272 = vadd.f32 %v2271, %v2241
      %v2273 = vrot.slane %v2272, 4
      %v2274 = vadd.f32 %v2272, %v2273
      %v2275 = vrot.slane %v2274, 2
      %v2276 = vadd.f32 %v2274, %v2275
      %v2277 = vrot.slane %v2276, 1
      %v2278 = vadd.f32 %v2276, %v2277
      %vm2279 = vcmask 1040384
      %v2280 = vsel %vm2279, %v2209, %v2278
      %2281 = vst [vmem:[%s235] sm:$0x3] %v2280
      %p2282 = scmp.lt.s32.totalorder %s17, 1
      %s2283 = scalar_select %p2282, %s17, 1
      %s2284 = smul.addr %s2283, 32
      %s2285 = smul.addr %s2284, 8
      %s2286 = scalar_lea.vmem %s4, %s2285
      %p2287 = scmp.lt.s32.totalorder %s17, 1
      %s2288 = scalar_select %p2287, %s17, 1
      %s2289 = smul.addr %s2288, 2
      %s2290 = scalar_lea.vmem %s5, %s2289
      // Predicated region
      $region37: #{non_residual_block.4} parent=35 // pred_check
        %p2291 = pneg %p124
      $region38: #{non_residual_block.4} parent=35 // pred_check_branch
        %2293 = sbr.rel (%p2291) target = $region40
      $region39: #{non_residual_block.4} parent=35 // pred_region
        _
      $region40: #{non_residual_block.4} parent=35 // pred_fallthru
        _
      // Predicated region
      $region41: #{non_residual_block.4} parent=35 // pred_check
        %p2294 = pneg %p150
      $region42: #{non_residual_block.4} parent=35 // pred_check_branch
        %2296 = sbr.rel (%p2294) target = $region44
      $region43: #{non_residual_block.4} parent=35 // pred_region
        _
      $region44: #{non_residual_block.4} parent=35 // pred_fallthru
        _
    $region36: #{non_residual_block.4} parent=5 // pred_fallthru
      _
    %p2297 = scmp.le.s32.totalorder 2, %s12
    // Predicated region
    $region45: #{non_residual_block.4} parent=5 // pred_check
      %p2298 = pneg %p2297
    $region46: #{non_residual_block.4} parent=5 // pred_check_branch
      %2300 = sbr.rel (%p2298) target = $region48
    $region47: #{non_residual_block.4} parent=5 // pred_region
      %s2301 = ssub.s32 %s12, 2
      // Predicated region
      $region49: #{non_residual_block.4} parent=47 // pred_check
        %p2302 = pneg %p130
      $region50: #{non_residual_block.4} parent=47 // pred_check_branch
        %2304 = sbr.rel (%p2302) target = $region52
      $region51: #{non_residual_block.4} parent=47 // pred_region
        %p2305 = scmp.lt.s32.totalorder %s18, 1
        %s2306 = scalar_select %p2305, %s18, 1
        %s2307 = smul.addr %s2306, 32
        %s2308 = smul.addr %s2307, 8
        %s2309 = scalar_lea.vmem %s4, %s2308
      $region52: #{non_residual_block.4} parent=47 // pred_fallthru
        _
      // Predicated region
      $region53: #{non_residual_block.4} parent=47 // pred_check
        %p2310 = pneg %p156
      $region54: #{non_residual_block.4} parent=47 // pred_check_branch
        %2312 = sbr.rel (%p2310) target = $region56
      $region55: #{non_residual_block.4} parent=47 // pred_region
        %p2313 = scmp.lt.s32.totalorder %s18, 1
        %s2314 = scalar_select %p2313, %s18, 1
        %s2315 = smul.addr %s2314, 2
        %s2316 = scalar_lea.vmem %s5, %s2315
      $region56: #{non_residual_block.4} parent=47 // pred_fallthru
        _
    $region48: #{non_residual_block.4} parent=5 // pred_fallthru
      _
  $region6: #{non_residual_block.4} parent=0 // loop_footer
    %s16 = sadd.s32 1, %s12
  $region7: #{non_residual_block.4} parent=0 // loop_footer_branch
    %11 = sbr.rel target = $region3
  $region8: #{non_residual_block.4} parent=0 // loop_exit
    _

// kernel: non_residual_block.3
$region0: #{non_residual_block.3}
  #allocation0 [shape = 'u32[]', space=smem, size = 0x4, offset = 0x4, fixed_abs, tag = 'smem constant byte address 0x4 - core index']
  #allocation1 [shape = 'u32[72,128]{1,0:T(1,128)}', space=vmem, size = 0x9000, scoped, tag = 'internal scratch']
  %s0 = inlined_call_operand.vmem [shape: f32[2,18,18,4], index: 0, kind: input, shape index: {}]
  %s1 = inlined_call_operand.vmem [shape: f32[9,4,128], index: 1, kind: input, shape index: {}]
  %s2 = inlined_call_operand.vmem [shape: f32[2,16,16,128], index: 2, kind: output, shape index: {0}]
  %s3 = inlined_call_operand.vmem [shape: f32[2,2,128], index: 3, kind: output, shape index: {1}]
  %4 = xla_tuple %s2, %s3
  %s5 = sld [smem:[#allocation0]]
  $region49: #{non_residual_block.3} parent=0
    _
  %s7 = ssub.s32 1, %s5
  %s8 = scalar_select 0, %s7, %s5
  loop: start=0, step=1, limit=4
  $region2: #{non_residual_block.3} parent=0 // loop_pre_header
    _
  $region3: #{non_residual_block.3} parent=0 // loop_header
    %s10 = sphi 0, %s14
    %p11 = scmp.ge.s32.totalorder %s10, 4
    %s20 = sphi 0, %s22
    %s23 = sphi 0, %s20
    %s24 = sphi 0, %s23
    %s40 = sphi 0, %s24
    %s44 = sphi 0, %s44
    %s46 = sphi 0, %s44
    %s47 = sphi 0, %s46
    %s61 = sphi 0, %s47
    %s67 = sphi 0, %s69
    %s70 = sphi 0, %s67
    %s71 = sphi 0, %s70
    %s87 = sphi 0, %s71
    %s93 = sphi 0, %s95
    %s96 = sphi 0, %s93
    %s97 = sphi 0, %s96
    %s113 = sphi 0, %s97
  $region4: #{non_residual_block.3} parent=0 // loop_header_branch
    %13 = sbr.rel (%p11) target = $region8
  $region5: #{non_residual_block.3} parent=0 // loop_body
    %s15 = ssub.s32 %s10, 1
    %s16 = ssub.s32 %s10, 2
    %s17 = sadd.s32 %s10, 1
    %s18 = ssub.s32 %s10, %s17
    %p19 = scmp.eq.s32.totalorder %s18, 0
    %s21 = sadd.s32 %s20, 1
    %s22 = scalar_select %p19, %s20, %s21
    %p25 = pneg %p19
    %p26 = scmp.eq.s32.totalorder %s10, 1
    %p27 = por %p25, %p26
    %p28 = scmp.ne.s32.totalorder %s20, %s23
    %p29 = scmp.eq.s32.totalorder %s10, 0
    %p30 = por %p28, %p29
    %p31 = scmp.ne.s32.totalorder %s20, %s23
    %p32 = scmp.eq.s32.totalorder %s15, 1
    %p33 = por %p31, %p32
    %p34 = scmp.ne.s32.totalorder %s23, %s24
    %p35 = scmp.eq.s32.totalorder %s15, 0
    %p36 = por %p34, %p35
    %p37 = scmp.ne.s32.totalorder %s23, %s24
    %p38 = scmp.eq.s32.totalorder %s16, 1
    %p39 = por %p37, %p38
    %p41 = scmp.ne.s32.totalorder %s24, %s40
    %p42 = scmp.eq.s32.totalorder %s16, 0
    %p43 = por %p41, %p42
    %s45 = sadd.s32 %s44, 1
    %p48 = scmp.eq.s32.totalorder %s10, 1
    %p49 = scmp.ne.s32.totalorder %s44, %s46
    %p50 = scmp.eq.s32.totalorder %s10, 0
    %p51 = por %p49, %p50
    %p52 = scmp.ne.s32.totalorder %s44, %s46
    %p53 = scmp.eq.s32.totalorder %s15, 1
    %p54 = por %p52, %p53
    %p55 = scmp.ne.s32.totalorder %s46, %s47
    %p56 = scmp.eq.s32.totalorder %s15, 0
    %p57 = por %p55, %p56
    %p58 = scmp.ne.s32.totalorder %s46, %s47
    %p59 = scmp.eq.s32.totalorder %s16, 1
    %p60 = por %p58, %p59
    %p62 = scmp.ne.s32.totalorder %s47, %s61
    %p63 = scmp.eq.s32.totalorder %s16, 0
    %p64 = por %p62, %p63
    %s65 = ssub.s32 %s10, %s17
    %p66 = scmp.eq.s32.totalorder %s65, 0
    %s68 = sadd.s32 %s67, 1
    %s69 = scalar_select %p66, %s67, %s68
    %p72 = pneg %p66
    %p73 = scmp.eq.s32.totalorder %s10, 1
    %p74 = por %p72, %p73
    %p75 = scmp.ne.s32.totalorder %s67, %s70
    %p76 = scmp.eq.s32.totalorder %s10, 0
    %p77 = por %p75, %p76
    %p78 = scmp.ne.s32.totalorder %s67, %s70
    %p79 = scmp.eq.s32.totalorder %s15, 1
    %p80 = por %p78, %p79
    %p81 = scmp.ne.s32.totalorder %s70, %s71
    %p82 = scmp.eq.s32.totalorder %s15, 0
    %p83 = por %p81, %p82
    %p84 = scmp.ne.s32.totalorder %s70, %s71
    %p85 = scmp.eq.s32.totalorder %s16, 1
    %p86 = por %p84, %p85
    %p88 = scmp.ne.s32.totalorder %s71, %s87
    %p89 = scmp.eq.s32.totalorder %s16, 0
    %p90 = por %p88, %p89
    %s91 = ssub.s32 %s10, %s17
    %p92 = scmp.eq.s32.totalorder %s91, 0
    %s94 = sadd.s32 %s93, 1
    %s95 = scalar_select %p92, %s93, %s94
    %p98 = pneg %p92
    %p99 = scmp.eq.s32.totalorder %s10, 1
    %p100 = por %p98, %p99
    %p101 = scmp.ne.s32.totalorder %s93, %s96
    %p102 = scmp.eq.s32.totalorder %s10, 0
    %p103 = por %p101, %p102
    %p104 = scmp.ne.s32.totalorder %s93, %s96
    %p105 = scmp.eq.s32.totalorder %s15, 1
    %p106 = por %p104, %p105
    %p107 = scmp.ne.s32.totalorder %s96, %s97
    %p108 = scmp.eq.s32.totalorder %s15, 0
    %p109 = por %p107, %p108
    %p110 = scmp.ne.s32.totalorder %s96, %s97
    %p111 = scmp.eq.s32.totalorder %s16, 1
    %p112 = por %p110, %p111
    %p114 = scmp.ne.s32.totalorder %s97, %s113
    %p115 = scmp.eq.s32.totalorder %s16, 0
    %p116 = por %p114, %p115
    %p117 = scmp.le.s32.totalorder 1, %s10
    %p118 = scmp.lt.s32.totalorder %s10, 3
    %p119 = pnand %p117, %p118
    %p120 = pneg %p119
    // Predicated region
    $region9: #{non_residual_block.3} parent=5 // pred_check
      _
    $region10: #{non_residual_block.3} parent=5 // pred_check_branch
      %122 = sbr.rel (%p119) target = $region12
    $region11: #{non_residual_block.3} parent=5 // pred_region
      %s123 = ssub.s32 %s10, 1
      // Predicated region
      $region13: #{non_residual_block.3} parent=11 // pred_check
        %p124 = pneg %p57
      $region14: #{non_residual_block.3} parent=11 // pred_check_branch
        %126 = sbr.rel (%p124) target = $region16
      $region15: #{non_residual_block.3} parent=11 // pred_region
        _
      $region16: #{non_residual_block.3} parent=11 // pred_fallthru
        _
    $region12: #{non_residual_block.3} parent=5 // pred_fallthru
      _
    %p127 = scmp.lt.s32.totalorder %s10, 2
    // Predicated region
    $region17: #{non_residual_block.3} parent=5 // pred_check
      %p128 = pneg %p127
    $region18: #{non_residual_block.3} parent=5 // pred_check_branch
      %130 = sbr.rel (%p128) target = $region20
    $region19: #{non_residual_block.3} parent=5 // pred_region
      // Predicated region
      $region21: #{non_residual_block.3} parent=19 // pred_check
        %p131 = pneg %p30
      $region22: #{non_residual_block.3} parent=19 // pred_check_branch
        %133 = sbr.rel (%p131) target = $region24
      $region23: #{non_residual_block.3} parent=19 // pred_region
        %p134 = scmp.lt.s32.totalorder %s10, 1
        %s135 = scalar_select %p134, %s10, 1
        %s136 = smul.addr %s135, 54
        %s137 = smul.addr %s136, 8
        %s138 = scalar_lea.vmem %s0, %s137
      $region24: #{non_residual_block.3} parent=19 // pred_fallthru
        _
    $region20: #{non_residual_block.3} parent=5 // pred_fallthru
      _
    %p139 = scmp.le.s32.totalorder 1, %s10
    %p140 = scmp.lt.s32.totalorder %s10, 3
    %p141 = pnand %p139, %p140
    %p142 = pneg %p141
    // Predicated region
    $region25: #{non_residual_block.3} parent=5 // pred_check
      _
    $region26: #{non_residual_block.3} parent=5 // pred_check_branch
      %144 = sbr.rel (%p141) target = $region28
    $region27: #{non_residual_block.3} parent=5 // pred_region
      %s145 = ssub.s32 %s10, 1
      %p146 = scmp.lt.s32.totalorder %s15, 1
      %s147 = scalar_select %p146, %s15, 1
      %s148 = smul.addr %s147, 54
      %s149 = smul.addr %s148, 8
      %s150 = scalar_lea.vmem %s0, %s149
      %p151 = pneg %p36
      %p152 = pneg %p33
      %p153 = pneg %p57
      %p154 = pneg %p54
      %p155 = pneg %p83
      %p156 = pneg %p80
      %p157 = scmp.lt.s32.totalorder %s15, 1
      %s158 = scalar_select %p157, %s15, 1
      %s159 = smul.addr %s158, 32
      %s160 = smul.addr %s159, 8
      %s161 = scalar_lea.vmem %s2, %s160
      %p162 = pneg %p109
      %p163 = pneg %p106
      %p164 = scmp.lt.s32.totalorder %s15, 1
      %s165 = scalar_select %p164, %s15, 1
      %s166 = smul.addr %s165, 2
      %s167 = scalar_lea.vmem %s3, %s166
      %p168 = scmp.lt.s32.totalorder %s15, 1
      %s169 = scalar_select %p168, %s15, 1
      %s170 = smul.addr %s169, 54
      %s171 = smul.addr %s170, 8
      %s172 = scalar_lea.vmem %s0, %s171
      %p173 = scmp.lt.s32.totalorder %s15, 1
      %s174 = scalar_select %p173, %s15, 1
      %s175 = smul.addr %s174, 32
      %s176 = smul.addr %s175, 8
      %s177 = scalar_lea.vmem %s2, %s176
      %p178 = scmp.lt.s32.totalorder %s15, 1
      %s179 = scalar_select %p178, %s15, 1
      %s180 = smul.addr %s179, 2
      %s181 = scalar_lea.vmem %s3, %s180
      %v182 = vld [vmem:[%s172] sm:$0xff]
      %v183 = vld [vmem:[%s172 + $0x8] sm:$0xff]
      %v184 = vld [vmem:[%s172 + $0x18] sm:$0xff]
      %v185 = vld [vmem:[%s172 + $0x20] sm:$0xff]
      %v186 = vld [vmem:[%s172 + $0x30] sm:$0xff]
      %v187 = vld [vmem:[%s172 + $0x38] sm:$0xff]
      %v188 = vld [vmem:[%s172 + $0x48] sm:$0xff]
      %v189 = vld [vmem:[%s172 + $0x50] sm:$0xff]
      %v190 = vld [vmem:[%s172 + $0x60] sm:$0xff]
      %v191 = vld [vmem:[%s172 + $0x68] sm:$0xff]
      %v192 = vld [vmem:[%s172 + $0x78] sm:$0xff]
      %v193 = vld [vmem:[%s172 + $0x80] sm:$0xff]
      %v194 = vld [vmem:[%s172 + $0x90] sm:$0xff]
      %v195 = vld [vmem:[%s172 + $0x98] sm:$0xff]
      %v196 = vld [vmem:[%s172 + $0xa8] sm:$0xff]
      %v197 = vld [vmem:[%s172 + $0xb0] sm:$0xff]
      %v198 = vld [vmem:[%s172 + $0xc0] sm:$0xff]
      %v199 = vld [vmem:[%s172 + $0xc8] sm:$0xff]
      %v200 = vld [vmem:[%s172 + $0xd8] sm:$0xff]
      %v201 = vld [vmem:[%s172 + $0xe0] sm:$0xff]
      %v202 = vld [vmem:[%s172 + $0xf0] sm:$0xff]
      %v203 = vld [vmem:[%s172 + $0xf8] sm:$0xff]
      %v204 = vld [vmem:[%s172 + $0x108] sm:$0xff]
      %v205 = vld [vmem:[%s172 + $0x110] sm:$0xff]
      %v206 = vld [vmem:[%s172 + $0x120] sm:$0xff]
      %v207 = vld [vmem:[%s172 + $0x128] sm:$0xff]
      %v208 = vld [vmem:[%s172 + $0x138] sm:$0xff]
      %v209 = vld [vmem:[%s172 + $0x140] sm:$0xff]
      %v210 = vld [vmem:[%s172 + $0x150] sm:$0xff]
      %v211 = vld [vmem:[%s172 + $0x158] sm:$0xff]
      %v212 = vld [vmem:[%s172 + $0x168] sm:$0xff]
      %v213 = vld [vmem:[%s172 + $0x170] sm:$0xff]
      %v214 = vld [vmem:[%s1] sm:$0xf]
      %v215 = vld [vmem:[%s172 + $0x1] sm:$0xff]
      %v216 = vld [vmem:[%s172 + $0x9] sm:$0xff]
      %v217 = vld [vmem:[%s172 + $0x19] sm:$0xff]
      %v218 = vld [vmem:[%s172 + $0x21] sm:$0xff]
      %v219 = vld [vmem:[%s172 + $0x31] sm:$0xff]
      %v220 = vld [vmem:[%s172 + $0x39] sm:$0xff]
      %v221 = vld [vmem:[%s172 + $0x49] sm:$0xff]
      %v222 = vld [vmem:[%s172 + $0x51] sm:$0xff]
      %v223 = vld [vmem:[%s172 + $0x61] sm:$0xff]
      %v224 = vld [vmem:[%s172 + $0x69] sm:$0xff]
      %v225 = vld [vmem:[%s172 + $0x79] sm:$0xff]
      %v226 = vld [vmem:[%s172 + $0x81] sm:$0xff]
      %v227 = vld [vmem:[%s172 + $0x91] sm:$0xff]
      %v228 = vld [vmem:[%s172 + $0x99] sm:$0xff]
      %v229 = vld [vmem:[%s172 + $0xa9] sm:$0xff]
      %v230 = vld [vmem:[%s172 + $0xb1] sm:$0xff]
      %v231 = vld [vmem:[%s172 + $0xc1] sm:$0xff]
      %v232 = vld [vmem:[%s172 + $0xc9] sm:$0xff]
      %v233 = vld [vmem:[%s172 + $0xd9] sm:$0xff]
      %v234 = vld [vmem:[%s172 + $0xe1] sm:$0xff]
      %v235 = vld [vmem:[%s172 + $0xf1] sm:$0xff]
      %v236 = vld [vmem:[%s172 + $0xf9] sm:$0xff]
      %v237 = vld [vmem:[%s172 + $0x109] sm:$0xff]
      %v238 = vld [vmem:[%s172 + $0x111] sm:$0xff]
      %v239 = vld [vmem:[%s172 + $0x121] sm:$0xff]
      %v240 = vld [vmem:[%s172 + $0x129] sm:$0xff]
      %v241 = vld [vmem:[%s172 + $0x139] sm:$0xff]
      %v242 = vld [vmem:[%s172 + $0x141] sm:$0xff]
      %v243 = vld [vmem:[%s172 + $0x151] sm:$0xff]
      %v244 = vld [vmem:[%s172 + $0x159] sm:$0xff]
      %v245 = vld [vmem:[%s172 + $0x169] sm:$0xff]
      %v246 = vld [vmem:[%s172 + $0x171] sm:$0xff]
      %s247 = scalar_lea.vmem %s1, 4
      %v248 = vld [vmem:[%s247] sm:$0xf]
      %vm249 = vcmask 31744
      %v251 = vsel %vm249, %v215, 0
      %v254 = vsel %vm249, %v216, 0
      %v257 = vsel %vm249, %v217, 0
      %v260 = vsel %vm249, %v218, 0
      %v263 = vsel %vm249, %v219, 0
      %v266 = vsel %vm249, %v220, 0
      %v269 = vsel %vm249, %v221, 0
      %v272 = vsel %vm249, %v222, 0
      %v275 = vsel %vm249, %v223, 0
      %v278 = vsel %vm249, %v224, 0
      %v281 = vsel %vm249, %v225, 0
      %v284 = vsel %vm249, %v226, 0
      %v287 = vsel %vm249, %v227, 0
      %v290 = vsel %vm249, %v228, 0
      %v293 = vsel %vm249, %v229, 0
      %v296 = vsel %vm249, %v230, 0
      %v299 = vsel %vm249, %v231, 0
      %v302 = vsel %vm249, %v232, 0
      %v305 = vsel %vm249, %v233, 0
      %v308 = vsel %vm249, %v234, 0
      %v311 = vsel %vm249, %v235, 0
      %v314 = vsel %vm249, %v236, 0
      %v317 = vsel %vm249, %v237, 0
      %v320 = vsel %vm249, %v238, 0
      %v323 = vsel %vm249, %v239, 0
      %v326 = vsel %vm249, %v240, 0
      %v329 = vsel %vm249, %v241, 0
      %v332 = vsel %vm249, %v242, 0
      %v335 = vsel %vm249, %v243, 0
      %v338 = vsel %vm249, %v244, 0
      %v341 = vsel %vm249, %v245, 0
      %v344 = vsel %vm249, %v246, 0
      %vm346 = vcmask 1043456
      %v348 = vsel %vm346, %v248, 0
      %350 = vmatpush.msra.mxu0 0.0
      %351 = vmatpush.msra.mxu0 0.0
      %352 = vmatpush.msra.mxu0 0.0
      %353 = vmatpush.msra.mxu0 0.0
      %354 = vmatpush.msra.mxu0 0.0
      %355 = vmatpush.msra.mxu0 0.0
      %356 = vmatpush.msra.mxu0 0.0
      %357 = vmatpush.msra.mxu0 0.0
      %358 = vmatpush.msra.mxu0 0.0
      %359 = vmatpush.msra.mxu0 0.0
      %360 = vmatpush.msra.mxu0 0.0
      %361 = vmatpush.msra.mxu0 0.0
      %362 = vmatpush.msra.mxu0 0.0
      %363 = vmatpush.msra.mxu0 0.0
      %364 = vmatpush.msra.mxu0 0.0
      %365 = vmatpush.msra.mxu0 %v348
      %366 = vmatmul.f32.gmra.mxu0 %v251
      %v367 = vpop.f32.mrf.mxu0
      %v368 = vadd.f32 0.0, %v367
      %369 = vmatmul.f32.gmra.mxu0 %v254
      %v370 = vpop.f32.mrf.mxu0
      %v371 = vadd.f32 0.0, %v370
      %372 = vmatmul.f32.gmra.mxu0 %v257
      %v373 = vpop.f32.mrf.mxu0
      %v374 = vadd.f32 0.0, %v373
      %375 = vmatmul.f32.gmra.mxu0 %v260
      %v376 = vpop.f32.mrf.mxu0
      %v377 = vadd.f32 0.0, %v376
      %378 = vmatmul.f32.gmra.mxu0 %v263
      %v379 = vpop.f32.mrf.mxu0
      %v380 = vadd.f32 0.0, %v379
      %381 = vmatmul.f32.gmra.mxu0 %v266
      %v382 = vpop.f32.mrf.mxu0
      %v383 = vadd.f32 0.0, %v382
      %384 = vmatmul.f32.gmra.mxu0 %v269
      %v385 = vpop.f32.mrf.mxu0
      %v386 = vadd.f32 0.0, %v385
      %387 = vmatmul.f32.gmra.mxu0 %v272
      %v388 = vpop.f32.mrf.mxu0
      %v389 = vadd.f32 0.0, %v388
      %390 = vmatmul.f32.gmra.mxu0 %v275
      %v391 = vpop.f32.mrf.mxu0
      %v392 = vadd.f32 0.0, %v391
      %393 = vmatmul.f32.gmra.mxu0 %v278
      %v394 = vpop.f32.mrf.mxu0
      %v395 = vadd.f32 0.0, %v394
      %396 = vmatmul.f32.gmra.mxu0 %v281
      %v397 = vpop.f32.mrf.mxu0
      %v398 = vadd.f32 0.0, %v397
      %399 = vmatmul.f32.gmra.mxu0 %v284
      %v400 = vpop.f32.mrf.mxu0
      %v401 = vadd.f32 0.0, %v400
      %402 = vmatmul.f32.gmra.mxu0 %v287
      %v403 = vpop.f32.mrf.mxu0
      %v404 = vadd.f32 0.0, %v403
      %405 = vmatmul.f32.gmra.mxu0 %v290
      %v406 = vpop.f32.mrf.mxu0
      %v407 = vadd.f32 0.0, %v406
      %408 = vmatmul.f32.gmra.mxu0 %v293
      %v409 = vpop.f32.mrf.mxu0
      %v410 = vadd.f32 0.0, %v409
      %411 = vmatmul.f32.gmra.mxu0 %v296
      %v412 = vpop.f32.mrf.mxu0
      %v413 = vadd.f32 0.0, %v412
      %414 = vmatmul.f32.gmra.mxu0 %v299
      %v415 = vpop.f32.mrf.mxu0
      %v416 = vadd.f32 0.0, %v415
      %417 = vmatmul.f32.gmra.mxu0 %v302
      %v418 = vpop.f32.mrf.mxu0
      %v419 = vadd.f32 0.0, %v418
      %420 = vmatmul.f32.gmra.mxu0 %v305
      %v421 = vpop.f32.mrf.mxu0
      %v422 = vadd.f32 0.0, %v421
      %423 = vmatmul.f32.gmra.mxu0 %v308
      %v424 = vpop.f32.mrf.mxu0
      %v425 = vadd.f32 0.0, %v424
      %426 = vmatmul.f32.gmra.mxu0 %v311
      %v427 = vpop.f32.mrf.mxu0
      %v428 = vadd.f32 0.0, %v427
      %429 = vmatmul.f32.gmra.mxu0 %v314
      %v430 = vpop.f32.mrf.mxu0
      %v431 = vadd.f32 0.0, %v430
      %432 = vmatmul.f32.gmra.mxu0 %v317
      %v433 = vpop.f32.mrf.mxu0
      %v434 = vadd.f32 0.0, %v433
      %435 = vmatmul.f32.gmra.mxu0 %v320
      %v436 = vpop.f32.mrf.mxu0
      %v437 = vadd.f32 0.0, %v436
      %438 = vmatmul.f32.gmra.mxu0 %v323
      %v439 = vpop.f32.mrf.mxu0
      %v440 = vadd.f32 0.0, %v439
      %441 = vmatmul.f32.gmra.mxu0 %v326
      %v442 = vpop.f32.mrf.mxu0
      %v443 = vadd.f32 0.0, %v442
      %444 = vmatmul.f32.gmra.mxu0 %v329
      %v445 = vpop.f32.mrf.mxu0
      %v446 = vadd.f32 0.0, %v445
      %447 = vmatmul.f32.gmra.mxu0 %v332
      %v448 = vpop.f32.mrf.mxu0
      %v449 = vadd.f32 0.0, %v448
      %450 = vmatmul.f32.gmra.mxu0 %v335
      %v451 = vpop.f32.mrf.mxu0
      %v452 = vadd.f32 0.0, %v451
      %453 = vmatmul.f32.gmra.mxu0 %v338
      %v454 = vpop.f32.mrf.mxu0
      %v455 = vadd.f32 0.0, %v454
      %456 = vmatmul.f32.gmra.mxu0 %v341
      %v457 = vpop.f32.mrf.mxu0
      %v458 = vadd.f32 0.0, %v457
      %459 = vmatmul.f32.gmra.mxu0 %v344
      %v460 = vpop.f32.mrf.mxu0
      %v461 = vadd.f32 0.0, %v460
      %462 = vdwg.mxu0
      %v464 = vsel %vm249, %v182, 0
      %v467 = vsel %vm249, %v183, 0
      %v470 = vsel %vm249, %v184, 0
      %v473 = vsel %vm249, %v185, 0
      %v476 = vsel %vm249, %v186, 0
      %v479 = vsel %vm249, %v187, 0
      %v482 = vsel %vm249, %v188, 0
      %v485 = vsel %vm249, %v189, 0
      %v488 = vsel %vm249, %v190, 0
      %v491 = vsel %vm249, %v191, 0
      %v494 = vsel %vm249, %v192, 0
      %v497 = vsel %vm249, %v193, 0
      %v500 = vsel %vm249, %v194, 0
      %v503 = vsel %vm249, %v195, 0
      %v506 = vsel %vm249, %v196, 0
      %v509 = vsel %vm249, %v197, 0
      %v512 = vsel %vm249, %v198, 0
      %v515 = vsel %vm249, %v199, 0
      %v518 = vsel %vm249, %v200, 0
      %v521 = vsel %vm249, %v201, 0
      %v524 = vsel %vm249, %v202, 0
      %v527 = vsel %vm249, %v203, 0
      %v530 = vsel %vm249, %v204, 0
      %v533 = vsel %vm249, %v205, 0
      %v536 = vsel %vm249, %v206, 0
      %v539 = vsel %vm249, %v207, 0
      %v542 = vsel %vm249, %v208, 0
      %v545 = vsel %vm249, %v209, 0
      %v548 = vsel %vm249, %v210, 0
      %v551 = vsel %vm249, %v211, 0
      %v554 = vsel %vm249, %v212, 0
      %v557 = vsel %vm249, %v213, 0
      %v560 = vsel %vm346, %v214, 0
      %562 = vmatpush.msra.mxu0 0.0
      %563 = vmatpush.msra.mxu0 0.0
      %564 = vmatpush.msra.mxu0 0.0
      %565 = vmatpush.msra.mxu0 0.0
      %566 = vmatpush.msra.mxu0 0.0
      %567 = vmatpush.msra.mxu0 0.0
      %568 = vmatpush.msra.mxu0 0.0
      %569 = vmatpush.msra.mxu0 0.0
      %570 = vmatpush.msra.mxu0 0.0
      %571 = vmatpush.msra.mxu0 0.0
      %572 = vmatpush.msra.mxu0 0.0
      %573 = vmatpush.msra.mxu0 0.0
      %574 = vmatpush.msra.mxu0 0.0
      %575 = vmatpush.msra.mxu0 0.0
      %576 = vmatpush.msra.mxu0 0.0
      %577 = vmatpush.msra.mxu0 %v560
      %578 = vmatmul.f32.gmra.mxu0 %v464
      %v579 = vpop.f32.mrf.mxu0
      %v580 = vadd.f32 %v368, %v579
      %581 = vmatmul.f32.gmra.mxu0 %v467
      %v582 = vpop.f32.mrf.mxu0
      %v583 = vadd.f32 %v371, %v582
      %584 = vmatmul.f32.gmra.mxu0 %v470
      %v585 = vpop.f32.mrf.mxu0
      %v586 = vadd.f32 %v374, %v585
      %587 = vmatmul.f32.gmra.mxu0 %v473
      %v588 = vpop.f32.mrf.mxu0
      %v589 = vadd.f32 %v377, %v588
      %590 = vmatmul.f32.gmra.mxu0 %v476
      %v591 = vpop.f32.mrf.mxu0
      %v592 = vadd.f32 %v380, %v591
      %593 = vmatmul.f32.gmra.mxu0 %v479
      %v594 = vpop.f32.mrf.mxu0
      %v595 = vadd.f32 %v383, %v594
      %596 = vmatmul.f32.gmra.mxu0 %v482
      %v597 = vpop.f32.mrf.mxu0
      %v598 = vadd.f32 %v386, %v597
      %599 = vmatmul.f32.gmra.mxu0 %v485
      %v600 = vpop.f32.mrf.mxu0
      %v601 = vadd.f32 %v389, %v600
      %602 = vmatmul.f32.gmra.mxu0 %v488
      %v603 = vpop.f32.mrf.mxu0
      %v604 = vadd.f32 %v392, %v603
      %605 = vmatmul.f32.gmra.mxu0 %v491
      %v606 = vpop.f32.mrf.mxu0
      %v607 = vadd.f32 %v395, %v606
      %608 = vmatmul.f32.gmra.mxu0 %v494
      %v609 = vpop.f32.mrf.mxu0
      %v610 = vadd.f32 %v398, %v609
      %611 = vmatmul.f32.gmra.mxu0 %v497
      %v612 = vpop.f32.mrf.mxu0
      %v613 = vadd.f32 %v401, %v612
      %614 = vmatmul.f32.gmra.mxu0 %v500
      %v615 = vpop.f32.mrf.mxu0
      %v616 = vadd.f32 %v404, %v615
      %617 = vmatmul.f32.gmra.mxu0 %v503
      %v618 = vpop.f32.mrf.mxu0
      %v619 = vadd.f32 %v407, %v618
      %620 = vmatmul.f32.gmra.mxu0 %v506
      %v621 = vpop.f32.mrf.mxu0
      %v622 = vadd.f32 %v410, %v621
      %623 = vmatmul.f32.gmra.mxu0 %v509
      %v624 = vpop.f32.mrf.mxu0
      %v625 = vadd.f32 %v413, %v624
      %626 = vmatmul.f32.gmra.mxu0 %v512
      %v627 = vpop.f32.mrf.mxu0
      %v628 = vadd.f32 %v416, %v627
      %629 = vmatmul.f32.gmra.mxu0 %v515
      %v630 = vpop.f32.mrf.mxu0
      %v631 = vadd.f32 %v419, %v630
      %632 = vmatmul.f32.gmra.mxu0 %v518
      %v633 = vpop.f32.mrf.mxu0
      %v634 = vadd.f32 %v422, %v633
      %635 = vmatmul.f32.gmra.mxu0 %v521
      %v636 = vpop.f32.mrf.mxu0
      %v637 = vadd.f32 %v425, %v636
      %638 = vmatmul.f32.gmra.mxu0 %v524
      %v639 = vpop.f32.mrf.mxu0
      %v640 = vadd.f32 %v428, %v639
      %641 = vmatmul.f32.gmra.mxu0 %v527
      %v642 = vpop.f32.mrf.mxu0
      %v643 = vadd.f32 %v431, %v642
      %644 = vmatmul.f32.gmra.mxu0 %v530
      %v645 = vpop.f32.mrf.mxu0
      %v646 = vadd.f32 %v434, %v645
      %647 = vmatmul.f32.gmra.mxu0 %v533
      %v648 = vpop.f32.mrf.mxu0
      %v649 = vadd.f32 %v437, %v648
      %650 = vmatmul.f32.gmra.mxu0 %v536
      %v651 = vpop.f32.mrf.mxu0
      %v652 = vadd.f32 %v440, %v651
      %653 = vmatmul.f32.gmra.mxu0 %v539
      %v654 = vpop.f32.mrf.mxu0
      %v655 = vadd.f32 %v443, %v654
      %656 = vmatmul.f32.gmra.mxu0 %v542
      %v657 = vpop.f32.mrf.mxu0
      %v658 = vadd.f32 %v446, %v657
      %659 = vmatmul.f32.gmra.mxu0 %v545
      %v660 = vpop.f32.mrf.mxu0
      %v661 = vadd.f32 %v449, %v660
      %662 = vmatmul.f32.gmra.mxu0 %v548
      %v663 = vpop.f32.mrf.mxu0
      %v664 = vadd.f32 %v452, %v663
      %665 = vmatmul.f32.gmra.mxu0 %v551
      %v666 = vpop.f32.mrf.mxu0
      %v667 = vadd.f32 %v455, %v666
      %668 = vmatmul.f32.gmra.mxu0 %v554
      %v669 = vpop.f32.mrf.mxu0
      %v670 = vadd.f32 %v458, %v669
      %671 = vmatmul.f32.gmra.mxu0 %v557
      %v672 = vpop.f32.mrf.mxu0
      %v673 = vadd.f32 %v461, %v672
      %674 = vdwg.mxu0
      %v675 = vld [vmem:[%s172 + $0x2] sm:$0xff]
      %v676 = vld [vmem:[%s172 + $0xa] sm:$0xff]
      %v677 = vld [vmem:[%s172 + $0x1a] sm:$0xff]
      %v678 = vld [vmem:[%s172 + $0x22] sm:$0xff]
      %v679 = vld [vmem:[%s172 + $0x32] sm:$0xff]
      %v680 = vld [vmem:[%s172 + $0x3a] sm:$0xff]
      %v681 = vld [vmem:[%s172 + $0x4a] sm:$0xff]
      %v682 = vld [vmem:[%s172 + $0x52] sm:$0xff]
      %v683 = vld [vmem:[%s172 + $0x62] sm:$0xff]
      %v684 = vld [vmem:[%s172 + $0x6a] sm:$0xff]
      %v685 = vld [vmem:[%s172 + $0x7a] sm:$0xff]
      %v686 = vld [vmem:[%s172 + $0x82] sm:$0xff]
      %v687 = vld [vmem:[%s172 + $0x92] sm:$0xff]
      %v688 = vld [vmem:[%s172 + $0x9a] sm:$0xff]
      %v689 = vld [vmem:[%s172 + $0xaa] sm:$0xff]
      %v690 = vld [vmem:[%s172 + $0xb2] sm:$0xff]
      %v691 = vld [vmem:[%s172 + $0xc2] sm:$0xff]
      %v692 = vld [vmem:[%s172 + $0xca] sm:$0xff]
      %v693 = vld [vmem:[%s172 + $0xda] sm:$0xff]
      %v694 = vld [vmem:[%s172 + $0xe2] sm:$0xff]
      %v695 = vld [vmem:[%s172 + $0xf2] sm:$0xff]
      %v696 = vld [vmem:[%s172 + $0xfa] sm:$0xff]
      %v697 = vld [vmem:[%s172 + $0x10a] sm:$0xff]
      %v698 = vld [vmem:[%s172 + $0x112] sm:$0xff]
      %v699 = vld [vmem:[%s172 + $0x122] sm:$0xff]
      %v700 = vld [vmem:[%s172 + $0x12a] sm:$0xff]
      %v701 = vld [vmem:[%s172 + $0x13a] sm:$0xff]
      %v702 = vld [vmem:[%s172 + $0x142] sm:$0xff]
      %v703 = vld [vmem:[%s172 + $0x152] sm:$0xff]
      %v704 = vld [vmem:[%s172 + $0x15a] sm:$0xff]
      %v705 = vld [vmem:[%s172 + $0x16a] sm:$0xff]
      %v706 = vld [vmem:[%s172 + $0x172] sm:$0xff]
      %s707 = scalar_lea.vmem %s1, 8
      %v708 = vld [vmem:[%s707] sm:$0xf]
      %v710 = vsel %vm249, %v675, 0
      %v713 = vsel %vm249, %v676, 0
      %v716 = vsel %vm249, %v677, 0
      %v719 = vsel %vm249, %v678, 0
      %v722 = vsel %vm249, %v679, 0
      %v725 = vsel %vm249, %v680, 0
      %v728 = vsel %vm249, %v681, 0
      %v731 = vsel %vm249, %v682, 0
      %v734 = vsel %vm249, %v683, 0
      %v737 = vsel %vm249, %v684, 0
      %v740 = vsel %vm249, %v685, 0
      %v743 = vsel %vm249, %v686, 0
      %v746 = vsel %vm249, %v687, 0
      %v749 = vsel %vm249, %v688, 0
      %v752 = vsel %vm249, %v689, 0
      %v755 = vsel %vm249, %v690, 0
      %v758 = vsel %vm249, %v691, 0
      %v761 = vsel %vm249, %v692, 0
      %v764 = vsel %vm249, %v693, 0
      %v767 = vsel %vm249, %v694, 0
      %v770 = vsel %vm249, %v695, 0
      %v773 = vsel %vm249, %v696, 0
      %v776 = vsel %vm249, %v697, 0
      %v779 = vsel %vm249, %v698, 0
      %v782 = vsel %vm249, %v699, 0
      %v785 = vsel %vm249, %v700, 0
      %v788 = vsel %vm249, %v701, 0
      %v791 = vsel %vm249, %v702, 0
      %v794 = vsel %vm249, %v703, 0
      %v797 = vsel %vm249, %v704, 0
      %v800 = vsel %vm249, %v705, 0
      %v803 = vsel %vm249, %v706, 0
      %v806 = vsel %vm346, %v708, 0
      %808 = vmatpush.msra.mxu0 0.0
      %809 = vmatpush.msra.mxu0 0.0
      %810 = vmatpush.msra.mxu0 0.0
      %811 = vmatpush.msra.mxu0 0.0
      %812 = vmatpush.msra.mxu0 0.0
      %813 = vmatpush.msra.mxu0 0.0
      %814 = vmatpush.msra.mxu0 0.0
      %815 = vmatpush.msra.mxu0 0.0
      %816 = vmatpush.msra.mxu0 0.0
      %817 = vmatpush.msra.mxu0 0.0
      %818 = vmatpush.msra.mxu0 0.0
      %819 = vmatpush.msra.mxu0 0.0
      %820 = vmatpush.msra.mxu0 0.0
      %821 = vmatpush.msra.mxu0 0.0
      %822 = vmatpush.msra.mxu0 0.0
      %823 = vmatpush.msra.mxu0 %v806
      %824 = vmatmul.f32.gmra.mxu0 %v710
      %v825 = vpop.f32.mrf.mxu0
      %v826 = vadd.f32 0.0, %v825
      %827 = vmatmul.f32.gmra.mxu0 %v713
      %v828 = vpop.f32.mrf.mxu0
      %v829 = vadd.f32 0.0, %v828
      %830 = vmatmul.f32.gmra.mxu0 %v716
      %v831 = vpop.f32.mrf.mxu0
      %v832 = vadd.f32 0.0, %v831
      %833 = vmatmul.f32.gmra.mxu0 %v719
      %v834 = vpop.f32.mrf.mxu0
      %v835 = vadd.f32 0.0, %v834
      %836 = vmatmul.f32.gmra.mxu0 %v722
      %v837 = vpop.f32.mrf.mxu0
      %v838 = vadd.f32 0.0, %v837
      %839 = vmatmul.f32.gmra.mxu0 %v725
      %v840 = vpop.f32.mrf.mxu0
      %v841 = vadd.f32 0.0, %v840
      %842 = vmatmul.f32.gmra.mxu0 %v728
      %v843 = vpop.f32.mrf.mxu0
      %v844 = vadd.f32 0.0, %v843
      %845 = vmatmul.f32.gmra.mxu0 %v731
      %v846 = vpop.f32.mrf.mxu0
      %v847 = vadd.f32 0.0, %v846
      %848 = vmatmul.f32.gmra.mxu0 %v734
      %v849 = vpop.f32.mrf.mxu0
      %v850 = vadd.f32 0.0, %v849
      %851 = vmatmul.f32.gmra.mxu0 %v737
      %v852 = vpop.f32.mrf.mxu0
      %v853 = vadd.f32 0.0, %v852
      %854 = vmatmul.f32.gmra.mxu0 %v740
      %v855 = vpop.f32.mrf.mxu0
      %v856 = vadd.f32 0.0, %v855
      %857 = vmatmul.f32.gmra.mxu0 %v743
      %v858 = vpop.f32.mrf.mxu0
      %v859 = vadd.f32 0.0, %v858
      %860 = vmatmul.f32.gmra.mxu0 %v746
      %v861 = vpop.f32.mrf.mxu0
      %v862 = vadd.f32 0.0, %v861
      %863 = vmatmul.f32.gmra.mxu0 %v749
      %v864 = vpop.f32.mrf.mxu0
      %v865 = vadd.f32 0.0, %v864
      %866 = vmatmul.f32.gmra.mxu0 %v752
      %v867 = vpop.f32.mrf.mxu0
      %v868 = vadd.f32 0.0, %v867
      %869 = vmatmul.f32.gmra.mxu0 %v755
      %v870 = vpop.f32.mrf.mxu0
      %v871 = vadd.f32 0.0, %v870
      %872 = vmatmul.f32.gmra.mxu0 %v758
      %v873 = vpop.f32.mrf.mxu0
      %v874 = vadd.f32 0.0, %v873
      %875 = vmatmul.f32.gmra.mxu0 %v761
      %v876 = vpop.f32.mrf.mxu0
      %v877 = vadd.f32 0.0, %v876
      %878 = vmatmul.f32.gmra.mxu0 %v764
      %v879 = vpop.f32.mrf.mxu0
      %v880 = vadd.f32 0.0, %v879
      %881 = vmatmul.f32.gmra.mxu0 %v767
      %v882 = vpop.f32.mrf.mxu0
      %v883 = vadd.f32 0.0, %v882
      %884 = vmatmul.f32.gmra.mxu0 %v770
      %v885 = vpop.f32.mrf.mxu0
      %v886 = vadd.f32 0.0, %v885
      %887 = vmatmul.f32.gmra.mxu0 %v773
      %v888 = vpop.f32.mrf.mxu0
      %v889 = vadd.f32 0.0, %v888
      %890 = vmatmul.f32.gmra.mxu0 %v776
      %v891 = vpop.f32.mrf.mxu0
      %v892 = vadd.f32 0.0, %v891
      %893 = vmatmul.f32.gmra.mxu0 %v779
      %v894 = vpop.f32.mrf.mxu0
      %v895 = vadd.f32 0.0, %v894
      %896 = vmatmul.f32.gmra.mxu0 %v782
      %v897 = vpop.f32.mrf.mxu0
      %v898 = vadd.f32 0.0, %v897
      %899 = vmatmul.f32.gmra.mxu0 %v785
      %v900 = vpop.f32.mrf.mxu0
      %v901 = vadd.f32 0.0, %v900
      %902 = vmatmul.f32.gmra.mxu0 %v788
      %v903 = vpop.f32.mrf.mxu0
      %v904 = vadd.f32 0.0, %v903
      %905 = vmatmul.f32.gmra.mxu0 %v791
      %v906 = vpop.f32.mrf.mxu0
      %v907 = vadd.f32 0.0, %v906
      %908 = vmatmul.f32.gmra.mxu0 %v794
      %v909 = vpop.f32.mrf.mxu0
      %v910 = vadd.f32 0.0, %v909
      %911 = vmatmul.f32.gmra.mxu0 %v797
      %v912 = vpop.f32.mrf.mxu0
      %v913 = vadd.f32 0.0, %v912
      %914 = vmatmul.f32.gmra.mxu0 %v800
      %v915 = vpop.f32.mrf.mxu0
      %v916 = vadd.f32 0.0, %v915
      %917 = vmatmul.f32.gmra.mxu0 %v803
      %v918 = vpop.f32.mrf.mxu0
      %v919 = vadd.f32 0.0, %v918
      %920 = vdwg.mxu0
      %v921 = vadd.f32 %v580, %v826
      %v922 = vadd.f32 %v583, %v829
      %v923 = vadd.f32 %v586, %v832
      %v924 = vadd.f32 %v589, %v835
      %v925 = vadd.f32 %v592, %v838
      %v926 = vadd.f32 %v595, %v841
      %v927 = vadd.f32 %v598, %v844
      %v928 = vadd.f32 %v601, %v847
      %v929 = vadd.f32 %v604, %v850
      %v930 = vadd.f32 %v607, %v853
      %v931 = vadd.f32 %v610, %v856
      %v932 = vadd.f32 %v613, %v859
      %v933 = vadd.f32 %v616, %v862
      %v934 = vadd.f32 %v619, %v865
      %v935 = vadd.f32 %v622, %v868
      %v936 = vadd.f32 %v625, %v871
      %v937 = vadd.f32 %v628, %v874
      %v938 = vadd.f32 %v631, %v877
      %v939 = vadd.f32 %v634, %v880
      %v940 = vadd.f32 %v637, %v883
      %v941 = vadd.f32 %v640, %v886
      %v942 = vadd.f32 %v643, %v889
      %v943 = vadd.f32 %v646, %v892
      %v944 = vadd.f32 %v649, %v895
      %v945 = vadd.f32 %v652, %v898
      %v946 = vadd.f32 %v655, %v901
      %v947 = vadd.f32 %v658, %v904
      %v948 = vadd.f32 %v661, %v907
      %v949 = vadd.f32 %v664, %v910
      %v950 = vadd.f32 %v667, %v913
      %v951 = vadd.f32 %v670, %v916
      %v952 = vadd.f32 %v673, %v919
      %s953 = scalar_lea.vmem %s172, 24
      %v954 = vld [vmem:[%s953] sm:$0xff]
      %v955 = vld [vmem:[%s953 + $0x8] sm:$0xff]
      %v956 = vld [vmem:[%s953 + $0x18] sm:$0xff]
      %v957 = vld [vmem:[%s953 + $0x20] sm:$0xff]
      %v958 = vld [vmem:[%s953 + $0x30] sm:$0xff]
      %v959 = vld [vmem:[%s953 + $0x38] sm:$0xff]
      %v960 = vld [vmem:[%s953 + $0x48] sm:$0xff]
      %v961 = vld [vmem:[%s953 + $0x50] sm:$0xff]
      %v962 = vld [vmem:[%s953 + $0x60] sm:$0xff]
      %v963 = vld [vmem:[%s953 + $0x68] sm:$0xff]
      %v964 = vld [vmem:[%s953 + $0x78] sm:$0xff]
      %v965 = vld [vmem:[%s953 + $0x80] sm:$0xff]
      %v966 = vld [vmem:[%s953 + $0x90] sm:$0xff]
      %v967 = vld [vmem:[%s953 + $0x98] sm:$0xff]
      %v968 = vld [vmem:[%s953 + $0xa8] sm:$0xff]
      %v969 = vld [vmem:[%s953 + $0xb0] sm:$0xff]
      %v970 = vld [vmem:[%s953 + $0xc0] sm:$0xff]
      %v971 = vld [vmem:[%s953 + $0xc8] sm:$0xff]
      %v972 = vld [vmem:[%s953 + $0xd8] sm:$0xff]
      %v973 = vld [vmem:[%s953 + $0xe0] sm:$0xff]
      %v974 = vld [vmem:[%s953 + $0xf0] sm:$0xff]
      %v975 = vld [vmem:[%s953 + $0xf8] sm:$0xff]
      %v976 = vld [vmem:[%s953 + $0x108] sm:$0xff]
      %v977 = vld [vmem:[%s953 + $0x110] sm:$0xff]
      %v978 = vld [vmem:[%s953 + $0x120] sm:$0xff]
      %v979 = vld [vmem:[%s953 + $0x128] sm:$0xff]
      %v980 = vld [vmem:[%s953 + $0x138] sm:$0xff]
      %v981 = vld [vmem:[%s953 + $0x140] sm:$0xff]
      %v982 = vld [vmem:[%s953 + $0x150] sm:$0xff]
      %v983 = vld [vmem:[%s953 + $0x158] sm:$0xff]
      %v984 = vld [vmem:[%s953 + $0x168] sm:$0xff]
      %v985 = vld [vmem:[%s953 + $0x170] sm:$0xff]
      %s986 = scalar_lea.vmem %s1, 12
      %v987 = vld [vmem:[%s986] sm:$0xf]
      %v989 = vsel %vm249, %v954, 0
      %v992 = vsel %vm249, %v955, 0
      %v995 = vsel %vm249, %v956, 0
      %v998 = vsel %vm249, %v957, 0
      %v1001 = vsel %vm249, %v958, 0
      %v1004 = vsel %vm249, %v959, 0
      %v1007 = vsel %vm249, %v960, 0
      %v1010 = vsel %vm249, %v961, 0
      %v1013 = vsel %vm249, %v962, 0
      %v1016 = vsel %vm249, %v963, 0
      %v1019 = vsel %vm249, %v964, 0
      %v1022 = vsel %vm249, %v965, 0
      %v1025 = vsel %vm249, %v966, 0
      %v1028 = vsel %vm249, %v967, 0
      %v1031 = vsel %vm249, %v968, 0
      %v1034 = vsel %vm249, %v969, 0
      %v1037 = vsel %vm249, %v970, 0
      %v1040 = vsel %vm249, %v971, 0
      %v1043 = vsel %vm249, %v972, 0
      %v1046 = vsel %vm249, %v973, 0
      %v1049 = vsel %vm249, %v974, 0
      %v1052 = vsel %vm249, %v975, 0
      %v1055 = vsel %vm249, %v976, 0
      %v1058 = vsel %vm249, %v977, 0
      %v1061 = vsel %vm249, %v978, 0
      %v1064 = vsel %vm249, %v979, 0
      %v1067 = vsel %vm249, %v980, 0
      %v1070 = vsel %vm249, %v981, 0
      %v1073 = vsel %vm249, %v982, 0
      %v1076 = vsel %vm249, %v983, 0
      %v1079 = vsel %vm249, %v984, 0
      %v1082 = vsel %vm249, %v985, 0
      %v1085 = vsel %vm346, %v987, 0
      %1087 = vmatpush.msra.mxu0 0.0
      %1088 = vmatpush.msra.mxu0 0.0
      %1089 = vmatpush.msra.mxu0 0.0
      %1090 = vmatpush.msra.mxu0 0.0
      %1091 = vmatpush.msra.mxu0 0.0
      %1092 = vmatpush.msra.mxu0 0.0
      %1093 = vmatpush.msra.mxu0 0.0
      %1094 = vmatpush.msra.mxu0 0.0
      %1095 = vmatpush.msra.mxu0 0.0
      %1096 = vmatpush.msra.mxu0 0.0
      %1097 = vmatpush.msra.mxu0 0.0
      %1098 = vmatpush.msra.mxu0 0.0
      %1099 = vmatpush.msra.mxu0 0.0
      %1100 = vmatpush.msra.mxu0 0.0
      %1101 = vmatpush.msra.mxu0 0.0
      %1102 = vmatpush.msra.mxu0 %v1085
      %1103 = vmatmul.f32.gmra.mxu0 %v989
      %v1104 = vpop.f32.mrf.mxu0
      %v1105 = vadd.f32 0.0, %v1104
      %1106 = vmatmul.f32.gmra.mxu0 %v992
      %v1107 = vpop.f32.mrf.mxu0
      %v1108 = vadd.f32 0.0, %v1107
      %1109 = vmatmul.f32.gmra.mxu0 %v995
      %v1110 = vpop.f32.mrf.mxu0
      %v1111 = vadd.f32 0.0, %v1110
      %1112 = vmatmul.f32.gmra.mxu0 %v998
      %v1113 = vpop.f32.mrf.mxu0
      %v1114 = vadd.f32 0.0, %v1113
      %1115 = vmatmul.f32.gmra.mxu0 %v1001
      %v1116 = vpop.f32.mrf.mxu0
      %v1117 = vadd.f32 0.0, %v1116
      %1118 = vmatmul.f32.gmra.mxu0 %v1004
      %v1119 = vpop.f32.mrf.mxu0
      %v1120 = vadd.f32 0.0, %v1119
      %1121 = vmatmul.f32.gmra.mxu0 %v1007
      %v1122 = vpop.f32.mrf.mxu0
      %v1123 = vadd.f32 0.0, %v1122
      %1124 = vmatmul.f32.gmra.mxu0 %v1010
      %v1125 = vpop.f32.mrf.mxu0
      %v1126 = vadd.f32 0.0, %v1125
      %1127 = vmatmul.f32.gmra.mxu0 %v1013
      %v1128 = vpop.f32.mrf.mxu0
      %v1129 = vadd.f32 0.0, %v1128
      %1130 = vmatmul.f32.gmra.mxu0 %v1016
      %v1131 = vpop.f32.mrf.mxu0
      %v1132 = vadd.f32 0.0, %v1131
      %1133 = vmatmul.f32.gmra.mxu0 %v1019
      %v1134 = vpop.f32.mrf.mxu0
      %v1135 = vadd.f32 0.0, %v1134
      %1136 = vmatmul.f32.gmra.mxu0 %v1022
      %v1137 = vpop.f32.mrf.mxu0
      %v1138 = vadd.f32 0.0, %v1137
      %1139 = vmatmul.f32.gmra.mxu0 %v1025
      %v1140 = vpop.f32.mrf.mxu0
      %v1141 = vadd.f32 0.0, %v1140
      %1142 = vmatmul.f32.gmra.mxu0 %v1028
      %v1143 = vpop.f32.mrf.mxu0
      %v1144 = vadd.f32 0.0, %v1143
      %1145 = vmatmul.f32.gmra.mxu0 %v1031
      %v1146 = vpop.f32.mrf.mxu0
      %v1147 = vadd.f32 0.0, %v1146
      %1148 = vmatmul.f32.gmra.mxu0 %v1034
      %v1149 = vpop.f32.mrf.mxu0
      %v1150 = vadd.f32 0.0, %v1149
      %1151 = vmatmul.f32.gmra.mxu0 %v1037
      %v1152 = vpop.f32.mrf.mxu0
      %v1153 = vadd.f32 0.0, %v1152
      %1154 = vmatmul.f32.gmra.mxu0 %v1040
      %v1155 = vpop.f32.mrf.mxu0
      %v1156 = vadd.f32 0.0, %v1155
      %1157 = vmatmul.f32.gmra.mxu0 %v1043
      %v1158 = vpop.f32.mrf.mxu0
      %v1159 = vadd.f32 0.0, %v1158
      %1160 = vmatmul.f32.gmra.mxu0 %v1046
      %v1161 = vpop.f32.mrf.mxu0
      %v1162 = vadd.f32 0.0, %v1161
      %1163 = vmatmul.f32.gmra.mxu0 %v1049
      %v1164 = vpop.f32.mrf.mxu0
      %v1165 = vadd.f32 0.0, %v1164
      %1166 = vmatmul.f32.gmra.mxu0 %v1052
      %v1167 = vpop.f32.mrf.mxu0
      %v1168 = vadd.f32 0.0, %v1167
      %1169 = vmatmul.f32.gmra.mxu0 %v1055
      %v1170 = vpop.f32.mrf.mxu0
      %v1171 = vadd.f32 0.0, %v1170
      %1172 = vmatmul.f32.gmra.mxu0 %v1058
      %v1173 = vpop.f32.mrf.mxu0
      %v1174 = vadd.f32 0.0, %v1173
      %1175 = vmatmul.f32.gmra.mxu0 %v1061
      %v1176 = vpop.f32.mrf.mxu0
      %v1177 = vadd.f32 0.0, %v1176
      %1178 = vmatmul.f32.gmra.mxu0 %v1064
      %v1179 = vpop.f32.mrf.mxu0
      %v1180 = vadd.f32 0.0, %v1179
      %1181 = vmatmul.f32.gmra.mxu0 %v1067
      %v1182 = vpop.f32.mrf.mxu0
      %v1183 = vadd.f32 0.0, %v1182
      %1184 = vmatmul.f32.gmra.mxu0 %v1070
      %v1185 = vpop.f32.mrf.mxu0
      %v1186 = vadd.f32 0.0, %v1185
      %1187 = vmatmul.f32.gmra.mxu0 %v1073
      %v1188 = vpop.f32.mrf.mxu0
      %v1189 = vadd.f32 0.0, %v1188
      %1190 = vmatmul.f32.gmra.mxu0 %v1076
      %v1191 = vpop.f32.mrf.mxu0
      %v1192 = vadd.f32 0.0, %v1191
      %1193 = vmatmul.f32.gmra.mxu0 %v1079
      %v1194 = vpop.f32.mrf.mxu0
      %v1195 = vadd.f32 0.0, %v1194
      %1196 = vmatmul.f32.gmra.mxu0 %v1082
      %v1197 = vpop.f32.mrf.mxu0
      %v1198 = vadd.f32 0.0, %v1197
      %1199 = vdwg.mxu0
      %v1200 = vadd.f32 %v921, %v1105
      %v1201 = vadd.f32 %v922, %v1108
      %v1202 = vadd.f32 %v923, %v1111
      %v1203 = vadd.f32 %v924, %v1114
      %v1204 = vadd.f32 %v925, %v1117
      %v1205 = vadd.f32 %v926, %v1120
      %v1206 = vadd.f32 %v927, %v1123
      %v1207 = vadd.f32 %v928, %v1126
      %v1208 = vadd.f32 %v929, %v1129
      %v1209 = vadd.f32 %v930, %v1132
      %v1210 = vadd.f32 %v931, %v1135
      %v1211 = vadd.f32 %v932, %v1138
      %v1212 = vadd.f32 %v933, %v1141
      %v1213 = vadd.f32 %v934, %v1144
      %v1214 = vadd.f32 %v935, %v1147
      %v1215 = vadd.f32 %v936, %v1150
      %v1216 = vadd.f32 %v937, %v1153
      %v1217 = vadd.f32 %v938, %v1156
      %v1218 = vadd.f32 %v939, %v1159
      %v1219 = vadd.f32 %v940, %v1162
      %v1220 = vadd.f32 %v941, %v1165
      %v1221 = vadd.f32 %v942, %v1168
      %v1222 = vadd.f32 %v943, %v1171
      %v1223 = vadd.f32 %v944, %v1174
      %v1224 = vadd.f32 %v945, %v1177
      %v1225 = vadd.f32 %v946, %v1180
      %v1226 = vadd.f32 %v947, %v1183
      %v1227 = vadd.f32 %v948, %v1186
      %v1228 = vadd.f32 %v949, %v1189
      %v1229 = vadd.f32 %v950, %v1192
      %v1230 = vadd.f32 %v951, %v1195
      %v1231 = vadd.f32 %v952, %v1198
      %v1232 = vld [vmem:[%s953 + $0x1] sm:$0xff]
      %v1233 = vld [vmem:[%s953 + $0x9] sm:$0xff]
      %v1234 = vld [vmem:[%s953 + $0x19] sm:$0xff]
      %v1235 = vld [vmem:[%s953 + $0x21] sm:$0xff]
      %v1236 = vld [vmem:[%s953 + $0x31] sm:$0xff]
      %v1237 = vld [vmem:[%s953 + $0x39] sm:$0xff]
      %v1238 = vld [vmem:[%s953 + $0x49] sm:$0xff]
      %v1239 = vld [vmem:[%s953 + $0x51] sm:$0xff]
      %v1240 = vld [vmem:[%s953 + $0x61] sm:$0xff]
      %v1241 = vld [vmem:[%s953 + $0x69] sm:$0xff]
      %v1242 = vld [vmem:[%s953 + $0x79] sm:$0xff]
      %v1243 = vld [vmem:[%s953 + $0x81] sm:$0xff]
      %v1244 = vld [vmem:[%s953 + $0x91] sm:$0xff]
      %v1245 = vld [vmem:[%s953 + $0x99] sm:$0xff]
      %v1246 = vld [vmem:[%s953 + $0xa9] sm:$0xff]
      %v1247 = vld [vmem:[%s953 + $0xb1] sm:$0xff]
      %v1248 = vld [vmem:[%s953 + $0xc1] sm:$0xff]
      %v1249 = vld [vmem:[%s953 + $0xc9] sm:$0xff]
      %v1250 = vld [vmem:[%s953 + $0xd9] sm:$0xff]
      %v1251 = vld [vmem:[%s953 + $0xe1] sm:$0xff]
      %v1252 = vld [vmem:[%s953 + $0xf1] sm:$0xff]
      %v1253 = vld [vmem:[%s953 + $0xf9] sm:$0xff]
      %v1254 = vld [vmem:[%s953 + $0x109] sm:$0xff]
      %v1255 = vld [vmem:[%s953 + $0x111] sm:$0xff]
      %v1256 = vld [vmem:[%s953 + $0x121] sm:$0xff]
      %v1257 = vld [vmem:[%s953 + $0x129] sm:$0xff]
      %v1258 = vld [vmem:[%s953 + $0x139] sm:$0xff]
      %v1259 = vld [vmem:[%s953 + $0x141] sm:$0xff]
      %v1260 = vld [vmem:[%s953 + $0x151] sm:$0xff]
      %v1261 = vld [vmem:[%s953 + $0x159] sm:$0xff]
      %v1262 = vld [vmem:[%s953 + $0x169] sm:$0xff]
      %v1263 = vld [vmem:[%s953 + $0x171] sm:$0xff]
      %s1264 = scalar_lea.vmem %s1, 16
      %v1265 = vld [vmem:[%s1264] sm:$0xf]
      %v1267 = vsel %vm249, %v1232, 0
      %v1270 = vsel %vm249, %v1233, 0
      %v1273 = vsel %vm249, %v1234, 0
      %v1276 = vsel %vm249, %v1235, 0
      %v1279 = vsel %vm249, %v1236, 0
      %v1282 = vsel %vm249, %v1237, 0
      %v1285 = vsel %vm249, %v1238, 0
      %v1288 = vsel %vm249, %v1239, 0
      %v1291 = vsel %vm249, %v1240, 0
      %v1294 = vsel %vm249, %v1241, 0
      %v1297 = vsel %vm249, %v1242, 0
      %v1300 = vsel %vm249, %v1243, 0
      %v1303 = vsel %vm249, %v1244, 0
      %v1306 = vsel %vm249, %v1245, 0
      %v1309 = vsel %vm249, %v1246, 0
      %v1312 = vsel %vm249, %v1247, 0
      %v1315 = vsel %vm249, %v1248, 0
      %v1318 = vsel %vm249, %v1249, 0
      %v1321 = vsel %vm249, %v1250, 0
      %v1324 = vsel %vm249, %v1251, 0
      %v1327 = vsel %vm249, %v1252, 0
      %v1330 = vsel %vm249, %v1253, 0
      %v1333 = vsel %vm249, %v1254, 0
      %v1336 = vsel %vm249, %v1255, 0
      %v1339 = vsel %vm249, %v1256, 0
      %v1342 = vsel %vm249, %v1257, 0
      %v1345 = vsel %vm249, %v1258, 0
      %v1348 = vsel %vm249, %v1259, 0
      %v1351 = vsel %vm249, %v1260, 0
      %v1354 = vsel %vm249, %v1261, 0
      %v1357 = vsel %vm249, %v1262, 0
      %v1360 = vsel %vm249, %v1263, 0
      %v1363 = vsel %vm346, %v1265, 0
      %1365 = vmatpush.msra.mxu0 0.0
      %1366 = vmatpush.msra.mxu0 0.0
      %1367 = vmatpush.msra.mxu0 0.0
      %1368 = vmatpush.msra.mxu0 0.0
      %1369 = vmatpush.msra.mxu0 0.0
      %1370 = vmatpush.msra.mxu0 0.0
      %1371 = vmatpush.msra.mxu0 0.0
      %1372 = vmatpush.msra.mxu0 0.0
      %1373 = vmatpush.msra.mxu0 0.0
      %1374 = vmatpush.msra.mxu0 0.0
      %1375 = vmatpush.msra.mxu0 0.0
      %1376 = vmatpush.msra.mxu0 0.0
      %1377 = vmatpush.msra.mxu0 0.0
      %1378 = vmatpush.msra.mxu0 0.0
      %1379 = vmatpush.msra.mxu0 0.0
      %1380 = vmatpush.msra.mxu0 %v1363
      %1381 = vmatmul.f32.gmra.mxu0 %v1267
      %v1382 = vpop.f32.mrf.mxu0
      %v1383 = vadd.f32 0.0, %v1382
      %1384 = vmatmul.f32.gmra.mxu0 %v1270
      %v1385 = vpop.f32.mrf.mxu0
      %v1386 = vadd.f32 0.0, %v1385
      %1387 = vmatmul.f32.gmra.mxu0 %v1273
      %v1388 = vpop.f32.mrf.mxu0
      %v1389 = vadd.f32 0.0, %v1388
      %1390 = vmatmul.f32.gmra.mxu0 %v1276
      %v1391 = vpop.f32.mrf.mxu0
      %v1392 = vadd.f32 0.0, %v1391
      %1393 = vmatmul.f32.gmra.mxu0 %v1279
      %v1394 = vpop.f32.mrf.mxu0
      %v1395 = vadd.f32 0.0, %v1394
      %1396 = vmatmul.f32.gmra.mxu0 %v1282
      %v1397 = vpop.f32.mrf.mxu0
      %v1398 = vadd.f32 0.0, %v1397
      %1399 = vmatmul.f32.gmra.mxu0 %v1285
      %v1400 = vpop.f32.mrf.mxu0
      %v1401 = vadd.f32 0.0, %v1400
      %1402 = vmatmul.f32.gmra.mxu0 %v1288
      %v1403 = vpop.f32.mrf.mxu0
      %v1404 = vadd.f32 0.0, %v1403
      %1405 = vmatmul.f32.gmra.mxu0 %v1291
      %v1406 = vpop.f32.mrf.mxu0
      %v1407 = vadd.f32 0.0, %v1406
      %1408 = vmatmul.f32.gmra.mxu0 %v1294
      %v1409 = vpop.f32.mrf.mxu0
      %v1410 = vadd.f32 0.0, %v1409
      %1411 = vmatmul.f32.gmra.mxu0 %v1297
      %v1412 = vpop.f32.mrf.mxu0
      %v1413 = vadd.f32 0.0, %v1412
      %1414 = vmatmul.f32.gmra.mxu0 %v1300
      %v1415 = vpop.f32.mrf.mxu0
      %v1416 = vadd.f32 0.0, %v1415
      %1417 = vmatmul.f32.gmra.mxu0 %v1303
      %v1418 = vpop.f32.mrf.mxu0
      %v1419 = vadd.f32 0.0, %v1418
      %1420 = vmatmul.f32.gmra.mxu0 %v1306
      %v1421 = vpop.f32.mrf.mxu0
      %v1422 = vadd.f32 0.0, %v1421
      %1423 = vmatmul.f32.gmra.mxu0 %v1309
      %v1424 = vpop.f32.mrf.mxu0
      %v1425 = vadd.f32 0.0, %v1424
      %1426 = vmatmul.f32.gmra.mxu0 %v1312
      %v1427 = vpop.f32.mrf.mxu0
      %v1428 = vadd.f32 0.0, %v1427
      %1429 = vmatmul.f32.gmra.mxu0 %v1315
      %v1430 = vpop.f32.mrf.mxu0
      %v1431 = vadd.f32 0.0, %v1430
      %1432 = vmatmul.f32.gmra.mxu0 %v1318
      %v1433 = vpop.f32.mrf.mxu0
      %v1434 = vadd.f32 0.0, %v1433
      %1435 = vmatmul.f32.gmra.mxu0 %v1321
      %v1436 = vpop.f32.mrf.mxu0
      %v1437 = vadd.f32 0.0, %v1436
      %1438 = vmatmul.f32.gmra.mxu0 %v1324
      %v1439 = vpop.f32.mrf.mxu0
      %v1440 = vadd.f32 0.0, %v1439
      %1441 = vmatmul.f32.gmra.mxu0 %v1327
      %v1442 = vpop.f32.mrf.mxu0
      %v1443 = vadd.f32 0.0, %v1442
      %1444 = vmatmul.f32.gmra.mxu0 %v1330
      %v1445 = vpop.f32.mrf.mxu0
      %v1446 = vadd.f32 0.0, %v1445
      %1447 = vmatmul.f32.gmra.mxu0 %v1333
      %v1448 = vpop.f32.mrf.mxu0
      %v1449 = vadd.f32 0.0, %v1448
      %1450 = vmatmul.f32.gmra.mxu0 %v1336
      %v1451 = vpop.f32.mrf.mxu0
      %v1452 = vadd.f32 0.0, %v1451
      %1453 = vmatmul.f32.gmra.mxu0 %v1339
      %v1454 = vpop.f32.mrf.mxu0
      %v1455 = vadd.f32 0.0, %v1454
      %1456 = vmatmul.f32.gmra.mxu0 %v1342
      %v1457 = vpop.f32.mrf.mxu0
      %v1458 = vadd.f32 0.0, %v1457
      %1459 = vmatmul.f32.gmra.mxu0 %v1345
      %v1460 = vpop.f32.mrf.mxu0
      %v1461 = vadd.f32 0.0, %v1460
      %1462 = vmatmul.f32.gmra.mxu0 %v1348
      %v1463 = vpop.f32.mrf.mxu0
      %v1464 = vadd.f32 0.0, %v1463
      %1465 = vmatmul.f32.gmra.mxu0 %v1351
      %v1466 = vpop.f32.mrf.mxu0
      %v1467 = vadd.f32 0.0, %v1466
      %1468 = vmatmul.f32.gmra.mxu0 %v1354
      %v1469 = vpop.f32.mrf.mxu0
      %v1470 = vadd.f32 0.0, %v1469
      %1471 = vmatmul.f32.gmra.mxu0 %v1357
      %v1472 = vpop.f32.mrf.mxu0
      %v1473 = vadd.f32 0.0, %v1472
      %1474 = vmatmul.f32.gmra.mxu0 %v1360
      %v1475 = vpop.f32.mrf.mxu0
      %v1476 = vadd.f32 0.0, %v1475
      %1477 = vdwg.mxu0
      %v1478 = vadd.f32 %v1200, %v1383
      %v1479 = vadd.f32 %v1201, %v1386
      %v1480 = vadd.f32 %v1202, %v1389
      %v1481 = vadd.f32 %v1203, %v1392
      %v1482 = vadd.f32 %v1204, %v1395
      %v1483 = vadd.f32 %v1205, %v1398
      %v1484 = vadd.f32 %v1206, %v1401
      %v1485 = vadd.f32 %v1207, %v1404
      %v1486 = vadd.f32 %v1208, %v1407
      %v1487 = vadd.f32 %v1209, %v1410
      %v1488 = vadd.f32 %v1210, %v1413
      %v1489 = vadd.f32 %v1211, %v1416
      %v1490 = vadd.f32 %v1212, %v1419
      %v1491 = vadd.f32 %v1213, %v1422
      %v1492 = vadd.f32 %v1214, %v1425
      %v1493 = vadd.f32 %v1215, %v1428
      %v1494 = vadd.f32 %v1216, %v1431
      %v1495 = vadd.f32 %v1217, %v1434
      %v1496 = vadd.f32 %v1218, %v1437
      %v1497 = vadd.f32 %v1219, %v1440
      %v1498 = vadd.f32 %v1220, %v1443
      %v1499 = vadd.f32 %v1221, %v1446
      %v1500 = vadd.f32 %v1222, %v1449
      %v1501 = vadd.f32 %v1223, %v1452
      %v1502 = vadd.f32 %v1224, %v1455
      %v1503 = vadd.f32 %v1225, %v1458
      %v1504 = vadd.f32 %v1226, %v1461
      %v1505 = vadd.f32 %v1227, %v1464
      %v1506 = vadd.f32 %v1228, %v1467
      %v1507 = vadd.f32 %v1229, %v1470
      %v1508 = vadd.f32 %v1230, %v1473
      %v1509 = vadd.f32 %v1231, %v1476
      %v1510 = vld [vmem:[%s953 + $0x2] sm:$0xff]
      %v1511 = vld [vmem:[%s953 + $0xa] sm:$0xff]
      %v1512 = vld [vmem:[%s953 + $0x1a] sm:$0xff]
      %v1513 = vld [vmem:[%s953 + $0x22] sm:$0xff]
      %v1514 = vld [vmem:[%s953 + $0x32] sm:$0xff]
      %v1515 = vld [vmem:[%s953 + $0x3a] sm:$0xff]
      %v1516 = vld [vmem:[%s953 + $0x4a] sm:$0xff]
      %v1517 = vld [vmem:[%s953 + $0x52] sm:$0xff]
      %v1518 = vld [vmem:[%s953 + $0x62] sm:$0xff]
      %v1519 = vld [vmem:[%s953 + $0x6a] sm:$0xff]
      %v1520 = vld [vmem:[%s953 + $0x7a] sm:$0xff]
      %v1521 = vld [vmem:[%s953 + $0x82] sm:$0xff]
      %v1522 = vld [vmem:[%s953 + $0x92] sm:$0xff]
      %v1523 = vld [vmem:[%s953 + $0x9a] sm:$0xff]
      %v1524 = vld [vmem:[%s953 + $0xaa] sm:$0xff]
      %v1525 = vld [vmem:[%s953 + $0xb2] sm:$0xff]
      %v1526 = vld [vmem:[%s953 + $0xc2] sm:$0xff]
      %v1527 = vld [vmem:[%s953 + $0xca] sm:$0xff]
      %v1528 = vld [vmem:[%s953 + $0xda] sm:$0xff]
      %v1529 = vld [vmem:[%s953 + $0xe2] sm:$0xff]
      %v1530 = vld [vmem:[%s953 + $0xf2] sm:$0xff]
      %v1531 = vld [vmem:[%s953 + $0xfa] sm:$0xff]
      %v1532 = vld [vmem:[%s953 + $0x10a] sm:$0xff]
      %v1533 = vld [vmem:[%s953 + $0x112] sm:$0xff]
      %v1534 = vld [vmem:[%s953 + $0x122] sm:$0xff]
      %v1535 = vld [vmem:[%s953 + $0x12a] sm:$0xff]
      %v1536 = vld [vmem:[%s953 + $0x13a] sm:$0xff]
      %v1537 = vld [vmem:[%s953 + $0x142] sm:$0xff]
      %v1538 = vld [vmem:[%s953 + $0x152] sm:$0xff]
      %v1539 = vld [vmem:[%s953 + $0x15a] sm:$0xff]
      %v1540 = vld [vmem:[%s953 + $0x16a] sm:$0xff]
      %v1541 = vld [vmem:[%s953 + $0x172] sm:$0xff]
      %s1542 = scalar_lea.vmem %s1, 20
      %v1543 = vld [vmem:[%s1542] sm:$0xf]
      %v1545 = vsel %vm249, %v1510, 0
      %v1548 = vsel %vm249, %v1511, 0
      %v1551 = vsel %vm249, %v1512, 0
      %v1554 = vsel %vm249, %v1513, 0
      %v1557 = vsel %vm249, %v1514, 0
      %v1560 = vsel %vm249, %v1515, 0
      %v1563 = vsel %vm249, %v1516, 0
      %v1566 = vsel %vm249, %v1517, 0
      %v1569 = vsel %vm249, %v1518, 0
      %v1572 = vsel %vm249, %v1519, 0
      %v1575 = vsel %vm249, %v1520, 0
      %v1578 = vsel %vm249, %v1521, 0
      %v1581 = vsel %vm249, %v1522, 0
      %v1584 = vsel %vm249, %v1523, 0
      %v1587 = vsel %vm249, %v1524, 0
      %v1590 = vsel %vm249, %v1525, 0
      %v1593 = vsel %vm249, %v1526, 0
      %v1596 = vsel %vm249, %v1527, 0
      %v1599 = vsel %vm249, %v1528, 0
      %v1602 = vsel %vm249, %v1529, 0
      %v1605 = vsel %vm249, %v1530, 0
      %v1608 = vsel %vm249, %v1531, 0
      %v1611 = vsel %vm249, %v1532, 0
      %v1614 = vsel %vm249, %v1533, 0
      %v1617 = vsel %vm249, %v1534, 0
      %v1620 = vsel %vm249, %v1535, 0
      %v1623 = vsel %vm249, %v1536, 0
      %v1626 = vsel %vm249, %v1537, 0
      %v1629 = vsel %vm249, %v1538, 0
      %v1632 = vsel %vm249, %v1539, 0
      %v1635 = vsel %vm249, %v1540, 0
      %v1638 = vsel %vm249, %v1541, 0
      %v1641 = vsel %vm346, %v1543, 0
      %1643 = vmatpush.msra.mxu0 0.0
      %1644 = vmatpush.msra.mxu0 0.0
      %1645 = vmatpush.msra.mxu0 0.0
      %1646 = vmatpush.msra.mxu0 0.0
      %1647 = vmatpush.msra.mxu0 0.0
      %1648 = vmatpush.msra.mxu0 0.0
      %1649 = vmatpush.msra.mxu0 0.0
      %1650 = vmatpush.msra.mxu0 0.0
      %1651 = vmatpush.msra.mxu0 0.0
      %1652 = vmatpush.msra.mxu0 0.0
      %1653 = vmatpush.msra.mxu0 0.0
      %1654 = vmatpush.msra.mxu0 0.0
      %1655 = vmatpush.msra.mxu0 0.0
      %1656 = vmatpush.msra.mxu0 0.0
      %1657 = vmatpush.msra.mxu0 0.0
      %1658 = vmatpush.msra.mxu0 %v1641
      %1659 = vmatmul.f32.gmra.mxu0 %v1545
      %v1660 = vpop.f32.mrf.mxu0
      %v1661 = vadd.f32 0.0, %v1660
      %1662 = vmatmul.f32.gmra.mxu0 %v1548
      %v1663 = vpop.f32.mrf.mxu0
      %v1664 = vadd.f32 0.0, %v1663
      %1665 = vmatmul.f32.gmra.mxu0 %v1551
      %v1666 = vpop.f32.mrf.mxu0
      %v1667 = vadd.f32 0.0, %v1666
      %1668 = vmatmul.f32.gmra.mxu0 %v1554
      %v1669 = vpop.f32.mrf.mxu0
      %v1670 = vadd.f32 0.0, %v1669
      %1671 = vmatmul.f32.gmra.mxu0 %v1557
      %v1672 = vpop.f32.mrf.mxu0
      %v1673 = vadd.f32 0.0, %v1672
      %1674 = vmatmul.f32.gmra.mxu0 %v1560
      %v1675 = vpop.f32.mrf.mxu0
      %v1676 = vadd.f32 0.0, %v1675
      %1677 = vmatmul.f32.gmra.mxu0 %v1563
      %v1678 = vpop.f32.mrf.mxu0
      %v1679 = vadd.f32 0.0, %v1678
      %1680 = vmatmul.f32.gmra.mxu0 %v1566
      %v1681 = vpop.f32.mrf.mxu0
      %v1682 = vadd.f32 0.0, %v1681
      %1683 = vmatmul.f32.gmra.mxu0 %v1569
      %v1684 = vpop.f32.mrf.mxu0
      %v1685 = vadd.f32 0.0, %v1684
      %1686 = vmatmul.f32.gmra.mxu0 %v1572
      %v1687 = vpop.f32.mrf.mxu0
      %v1688 = vadd.f32 0.0, %v1687
      %1689 = vmatmul.f32.gmra.mxu0 %v1575
      %v1690 = vpop.f32.mrf.mxu0
      %v1691 = vadd.f32 0.0, %v1690
      %1692 = vmatmul.f32.gmra.mxu0 %v1578
      %v1693 = vpop.f32.mrf.mxu0
      %v1694 = vadd.f32 0.0, %v1693
      %1695 = vmatmul.f32.gmra.mxu0 %v1581
      %v1696 = vpop.f32.mrf.mxu0
      %v1697 = vadd.f32 0.0, %v1696
      %1698 = vmatmul.f32.gmra.mxu0 %v1584
      %v1699 = vpop.f32.mrf.mxu0
      %v1700 = vadd.f32 0.0, %v1699
      %1701 = vmatmul.f32.gmra.mxu0 %v1587
      %v1702 = vpop.f32.mrf.mxu0
      %v1703 = vadd.f32 0.0, %v1702
      %1704 = vmatmul.f32.gmra.mxu0 %v1590
      %v1705 = vpop.f32.mrf.mxu0
      %v1706 = vadd.f32 0.0, %v1705
      %1707 = vmatmul.f32.gmra.mxu0 %v1593
      %v1708 = vpop.f32.mrf.mxu0
      %v1709 = vadd.f32 0.0, %v1708
      %1710 = vmatmul.f32.gmra.mxu0 %v1596
      %v1711 = vpop.f32.mrf.mxu0
      %v1712 = vadd.f32 0.0, %v1711
      %1713 = vmatmul.f32.gmra.mxu0 %v1599
      %v1714 = vpop.f32.mrf.mxu0
      %v1715 = vadd.f32 0.0, %v1714
      %1716 = vmatmul.f32.gmra.mxu0 %v1602
      %v1717 = vpop.f32.mrf.mxu0
      %v1718 = vadd.f32 0.0, %v1717
      %1719 = vmatmul.f32.gmra.mxu0 %v1605
      %v1720 = vpop.f32.mrf.mxu0
      %v1721 = vadd.f32 0.0, %v1720
      %1722 = vmatmul.f32.gmra.mxu0 %v1608
      %v1723 = vpop.f32.mrf.mxu0
      %v1724 = vadd.f32 0.0, %v1723
      %1725 = vmatmul.f32.gmra.mxu0 %v1611
      %v1726 = vpop.f32.mrf.mxu0
      %v1727 = vadd.f32 0.0, %v1726
      %1728 = vmatmul.f32.gmra.mxu0 %v1614
      %v1729 = vpop.f32.mrf.mxu0
      %v1730 = vadd.f32 0.0, %v1729
      %1731 = vmatmul.f32.gmra.mxu0 %v1617
      %v1732 = vpop.f32.mrf.mxu0
      %v1733 = vadd.f32 0.0, %v1732
      %1734 = vmatmul.f32.gmra.mxu0 %v1620
      %v1735 = vpop.f32.mrf.mxu0
      %v1736 = vadd.f32 0.0, %v1735
      %1737 = vmatmul.f32.gmra.mxu0 %v1623
      %v1738 = vpop.f32.mrf.mxu0
      %v1739 = vadd.f32 0.0, %v1738
      %1740 = vmatmul.f32.gmra.mxu0 %v1626
      %v1741 = vpop.f32.mrf.mxu0
      %v1742 = vadd.f32 0.0, %v1741
      %1743 = vmatmul.f32.gmra.mxu0 %v1629
      %v1744 = vpop.f32.mrf.mxu0
      %v1745 = vadd.f32 0.0, %v1744
      %1746 = vmatmul.f32.gmra.mxu0 %v1632
      %v1747 = vpop.f32.mrf.mxu0
      %v1748 = vadd.f32 0.0, %v1747
      %1749 = vmatmul.f32.gmra.mxu0 %v1635
      %v1750 = vpop.f32.mrf.mxu0
      %v1751 = vadd.f32 0.0, %v1750
      %1752 = vmatmul.f32.gmra.mxu0 %v1638
      %v1753 = vpop.f32.mrf.mxu0
      %v1754 = vadd.f32 0.0, %v1753
      %1755 = vdwg.mxu0
      %v1756 = vadd.f32 %v1478, %v1661
      %v1757 = vadd.f32 %v1479, %v1664
      %v1758 = vadd.f32 %v1480, %v1667
      %v1759 = vadd.f32 %v1481, %v1670
      %v1760 = vadd.f32 %v1482, %v1673
      %v1761 = vadd.f32 %v1483, %v1676
      %v1762 = vadd.f32 %v1484, %v1679
      %v1763 = vadd.f32 %v1485, %v1682
      %v1764 = vadd.f32 %v1486, %v1685
      %v1765 = vadd.f32 %v1487, %v1688
      %v1766 = vadd.f32 %v1488, %v1691
      %v1767 = vadd.f32 %v1489, %v1694
      %v1768 = vadd.f32 %v1490, %v1697
      %v1769 = vadd.f32 %v1491, %v1700
      %v1770 = vadd.f32 %v1492, %v1703
      %v1771 = vadd.f32 %v1493, %v1706
      %v1772 = vadd.f32 %v1494, %v1709
      %v1773 = vadd.f32 %v1495, %v1712
      %v1774 = vadd.f32 %v1496, %v1715
      %v1775 = vadd.f32 %v1497, %v1718
      %v1776 = vadd.f32 %v1498, %v1721
      %v1777 = vadd.f32 %v1499, %v1724
      %v1778 = vadd.f32 %v1500, %v1727
      %v1779 = vadd.f32 %v1501, %v1730
      %v1780 = vadd.f32 %v1502, %v1733
      %v1781 = vadd.f32 %v1503, %v1736
      %v1782 = vadd.f32 %v1504, %v1739
      %v1783 = vadd.f32 %v1505, %v1742
      %v1784 = vadd.f32 %v1506, %v1745
      %v1785 = vadd.f32 %v1507, %v1748
      %v1786 = vadd.f32 %v1508, %v1751
      %v1787 = vadd.f32 %v1509, %v1754
      %s1788 = scalar_lea.vmem %s172, 48
      %v1789 = vld [vmem:[%s1788] sm:$0xff]
      %v1790 = vld [vmem:[%s1788 + $0x8] sm:$0xff]
      %v1791 = vld [vmem:[%s1788 + $0x18] sm:$0xff]
      %v1792 = vld [vmem:[%s1788 + $0x20] sm:$0xff]
      %v1793 = vld [vmem:[%s1788 + $0x30] sm:$0xff]
      %v1794 = vld [vmem:[%s1788 + $0x38] sm:$0xff]
      %v1795 = vld [vmem:[%s1788 + $0x48] sm:$0xff]
      %v1796 = vld [vmem:[%s1788 + $0x50] sm:$0xff]
      %v1797 = vld [vmem:[%s1788 + $0x60] sm:$0xff]
      %v1798 = vld [vmem:[%s1788 + $0x68] sm:$0xff]
      %v1799 = vld [vmem:[%s1788 + $0x78] sm:$0xff]
      %v1800 = vld [vmem:[%s1788 + $0x80] sm:$0xff]
      %v1801 = vld [vmem:[%s1788 + $0x90] sm:$0xff]
      %v1802 = vld [vmem:[%s1788 + $0x98] sm:$0xff]
      %v1803 = vld [vmem:[%s1788 + $0xa8] sm:$0xff]
      %v1804 = vld [vmem:[%s1788 + $0xb0] sm:$0xff]
      %v1805 = vld [vmem:[%s1788 + $0xc0] sm:$0xff]
      %v1806 = vld [vmem:[%s1788 + $0xc8] sm:$0xff]
      %v1807 = vld [vmem:[%s1788 + $0xd8] sm:$0xff]
      %v1808 = vld [vmem:[%s1788 + $0xe0] sm:$0xff]
      %v1809 = vld [vmem:[%s1788 + $0xf0] sm:$0xff]
      %v1810 = vld [vmem:[%s1788 + $0xf8] sm:$0xff]
      %v1811 = vld [vmem:[%s1788 + $0x108] sm:$0xff]
      %v1812 = vld [vmem:[%s1788 + $0x110] sm:$0xff]
      %v1813 = vld [vmem:[%s1788 + $0x120] sm:$0xff]
      %v1814 = vld [vmem:[%s1788 + $0x128] sm:$0xff]
      %v1815 = vld [vmem:[%s1788 + $0x138] sm:$0xff]
      %v1816 = vld [vmem:[%s1788 + $0x140] sm:$0xff]
      %v1817 = vld [vmem:[%s1788 + $0x150] sm:$0xff]
      %v1818 = vld [vmem:[%s1788 + $0x158] sm:$0xff]
      %v1819 = vld [vmem:[%s1788 + $0x168] sm:$0xff]
      %v1820 = vld [vmem:[%s1788 + $0x170] sm:$0xff]
      %s1821 = scalar_lea.vmem %s1, 24
      %v1822 = vld [vmem:[%s1821] sm:$0xf]
      %v1824 = vsel %vm249, %v1789, 0
      %v1827 = vsel %vm249, %v1790, 0
      %v1830 = vsel %vm249, %v1791, 0
      %v1833 = vsel %vm249, %v1792, 0
      %v1836 = vsel %vm249, %v1793, 0
      %v1839 = vsel %vm249, %v1794, 0
      %v1842 = vsel %vm249, %v1795, 0
      %v1845 = vsel %vm249, %v1796, 0
      %v1848 = vsel %vm249, %v1797, 0
      %v1851 = vsel %vm249, %v1798, 0
      %v1854 = vsel %vm249, %v1799, 0
      %v1857 = vsel %vm249, %v1800, 0
      %v1860 = vsel %vm249, %v1801, 0
      %v1863 = vsel %vm249, %v1802, 0
      %v1866 = vsel %vm249, %v1803, 0
      %v1869 = vsel %vm249, %v1804, 0
      %v1872 = vsel %vm249, %v1805, 0
      %v1875 = vsel %vm249, %v1806, 0
      %v1878 = vsel %vm249, %v1807, 0
      %v1881 = vsel %vm249, %v1808, 0
      %v1884 = vsel %vm249, %v1809, 0
      %v1887 = vsel %vm249, %v1810, 0
      %v1890 = vsel %vm249, %v1811, 0
      %v1893 = vsel %vm249, %v1812, 0
      %v1896 = vsel %vm249, %v1813, 0
      %v1899 = vsel %vm249, %v1814, 0
      %v1902 = vsel %vm249, %v1815, 0
      %v1905 = vsel %vm249, %v1816, 0
      %v1908 = vsel %vm249, %v1817, 0
      %v1911 = vsel %vm249, %v1818, 0
      %v1914 = vsel %vm249, %v1819, 0
      %v1917 = vsel %vm249, %v1820, 0
      %v1920 = vsel %vm346, %v1822, 0
      %1922 = vmatpush.msra.mxu0 0.0
      %1923 = vmatpush.msra.mxu0 0.0
      %1924 = vmatpush.msra.mxu0 0.0
      %1925 = vmatpush.msra.mxu0 0.0
      %1926 = vmatpush.msra.mxu0 0.0
      %1927 = vmatpush.msra.mxu0 0.0
      %1928 = vmatpush.msra.mxu0 0.0
      %1929 = vmatpush.msra.mxu0 0.0
      %1930 = vmatpush.msra.mxu0 0.0
      %1931 = vmatpush.msra.mxu0 0.0
      %1932 = vmatpush.msra.mxu0 0.0
      %1933 = vmatpush.msra.mxu0 0.0
      %1934 = vmatpush.msra.mxu0 0.0
      %1935 = vmatpush.msra.mxu0 0.0
      %1936 = vmatpush.msra.mxu0 0.0
      %1937 = vmatpush.msra.mxu0 %v1920
      %1938 = vmatmul.f32.gmra.mxu0 %v1824
      %v1939 = vpop.f32.mrf.mxu0
      %v1940 = vadd.f32 0.0, %v1939
      %1941 = vmatmul.f32.gmra.mxu0 %v1827
      %v1942 = vpop.f32.mrf.mxu0
      %v1943 = vadd.f32 0.0, %v1942
      %1944 = vmatmul.f32.gmra.mxu0 %v1830
      %v1945 = vpop.f32.mrf.mxu0
      %v1946 = vadd.f32 0.0, %v1945
      %1947 = vmatmul.f32.gmra.mxu0 %v1833
      %v1948 = vpop.f32.mrf.mxu0
      %v1949 = vadd.f32 0.0, %v1948
      %1950 = vmatmul.f32.gmra.mxu0 %v1836
      %v1951 = vpop.f32.mrf.mxu0
      %v1952 = vadd.f32 0.0, %v1951
      %1953 = vmatmul.f32.gmra.mxu0 %v1839
      %v1954 = vpop.f32.mrf.mxu0
      %v1955 = vadd.f32 0.0, %v1954
      %1956 = vmatmul.f32.gmra.mxu0 %v1842
      %v1957 = vpop.f32.mrf.mxu0
      %v1958 = vadd.f32 0.0, %v1957
      %1959 = vmatmul.f32.gmra.mxu0 %v1845
      %v1960 = vpop.f32.mrf.mxu0
      %v1961 = vadd.f32 0.0, %v1960
      %1962 = vmatmul.f32.gmra.mxu0 %v1848
      %v1963 = vpop.f32.mrf.mxu0
      %v1964 = vadd.f32 0.0, %v1963
      %1965 = vmatmul.f32.gmra.mxu0 %v1851
      %v1966 = vpop.f32.mrf.mxu0
      %v1967 = vadd.f32 0.0, %v1966
      %1968 = vmatmul.f32.gmra.mxu0 %v1854
      %v1969 = vpop.f32.mrf.mxu0
      %v1970 = vadd.f32 0.0, %v1969
      %1971 = vmatmul.f32.gmra.mxu0 %v1857
      %v1972 = vpop.f32.mrf.mxu0
      %v1973 = vadd.f32 0.0, %v1972
      %1974 = vmatmul.f32.gmra.mxu0 %v1860
      %v1975 = vpop.f32.mrf.mxu0
      %v1976 = vadd.f32 0.0, %v1975
      %1977 = vmatmul.f32.gmra.mxu0 %v1863
      %v1978 = vpop.f32.mrf.mxu0
      %v1979 = vadd.f32 0.0, %v1978
      %1980 = vmatmul.f32.gmra.mxu0 %v1866
      %v1981 = vpop.f32.mrf.mxu0
      %v1982 = vadd.f32 0.0, %v1981
      %1983 = vmatmul.f32.gmra.mxu0 %v1869
      %v1984 = vpop.f32.mrf.mxu0
      %v1985 = vadd.f32 0.0, %v1984
      %1986 = vmatmul.f32.gmra.mxu0 %v1872
      %v1987 = vpop.f32.mrf.mxu0
      %v1988 = vadd.f32 0.0, %v1987
      %1989 = vmatmul.f32.gmra.mxu0 %v1875
      %v1990 = vpop.f32.mrf.mxu0
      %v1991 = vadd.f32 0.0, %v1990
      %1992 = vmatmul.f32.gmra.mxu0 %v1878
      %v1993 = vpop.f32.mrf.mxu0
      %v1994 = vadd.f32 0.0, %v1993
      %1995 = vmatmul.f32.gmra.mxu0 %v1881
      %v1996 = vpop.f32.mrf.mxu0
      %v1997 = vadd.f32 0.0, %v1996
      %1998 = vmatmul.f32.gmra.mxu0 %v1884
      %v1999 = vpop.f32.mrf.mxu0
      %v2000 = vadd.f32 0.0, %v1999
      %2001 = vmatmul.f32.gmra.mxu0 %v1887
      %v2002 = vpop.f32.mrf.mxu0
      %v2003 = vadd.f32 0.0, %v2002
      %2004 = vmatmul.f32.gmra.mxu0 %v1890
      %v2005 = vpop.f32.mrf.mxu0
      %v2006 = vadd.f32 0.0, %v2005
      %2007 = vmatmul.f32.gmra.mxu0 %v1893
      %v2008 = vpop.f32.mrf.mxu0
      %v2009 = vadd.f32 0.0, %v2008
      %2010 = vmatmul.f32.gmra.mxu0 %v1896
      %v2011 = vpop.f32.mrf.mxu0
      %v2012 = vadd.f32 0.0, %v2011
      %2013 = vmatmul.f32.gmra.mxu0 %v1899
      %v2014 = vpop.f32.mrf.mxu0
      %v2015 = vadd.f32 0.0, %v2014
      %2016 = vmatmul.f32.gmra.mxu0 %v1902
      %v2017 = vpop.f32.mrf.mxu0
      %v2018 = vadd.f32 0.0, %v2017
      %2019 = vmatmul.f32.gmra.mxu0 %v1905
      %v2020 = vpop.f32.mrf.mxu0
      %v2021 = vadd.f32 0.0, %v2020
      %2022 = vmatmul.f32.gmra.mxu0 %v1908
      %v2023 = vpop.f32.mrf.mxu0
      %v2024 = vadd.f32 0.0, %v2023
      %2025 = vmatmul.f32.gmra.mxu0 %v1911
      %v2026 = vpop.f32.mrf.mxu0
      %v2027 = vadd.f32 0.0, %v2026
      %2028 = vmatmul.f32.gmra.mxu0 %v1914
      %v2029 = vpop.f32.mrf.mxu0
      %v2030 = vadd.f32 0.0, %v2029
      %2031 = vmatmul.f32.gmra.mxu0 %v1917
      %v2032 = vpop.f32.mrf.mxu0
      %v2033 = vadd.f32 0.0, %v2032
      %2034 = vdwg.mxu0
      %v2035 = vadd.f32 %v1756, %v1940
      %v2036 = vadd.f32 %v1757, %v1943
      %v2037 = vadd.f32 %v1758, %v1946
      %v2038 = vadd.f32 %v1759, %v1949
      %v2039 = vadd.f32 %v1760, %v1952
      %v2040 = vadd.f32 %v1761, %v1955
      %v2041 = vadd.f32 %v1762, %v1958
      %v2042 = vadd.f32 %v1763, %v1961
      %v2043 = vadd.f32 %v1764, %v1964
      %v2044 = vadd.f32 %v1765, %v1967
      %v2045 = vadd.f32 %v1766, %v1970
      %v2046 = vadd.f32 %v1767, %v1973
      %v2047 = vadd.f32 %v1768, %v1976
      %v2048 = vadd.f32 %v1769, %v1979
      %v2049 = vadd.f32 %v1770, %v1982
      %v2050 = vadd.f32 %v1771, %v1985
      %v2051 = vadd.f32 %v1772, %v1988
      %v2052 = vadd.f32 %v1773, %v1991
      %v2053 = vadd.f32 %v1774, %v1994
      %v2054 = vadd.f32 %v1775, %v1997
      %v2055 = vadd.f32 %v1776, %v2000
      %v2056 = vadd.f32 %v1777, %v2003
      %v2057 = vadd.f32 %v1778, %v2006
      %v2058 = vadd.f32 %v1779, %v2009
      %v2059 = vadd.f32 %v1780, %v2012
      %v2060 = vadd.f32 %v1781, %v2015
      %v2061 = vadd.f32 %v1782, %v2018
      %v2062 = vadd.f32 %v1783, %v2021
      %v2063 = vadd.f32 %v1784, %v2024
      %v2064 = vadd.f32 %v1785, %v2027
      %v2065 = vadd.f32 %v1786, %v2030
      %v2066 = vadd.f32 %v1787, %v2033
      %v2067 = vld [vmem:[%s1788 + $0x1] sm:$0xff]
      %v2068 = vld [vmem:[%s1788 + $0x9] sm:$0xff]
      %v2069 = vld [vmem:[%s1788 + $0x19] sm:$0xff]
      %v2070 = vld [vmem:[%s1788 + $0x21] sm:$0xff]
      %v2071 = vld [vmem:[%s1788 + $0x31] sm:$0xff]
      %v2072 = vld [vmem:[%s1788 + $0x39] sm:$0xff]
      %v2073 = vld [vmem:[%s1788 + $0x49] sm:$0xff]
      %v2074 = vld [vmem:[%s1788 + $0x51] sm:$0xff]
      %v2075 = vld [vmem:[%s1788 + $0x61] sm:$0xff]
      %v2076 = vld [vmem:[%s1788 + $0x69] sm:$0xff]
      %v2077 = vld [vmem:[%s1788 + $0x79] sm:$0xff]
      %v2078 = vld [vmem:[%s1788 + $0x81] sm:$0xff]
      %v2079 = vld [vmem:[%s1788 + $0x91] sm:$0xff]
      %v2080 = vld [vmem:[%s1788 + $0x99] sm:$0xff]
      %v2081 = vld [vmem:[%s1788 + $0xa9] sm:$0xff]
      %v2082 = vld [vmem:[%s1788 + $0xb1] sm:$0xff]
      %v2083 = vld [vmem:[%s1788 + $0xc1] sm:$0xff]
      %v2084 = vld [vmem:[%s1788 + $0xc9] sm:$0xff]
      %v2085 = vld [vmem:[%s1788 + $0xd9] sm:$0xff]
      %v2086 = vld [vmem:[%s1788 + $0xe1] sm:$0xff]
      %v2087 = vld [vmem:[%s1788 + $0xf1] sm:$0xff]
      %v2088 = vld [vmem:[%s1788 + $0xf9] sm:$0xff]
      %v2089 = vld [vmem:[%s1788 + $0x109] sm:$0xff]
      %v2090 = vld [vmem:[%s1788 + $0x111] sm:$0xff]
      %v2091 = vld [vmem:[%s1788 + $0x121] sm:$0xff]
      %v2092 = vld [vmem:[%s1788 + $0x129] sm:$0xff]
      %v2093 = vld [vmem:[%s1788 + $0x139] sm:$0xff]
      %v2094 = vld [vmem:[%s1788 + $0x141] sm:$0xff]
      %v2095 = vld [vmem:[%s1788 + $0x151] sm:$0xff]
      %v2096 = vld [vmem:[%s1788 + $0x159] sm:$0xff]
      %v2097 = vld [vmem:[%s1788 + $0x169] sm:$0xff]
      %v2098 = vld [vmem:[%s1788 + $0x171] sm:$0xff]
      %s2099 = scalar_lea.vmem %s1, 28
      %v2100 = vld [vmem:[%s2099] sm:$0xf]
      %v2102 = vsel %vm249, %v2067, 0
      %v2105 = vsel %vm249, %v2068, 0
      %v2108 = vsel %vm249, %v2069, 0
      %v2111 = vsel %vm249, %v2070, 0
      %v2114 = vsel %vm249, %v2071, 0
      %v2117 = vsel %vm249, %v2072, 0
      %v2120 = vsel %vm249, %v2073, 0
      %v2123 = vsel %vm249, %v2074, 0
      %v2126 = vsel %vm249, %v2075, 0
      %v2129 = vsel %vm249, %v2076, 0
      %v2132 = vsel %vm249, %v2077, 0
      %v2135 = vsel %vm249, %v2078, 0
      %v2138 = vsel %vm249, %v2079, 0
      %v2141 = vsel %vm249, %v2080, 0
      %v2144 = vsel %vm249, %v2081, 0
      %v2147 = vsel %vm249, %v2082, 0
      %v2150 = vsel %vm249, %v2083, 0
      %v2153 = vsel %vm249, %v2084, 0
      %v2156 = vsel %vm249, %v2085, 0
      %v2159 = vsel %vm249, %v2086, 0
      %v2162 = vsel %vm249, %v2087, 0
      %v2165 = vsel %vm249, %v2088, 0
      %v2168 = vsel %vm249, %v2089, 0
      %v2171 = vsel %vm249, %v2090, 0
      %v2174 = vsel %vm249, %v2091, 0
      %v2177 = vsel %vm249, %v2092, 0
      %v2180 = vsel %vm249, %v2093, 0
      %v2183 = vsel %vm249, %v2094, 0
      %v2186 = vsel %vm249, %v2095, 0
      %v2189 = vsel %vm249, %v2096, 0
      %v2192 = vsel %vm249, %v2097, 0
      %v2195 = vsel %vm249, %v2098, 0
      %v2198 = vsel %vm346, %v2100, 0
      %2200 = vmatpush.msra.mxu0 0.0
      %2201 = vmatpush.msra.mxu0 0.0
      %2202 = vmatpush.msra.mxu0 0.0
      %2203 = vmatpush.msra.mxu0 0.0
      %2204 = vmatpush.msra.mxu0 0.0
      %2205 = vmatpush.msra.mxu0 0.0
      %2206 = vmatpush.msra.mxu0 0.0
      %2207 = vmatpush.msra.mxu0 0.0
      %2208 = vmatpush.msra.mxu0 0.0
      %2209 = vmatpush.msra.mxu0 0.0
      %2210 = vmatpush.msra.mxu0 0.0
      %2211 = vmatpush.msra.mxu0 0.0
      %2212 = vmatpush.msra.mxu0 0.0
      %2213 = vmatpush.msra.mxu0 0.0
      %2214 = vmatpush.msra.mxu0 0.0
      %2215 = vmatpush.msra.mxu0 %v2198
      %2216 = vmatmul.f32.gmra.mxu0 %v2102
      %v2217 = vpop.f32.mrf.mxu0
      %v2218 = vadd.f32 0.0, %v2217
      %2219 = vmatmul.f32.gmra.mxu0 %v2105
      %v2220 = vpop.f32.mrf.mxu0
      %v2221 = vadd.f32 0.0, %v2220
      %2222 = vmatmul.f32.gmra.mxu0 %v2108
      %v2223 = vpop.f32.mrf.mxu0
      %v2224 = vadd.f32 0.0, %v2223
      %2225 = vmatmul.f32.gmra.mxu0 %v2111
      %v2226 = vpop.f32.mrf.mxu0
      %v2227 = vadd.f32 0.0, %v2226
      %2228 = vmatmul.f32.gmra.mxu0 %v2114
      %v2229 = vpop.f32.mrf.mxu0
      %v2230 = vadd.f32 0.0, %v2229
      %2231 = vmatmul.f32.gmra.mxu0 %v2117
      %v2232 = vpop.f32.mrf.mxu0
      %v2233 = vadd.f32 0.0, %v2232
      %2234 = vmatmul.f32.gmra.mxu0 %v2120
      %v2235 = vpop.f32.mrf.mxu0
      %v2236 = vadd.f32 0.0, %v2235
      %2237 = vmatmul.f32.gmra.mxu0 %v2123
      %v2238 = vpop.f32.mrf.mxu0
      %v2239 = vadd.f32 0.0, %v2238
      %2240 = vmatmul.f32.gmra.mxu0 %v2126
      %v2241 = vpop.f32.mrf.mxu0
      %v2242 = vadd.f32 0.0, %v2241
      %2243 = vmatmul.f32.gmra.mxu0 %v2129
      %v2244 = vpop.f32.mrf.mxu0
      %v2245 = vadd.f32 0.0, %v2244
      %2246 = vmatmul.f32.gmra.mxu0 %v2132
      %v2247 = vpop.f32.mrf.mxu0
      %v2248 = vadd.f32 0.0, %v2247
      %2249 = vmatmul.f32.gmra.mxu0 %v2135
      %v2250 = vpop.f32.mrf.mxu0
      %v2251 = vadd.f32 0.0, %v2250
      %2252 = vmatmul.f32.gmra.mxu0 %v2138
      %v2253 = vpop.f32.mrf.mxu0
      %v2254 = vadd.f32 0.0, %v2253
      %2255 = vmatmul.f32.gmra.mxu0 %v2141
      %v2256 = vpop.f32.mrf.mxu0
      %v2257 = vadd.f32 0.0, %v2256
      %2258 = vmatmul.f32.gmra.mxu0 %v2144
      %v2259 = vpop.f32.mrf.mxu0
      %v2260 = vadd.f32 0.0, %v2259
      %2261 = vmatmul.f32.gmra.mxu0 %v2147
      %v2262 = vpop.f32.mrf.mxu0
      %v2263 = vadd.f32 0.0, %v2262
      %2264 = vmatmul.f32.gmra.mxu0 %v2150
      %v2265 = vpop.f32.mrf.mxu0
      %v2266 = vadd.f32 0.0, %v2265
      %2267 = vmatmul.f32.gmra.mxu0 %v2153
      %v2268 = vpop.f32.mrf.mxu0
      %v2269 = vadd.f32 0.0, %v2268
      %2270 = vmatmul.f32.gmra.mxu0 %v2156
      %v2271 = vpop.f32.mrf.mxu0
      %v2272 = vadd.f32 0.0, %v2271
      %2273 = vmatmul.f32.gmra.mxu0 %v2159
      %v2274 = vpop.f32.mrf.mxu0
      %v2275 = vadd.f32 0.0, %v2274
      %2276 = vmatmul.f32.gmra.mxu0 %v2162
      %v2277 = vpop.f32.mrf.mxu0
      %v2278 = vadd.f32 0.0, %v2277
      %2279 = vmatmul.f32.gmra.mxu0 %v2165
      %v2280 = vpop.f32.mrf.mxu0
      %v2281 = vadd.f32 0.0, %v2280
      %2282 = vmatmul.f32.gmra.mxu0 %v2168
      %v2283 = vpop.f32.mrf.mxu0
      %v2284 = vadd.f32 0.0, %v2283
      %2285 = vmatmul.f32.gmra.mxu0 %v2171
      %v2286 = vpop.f32.mrf.mxu0
      %v2287 = vadd.f32 0.0, %v2286
      %2288 = vmatmul.f32.gmra.mxu0 %v2174
      %v2289 = vpop.f32.mrf.mxu0
      %v2290 = vadd.f32 0.0, %v2289
      %2291 = vmatmul.f32.gmra.mxu0 %v2177
      %v2292 = vpop.f32.mrf.mxu0
      %v2293 = vadd.f32 0.0, %v2292
      %2294 = vmatmul.f32.gmra.mxu0 %v2180
      %v2295 = vpop.f32.mrf.mxu0
      %v2296 = vadd.f32 0.0, %v2295
      %2297 = vmatmul.f32.gmra.mxu0 %v2183
      %v2298 = vpop.f32.mrf.mxu0
      %v2299 = vadd.f32 0.0, %v2298
      %2300 = vmatmul.f32.gmra.mxu0 %v2186
      %v2301 = vpop.f32.mrf.mxu0
      %v2302 = vadd.f32 0.0, %v2301
      %2303 = vmatmul.f32.gmra.mxu0 %v2189
      %v2304 = vpop.f32.mrf.mxu0
      %v2305 = vadd.f32 0.0, %v2304
      %2306 = vmatmul.f32.gmra.mxu0 %v2192
      %v2307 = vpop.f32.mrf.mxu0
      %v2308 = vadd.f32 0.0, %v2307
      %2309 = vmatmul.f32.gmra.mxu0 %v2195
      %v2310 = vpop.f32.mrf.mxu0
      %v2311 = vadd.f32 0.0, %v2310
      %2312 = vdwg.mxu0
      %v2313 = vadd.f32 %v2035, %v2218
      %v2314 = vadd.f32 %v2036, %v2221
      %v2315 = vadd.f32 %v2037, %v2224
      %v2316 = vadd.f32 %v2038, %v2227
      %v2317 = vadd.f32 %v2039, %v2230
      %v2318 = vadd.f32 %v2040, %v2233
      %v2319 = vadd.f32 %v2041, %v2236
      %v2320 = vadd.f32 %v2042, %v2239
      %v2321 = vadd.f32 %v2043, %v2242
      %v2322 = vadd.f32 %v2044, %v2245
      %v2323 = vadd.f32 %v2045, %v2248
      %v2324 = vadd.f32 %v2046, %v2251
      %v2325 = vadd.f32 %v2047, %v2254
      %v2326 = vadd.f32 %v2048, %v2257
      %v2327 = vadd.f32 %v2049, %v2260
      %v2328 = vadd.f32 %v2050, %v2263
      %v2329 = vadd.f32 %v2051, %v2266
      %v2330 = vadd.f32 %v2052, %v2269
      %v2331 = vadd.f32 %v2053, %v2272
      %v2332 = vadd.f32 %v2054, %v2275
      %v2333 = vadd.f32 %v2055, %v2278
      %v2334 = vadd.f32 %v2056, %v2281
      %v2335 = vadd.f32 %v2057, %v2284
      %v2336 = vadd.f32 %v2058, %v2287
      %v2337 = vadd.f32 %v2059, %v2290
      %v2338 = vadd.f32 %v2060, %v2293
      %v2339 = vadd.f32 %v2061, %v2296
      %v2340 = vadd.f32 %v2062, %v2299
      %v2341 = vadd.f32 %v2063, %v2302
      %v2342 = vadd.f32 %v2064, %v2305
      %v2343 = vadd.f32 %v2065, %v2308
      %v2344 = vadd.f32 %v2066, %v2311
      %v2345 = vld [vmem:[%s1788 + $0x2] sm:$0xff]
      %v2346 = vld [vmem:[%s1788 + $0xa] sm:$0xff]
      %v2347 = vld [vmem:[%s1788 + $0x1a] sm:$0xff]
      %v2348 = vld [vmem:[%s1788 + $0x22] sm:$0xff]
      %v2349 = vld [vmem:[%s1788 + $0x32] sm:$0xff]
      %v2350 = vld [vmem:[%s1788 + $0x3a] sm:$0xff]
      %v2351 = vld [vmem:[%s1788 + $0x4a] sm:$0xff]
      %v2352 = vld [vmem:[%s1788 + $0x52] sm:$0xff]
      %v2353 = vld [vmem:[%s1788 + $0x62] sm:$0xff]
      %v2354 = vld [vmem:[%s1788 + $0x6a] sm:$0xff]
      %v2355 = vld [vmem:[%s1788 + $0x7a] sm:$0xff]
      %v2356 = vld [vmem:[%s1788 + $0x82] sm:$0xff]
      %v2357 = vld [vmem:[%s1788 + $0x92] sm:$0xff]
      %v2358 = vld [vmem:[%s1788 + $0x9a] sm:$0xff]
      %v2359 = vld [vmem:[%s1788 + $0xaa] sm:$0xff]
      %v2360 = vld [vmem:[%s1788 + $0xb2] sm:$0xff]
      %v2361 = vld [vmem:[%s1788 + $0xc2] sm:$0xff]
      %v2362 = vld [vmem:[%s1788 + $0xca] sm:$0xff]
      %v2363 = vld [vmem:[%s1788 + $0xda] sm:$0xff]
      %v2364 = vld [vmem:[%s1788 + $0xe2] sm:$0xff]
      %v2365 = vld [vmem:[%s1788 + $0xf2] sm:$0xff]
      %v2366 = vld [vmem:[%s1788 + $0xfa] sm:$0xff]
      %v2367 = vld [vmem:[%s1788 + $0x10a] sm:$0xff]
      %v2368 = vld [vmem:[%s1788 + $0x112] sm:$0xff]
      %v2369 = vld [vmem:[%s1788 + $0x122] sm:$0xff]
      %v2370 = vld [vmem:[%s1788 + $0x12a] sm:$0xff]
      %v2371 = vld [vmem:[%s1788 + $0x13a] sm:$0xff]
      %v2372 = vld [vmem:[%s1788 + $0x142] sm:$0xff]
      %v2373 = vld [vmem:[%s1788 + $0x152] sm:$0xff]
      %v2374 = vld [vmem:[%s1788 + $0x15a] sm:$0xff]
      %v2375 = vld [vmem:[%s1788 + $0x16a] sm:$0xff]
      %v2376 = vld [vmem:[%s1788 + $0x172] sm:$0xff]
      %s2377 = scalar_lea.vmem %s1, 32
      %v2378 = vld [vmem:[%s2377] sm:$0xf]
      %v2380 = vsel %vm249, %v2345, 0
      %v2383 = vsel %vm249, %v2346, 0
      %v2386 = vsel %vm249, %v2347, 0
      %v2389 = vsel %vm249, %v2348, 0
      %v2392 = vsel %vm249, %v2349, 0
      %v2395 = vsel %vm249, %v2350, 0
      %v2398 = vsel %vm249, %v2351, 0
      %v2401 = vsel %vm249, %v2352, 0
      %v2404 = vsel %vm249, %v2353, 0
      %v2407 = vsel %vm249, %v2354, 0
      %v2410 = vsel %vm249, %v2355, 0
      %v2413 = vsel %vm249, %v2356, 0
      %v2416 = vsel %vm249, %v2357, 0
      %v2419 = vsel %vm249, %v2358, 0
      %v2422 = vsel %vm249, %v2359, 0
      %v2425 = vsel %vm249, %v2360, 0
      %v2428 = vsel %vm249, %v2361, 0
      %v2431 = vsel %vm249, %v2362, 0
      %v2434 = vsel %vm249, %v2363, 0
      %v2437 = vsel %vm249, %v2364, 0
      %v2440 = vsel %vm249, %v2365, 0
      %v2443 = vsel %vm249, %v2366, 0
      %v2446 = vsel %vm249, %v2367, 0
      %v2449 = vsel %vm249, %v2368, 0
      %v2452 = vsel %vm249, %v2369, 0
      %v2455 = vsel %vm249, %v2370, 0
      %v2458 = vsel %vm249, %v2371, 0
      %v2461 = vsel %vm249, %v2372, 0
      %v2464 = vsel %vm249, %v2373, 0
      %v2467 = vsel %vm249, %v2374, 0
      %v2470 = vsel %vm249, %v2375, 0
      %v2473 = vsel %vm249, %v2376, 0
      %v2476 = vsel %vm346, %v2378, 0
      %2478 = vmatpush.msra.mxu0 0.0
      %2479 = vmatpush.msra.mxu0 0.0
      %2480 = vmatpush.msra.mxu0 0.0
      %2481 = vmatpush.msra.mxu0 0.0
      %2482 = vmatpush.msra.mxu0 0.0
      %2483 = vmatpush.msra.mxu0 0.0
      %2484 = vmatpush.msra.mxu0 0.0
      %2485 = vmatpush.msra.mxu0 0.0
      %2486 = vmatpush.msra.mxu0 0.0
      %2487 = vmatpush.msra.mxu0 0.0
      %2488 = vmatpush.msra.mxu0 0.0
      %2489 = vmatpush.msra.mxu0 0.0
      %2490 = vmatpush.msra.mxu0 0.0
      %2491 = vmatpush.msra.mxu0 0.0
      %2492 = vmatpush.msra.mxu0 0.0
      %2493 = vmatpush.msra.mxu0 %v2476
      %2494 = vmatmul.f32.gmra.mxu0 %v2380
      %v2495 = vpop.f32.mrf.mxu0
      %v2496 = vadd.f32 0.0, %v2495
      %2497 = vmatmul.f32.gmra.mxu0 %v2383
      %v2498 = vpop.f32.mrf.mxu0
      %v2499 = vadd.f32 0.0, %v2498
      %2500 = vmatmul.f32.gmra.mxu0 %v2386
      %v2501 = vpop.f32.mrf.mxu0
      %v2502 = vadd.f32 0.0, %v2501
      %2503 = vmatmul.f32.gmra.mxu0 %v2389
      %v2504 = vpop.f32.mrf.mxu0
      %v2505 = vadd.f32 0.0, %v2504
      %2506 = vmatmul.f32.gmra.mxu0 %v2392
      %v2507 = vpop.f32.mrf.mxu0
      %v2508 = vadd.f32 0.0, %v2507
      %2509 = vmatmul.f32.gmra.mxu0 %v2395
      %v2510 = vpop.f32.mrf.mxu0
      %v2511 = vadd.f32 0.0, %v2510
      %2512 = vmatmul.f32.gmra.mxu0 %v2398
      %v2513 = vpop.f32.mrf.mxu0
      %v2514 = vadd.f32 0.0, %v2513
      %2515 = vmatmul.f32.gmra.mxu0 %v2401
      %v2516 = vpop.f32.mrf.mxu0
      %v2517 = vadd.f32 0.0, %v2516
      %2518 = vmatmul.f32.gmra.mxu0 %v2404
      %v2519 = vpop.f32.mrf.mxu0
      %v2520 = vadd.f32 0.0, %v2519
      %2521 = vmatmul.f32.gmra.mxu0 %v2407
      %v2522 = vpop.f32.mrf.mxu0
      %v2523 = vadd.f32 0.0, %v2522
      %2524 = vmatmul.f32.gmra.mxu0 %v2410
      %v2525 = vpop.f32.mrf.mxu0
      %v2526 = vadd.f32 0.0, %v2525
      %2527 = vmatmul.f32.gmra.mxu0 %v2413
      %v2528 = vpop.f32.mrf.mxu0
      %v2529 = vadd.f32 0.0, %v2528
      %2530 = vmatmul.f32.gmra.mxu0 %v2416
      %v2531 = vpop.f32.mrf.mxu0
      %v2532 = vadd.f32 0.0, %v2531
      %2533 = vmatmul.f32.gmra.mxu0 %v2419
      %v2534 = vpop.f32.mrf.mxu0
      %v2535 = vadd.f32 0.0, %v2534
      %2536 = vmatmul.f32.gmra.mxu0 %v2422
      %v2537 = vpop.f32.mrf.mxu0
      %v2538 = vadd.f32 0.0, %v2537
      %2539 = vmatmul.f32.gmra.mxu0 %v2425
      %v2540 = vpop.f32.mrf.mxu0
      %v2541 = vadd.f32 0.0, %v2540
      %2542 = vmatmul.f32.gmra.mxu0 %v2428
      %v2543 = vpop.f32.mrf.mxu0
      %v2544 = vadd.f32 0.0, %v2543
      %2545 = vmatmul.f32.gmra.mxu0 %v2431
      %v2546 = vpop.f32.mrf.mxu0
      %v2547 = vadd.f32 0.0, %v2546
      %2548 = vmatmul.f32.gmra.mxu0 %v2434
      %v2549 = vpop.f32.mrf.mxu0
      %v2550 = vadd.f32 0.0, %v2549
      %2551 = vmatmul.f32.gmra.mxu0 %v2437
      %v2552 = vpop.f32.mrf.mxu0
      %v2553 = vadd.f32 0.0, %v2552
      %2554 = vmatmul.f32.gmra.mxu0 %v2440
      %v2555 = vpop.f32.mrf.mxu0
      %v2556 = vadd.f32 0.0, %v2555
      %2557 = vmatmul.f32.gmra.mxu0 %v2443
      %v2558 = vpop.f32.mrf.mxu0
      %v2559 = vadd.f32 0.0, %v2558
      %2560 = vmatmul.f32.gmra.mxu0 %v2446
      %v2561 = vpop.f32.mrf.mxu0
      %v2562 = vadd.f32 0.0, %v2561
      %2563 = vmatmul.f32.gmra.mxu0 %v2449
      %v2564 = vpop.f32.mrf.mxu0
      %v2565 = vadd.f32 0.0, %v2564
      %2566 = vmatmul.f32.gmra.mxu0 %v2452
      %v2567 = vpop.f32.mrf.mxu0
      %v2568 = vadd.f32 0.0, %v2567
      %2569 = vmatmul.f32.gmra.mxu0 %v2455
      %v2570 = vpop.f32.mrf.mxu0
      %v2571 = vadd.f32 0.0, %v2570
      %2572 = vmatmul.f32.gmra.mxu0 %v2458
      %v2573 = vpop.f32.mrf.mxu0
      %v2574 = vadd.f32 0.0, %v2573
      %2575 = vmatmul.f32.gmra.mxu0 %v2461
      %v2576 = vpop.f32.mrf.mxu0
      %v2577 = vadd.f32 0.0, %v2576
      %2578 = vmatmul.f32.gmra.mxu0 %v2464
      %v2579 = vpop.f32.mrf.mxu0
      %v2580 = vadd.f32 0.0, %v2579
      %2581 = vmatmul.f32.gmra.mxu0 %v2467
      %v2582 = vpop.f32.mrf.mxu0
      %v2583 = vadd.f32 0.0, %v2582
      %2584 = vmatmul.f32.gmra.mxu0 %v2470
      %v2585 = vpop.f32.mrf.mxu0
      %v2586 = vadd.f32 0.0, %v2585
      %2587 = vmatmul.f32.gmra.mxu0 %v2473
      %v2588 = vpop.f32.mrf.mxu0
      %v2589 = vadd.f32 0.0, %v2588
      %2590 = vdwg.mxu0
      %v2591 = vadd.f32 %v2313, %v2496
      %v2592 = vadd.f32 %v2314, %v2499
      %v2593 = vadd.f32 %v2315, %v2502
      %v2594 = vadd.f32 %v2316, %v2505
      %v2595 = vadd.f32 %v2317, %v2508
      %v2596 = vadd.f32 %v2318, %v2511
      %v2597 = vadd.f32 %v2319, %v2514
      %v2598 = vadd.f32 %v2320, %v2517
      %v2599 = vadd.f32 %v2321, %v2520
      %v2600 = vadd.f32 %v2322, %v2523
      %v2601 = vadd.f32 %v2323, %v2526
      %v2602 = vadd.f32 %v2324, %v2529
      %v2603 = vadd.f32 %v2325, %v2532
      %v2604 = vadd.f32 %v2326, %v2535
      %v2605 = vadd.f32 %v2327, %v2538
      %v2606 = vadd.f32 %v2328, %v2541
      %v2607 = vadd.f32 %v2329, %v2544
      %v2608 = vadd.f32 %v2330, %v2547
      %v2609 = vadd.f32 %v2331, %v2550
      %v2610 = vadd.f32 %v2332, %v2553
      %v2611 = vadd.f32 %v2333, %v2556
      %v2612 = vadd.f32 %v2334, %v2559
      %v2613 = vadd.f32 %v2335, %v2562
      %v2614 = vadd.f32 %v2336, %v2565
      %v2615 = vadd.f32 %v2337, %v2568
      %v2616 = vadd.f32 %v2338, %v2571
      %v2617 = vadd.f32 %v2339, %v2574
      %v2618 = vadd.f32 %v2340, %v2577
      %v2619 = vadd.f32 %v2341, %v2580
      %v2620 = vadd.f32 %v2342, %v2583
      %v2621 = vadd.f32 %v2343, %v2586
      %v2622 = vadd.f32 %v2344, %v2589
      %2623 = vst [vmem:[%s177] sm:$0xff] %v2591
      %2624 = vst [vmem:[%s177 + $0x8] sm:$0xff] %v2592
      %2625 = vst [vmem:[%s177 + $0x10] sm:$0xff] %v2593
      %2626 = vst [vmem:[%s177 + $0x18] sm:$0xff] %v2594
      %2627 = vst [vmem:[%s177 + $0x20] sm:$0xff] %v2595
      %2628 = vst [vmem:[%s177 + $0x28] sm:$0xff] %v2596
      %2629 = vst [vmem:[%s177 + $0x30] sm:$0xff] %v2597
      %2630 = vst [vmem:[%s177 + $0x38] sm:$0xff] %v2598
      %2631 = vst [vmem:[%s177 + $0x40] sm:$0xff] %v2599
      %2632 = vst [vmem:[%s177 + $0x48] sm:$0xff] %v2600
      %2633 = vst [vmem:[%s177 + $0x50] sm:$0xff] %v2601
      %2634 = vst [vmem:[%s177 + $0x58] sm:$0xff] %v2602
      %2635 = vst [vmem:[%s177 + $0x60] sm:$0xff] %v2603
      %2636 = vst [vmem:[%s177 + $0x68] sm:$0xff] %v2604
      %2637 = vst [vmem:[%s177 + $0x70] sm:$0xff] %v2605
      %2638 = vst [vmem:[%s177 + $0x78] sm:$0xff] %v2606
      %2639 = vst [vmem:[%s177 + $0x80] sm:$0xff] %v2607
      %2640 = vst [vmem:[%s177 + $0x88] sm:$0xff] %v2608
      %2641 = vst [vmem:[%s177 + $0x90] sm:$0xff] %v2609
      %2642 = vst [vmem:[%s177 + $0x98] sm:$0xff] %v2610
      %2643 = vst [vmem:[%s177 + $0xa0] sm:$0xff] %v2611
      %2644 = vst [vmem:[%s177 + $0xa8] sm:$0xff] %v2612
      %2645 = vst [vmem:[%s177 + $0xb0] sm:$0xff] %v2613
      %2646 = vst [vmem:[%s177 + $0xb8] sm:$0xff] %v2614
      %2647 = vst [vmem:[%s177 + $0xc0] sm:$0xff] %v2615
      %2648 = vst [vmem:[%s177 + $0xc8] sm:$0xff] %v2616
      %2649 = vst [vmem:[%s177 + $0xd0] sm:$0xff] %v2617
      %2650 = vst [vmem:[%s177 + $0xd8] sm:$0xff] %v2618
      %2651 = vst [vmem:[%s177 + $0xe0] sm:$0xff] %v2619
      %2652 = vst [vmem:[%s177 + $0xe8] sm:$0xff] %v2620
      %2653 = vst [vmem:[%s177 + $0xf0] sm:$0xff] %v2621
      %2654 = vst [vmem:[%s177 + $0xf8] sm:$0xff] %v2622
      %v2655 = vadd.f32 %v2591, %v2592
      %v2656 = vadd.f32 %v2655, %v2593
      %v2657 = vadd.f32 %v2656, %v2594
      %v2658 = vadd.f32 %v2657, %v2595
      %v2659 = vadd.f32 %v2658, %v2596
      %v2660 = vadd.f32 %v2659, %v2597
      %v2661 = vadd.f32 %v2660, %v2598
      %v2662 = vadd.f32 %v2661, %v2599
      %v2663 = vadd.f32 %v2662, %v2600
      %v2664 = vadd.f32 %v2663, %v2601
      %v2665 = vadd.f32 %v2664, %v2602
      %v2666 = vadd.f32 %v2665, %v2603
      %v2667 = vadd.f32 %v2666, %v2604
      %v2668 = vadd.f32 %v2667, %v2605
      %v2669 = vadd.f32 %v2668, %v2606
      %v2670 = vadd.f32 %v2669, %v2607
      %v2671 = vadd.f32 %v2670, %v2608
      %v2672 = vadd.f32 %v2671, %v2609
      %v2673 = vadd.f32 %v2672, %v2610
      %v2674 = vadd.f32 %v2673, %v2611
      %v2675 = vadd.f32 %v2674, %v2612
      %v2676 = vadd.f32 %v2675, %v2613
      %v2677 = vadd.f32 %v2676, %v2614
      %v2678 = vadd.f32 %v2677, %v2615
      %v2679 = vadd.f32 %v2678, %v2616
      %v2680 = vadd.f32 %v2679, %v2617
      %v2681 = vadd.f32 %v2680, %v2618
      %v2682 = vadd.f32 %v2681, %v2619
      %v2683 = vadd.f32 %v2682, %v2620
      %v2684 = vadd.f32 %v2683, %v2621
      %v2685 = vadd.f32 %v2684, %v2622
      %v2686 = vrot.slane %v2685, 4
      %v2687 = vadd.f32 %v2685, %v2686
      %v2688 = vrot.slane %v2687, 2
      %v2689 = vadd.f32 %v2687, %v2688
      %v2690 = vrot.slane %v2689, 1
      %v2691 = vadd.f32 %v2689, %v2690
      %v2692 = vmul.f32 %v2591, %v2591
      %v2693 = vmul.f32 %v2592, %v2592
      %v2694 = vmul.f32 %v2593, %v2593
      %v2695 = vmul.f32 %v2594, %v2594
      %v2696 = vmul.f32 %v2595, %v2595
      %v2697 = vmul.f32 %v2596, %v2596
      %v2698 = vmul.f32 %v2597, %v2597
      %v2699 = vmul.f32 %v2598, %v2598
      %v2700 = vmul.f32 %v2599, %v2599
      %v2701 = vmul.f32 %v2600, %v2600
      %v2702 = vmul.f32 %v2601, %v2601
      %v2703 = vmul.f32 %v2602, %v2602
      %v2704 = vmul.f32 %v2603, %v2603
      %v2705 = vmul.f32 %v2604, %v2604
      %v2706 = vmul.f32 %v2605, %v2605
      %v2707 = vmul.f32 %v2606, %v2606
      %v2708 = vmul.f32 %v2607, %v2607
      %v2709 = vmul.f32 %v2608, %v2608
      %v2710 = vmul.f32 %v2609, %v2609
      %v2711 = vmul.f32 %v2610, %v2610
      %v2712 = vmul.f32 %v2611, %v2611
      %v2713 = vmul.f32 %v2612, %v2612
      %v2714 = vmul.f32 %v2613, %v2613
      %v2715 = vmul.f32 %v2614, %v2614
      %v2716 = vmul.f32 %v2615, %v2615
      %v2717 = vmul.f32 %v2616, %v2616
      %v2718 = vmul.f32 %v2617, %v2617
      %v2719 = vmul.f32 %v2618, %v2618
      %v2720 = vmul.f32 %v2619, %v2619
      %v2721 = vmul.f32 %v2620, %v2620
      %v2722 = vmul.f32 %v2621, %v2621
      %v2723 = vmul.f32 %v2622, %v2622
      %v2724 = vadd.f32 %v2692, %v2693
      %v2725 = vadd.f32 %v2724, %v2694
      %v2726 = vadd.f32 %v2725, %v2695
      %v2727 = vadd.f32 %v2726, %v2696
      %v2728 = vadd.f32 %v2727, %v2697
      %v2729 = vadd.f32 %v2728, %v2698
      %v2730 = vadd.f32 %v2729, %v2699
      %v2731 = vadd.f32 %v2730, %v2700
      %v2732 = vadd.f32 %v2731, %v2701
      %v2733 = vadd.f32 %v2732, %v2702
      %v2734 = vadd.f32 %v2733, %v2703
      %v2735 = vadd.f32 %v2734, %v2704
      %v2736 = vadd.f32 %v2735, %v2705
      %v2737 = vadd.f32 %v2736, %v2706
      %v2738 = vadd.f32 %v2737, %v2707
      %v2739 = vadd.f32 %v2738, %v2708
      %v2740 = vadd.f32 %v2739, %v2709
      %v2741 = vadd.f32 %v2740, %v2710
      %v2742 = vadd.f32 %v2741, %v2711
      %v2743 = vadd.f32 %v2742, %v2712
      %v2744 = vadd.f32 %v2743, %v2713
      %v2745 = vadd.f32 %v2744, %v2714
      %v2746 = vadd.f32 %v2745, %v2715
      %v2747 = vadd.f32 %v2746, %v2716
      %v2748 = vadd.f32 %v2747, %v2717
      %v2749 = vadd.f32 %v2748, %v2718
      %v2750 = vadd.f32 %v2749, %v2719
      %v2751 = vadd.f32 %v2750, %v2720
      %v2752 = vadd.f32 %v2751, %v2721
      %v2753 = vadd.f32 %v2752, %v2722
      %v2754 = vadd.f32 %v2753, %v2723
      %v2755 = vrot.slane %v2754, 4
      %v2756 = vadd.f32 %v2754, %v2755
      %v2757 = vrot.slane %v2756, 2
      %v2758 = vadd.f32 %v2756, %v2757
      %v2759 = vrot.slane %v2758, 1
      %v2760 = vadd.f32 %v2758, %v2759
      %vm2761 = vcmask 1040384
      %v2762 = vsel %vm2761, %v2691, %v2760
      %2763 = vst [vmem:[%s181] sm:$0x3] %v2762
      %p2764 = scmp.lt.s32.totalorder %s15, 1
      %s2765 = scalar_select %p2764, %s15, 1
      %s2766 = smul.addr %s2765, 32
      %s2767 = smul.addr %s2766, 8
      %s2768 = scalar_lea.vmem %s2, %s2767
      %p2769 = scmp.lt.s32.totalorder %s15, 1
      %s2770 = scalar_select %p2769, %s15, 1
      %s2771 = smul.addr %s2770, 2
      %s2772 = scalar_lea.vmem %s3, %s2771
      // Predicated region
      $region29: #{non_residual_block.3} parent=27 // pred_check
        %p2773 = pneg %p80
      $region30: #{non_residual_block.3} parent=27 // pred_check_branch
        %2775 = sbr.rel (%p2773) target = $region32
      $region31: #{non_residual_block.3} parent=27 // pred_region
        _
      $region32: #{non_residual_block.3} parent=27 // pred_fallthru
        _
      // Predicated region
      $region33: #{non_residual_block.3} parent=27 // pred_check
        %p2776 = pneg %p106
      $region34: #{non_residual_block.3} parent=27 // pred_check_branch
        %2778 = sbr.rel (%p2776) target = $region36
      $region35: #{non_residual_block.3} parent=27 // pred_region
        _
      $region36: #{non_residual_block.3} parent=27 // pred_fallthru
        _
    $region28: #{non_residual_block.3} parent=5 // pred_fallthru
      _
    %p2779 = scmp.le.s32.totalorder 2, %s10
    // Predicated region
    $region37: #{non_residual_block.3} parent=5 // pred_check
      %p2780 = pneg %p2779
    $region38: #{non_residual_block.3} parent=5 // pred_check_branch
      %2782 = sbr.rel (%p2780) target = $region40
    $region39: #{non_residual_block.3} parent=5 // pred_region
      %s2783 = ssub.s32 %s10, 2
      // Predicated region
      $region41: #{non_residual_block.3} parent=39 // pred_check
        %p2784 = pneg %p86
      $region42: #{non_residual_block.3} parent=39 // pred_check_branch
        %2786 = sbr.rel (%p2784) target = $region44
      $region43: #{non_residual_block.3} parent=39 // pred_region
        %p2787 = scmp.lt.s32.totalorder %s16, 1
        %s2788 = scalar_select %p2787, %s16, 1
        %s2789 = smul.addr %s2788, 32
        %s2790 = smul.addr %s2789, 8
        %s2791 = scalar_lea.vmem %s2, %s2790
      $region44: #{non_residual_block.3} parent=39 // pred_fallthru
        _
      // Predicated region
      $region45: #{non_residual_block.3} parent=39 // pred_check
        %p2792 = pneg %p112
      $region46: #{non_residual_block.3} parent=39 // pred_check_branch
        %2794 = sbr.rel (%p2792) target = $region48
      $region47: #{non_residual_block.3} parent=39 // pred_region
        %p2795 = scmp.lt.s32.totalorder %s16, 1
        %s2796 = scalar_select %p2795, %s16, 1
        %s2797 = smul.addr %s2796, 2
        %s2798 = scalar_lea.vmem %s3, %s2797
      $region48: #{non_residual_block.3} parent=39 // pred_fallthru
        _
    $region40: #{non_residual_block.3} parent=5 // pred_fallthru
      _
  $region6: #{non_residual_block.3} parent=0 // loop_footer
    %s14 = sadd.s32 1, %s10
  $region7: #{non_residual_block.3} parent=0 // loop_footer_branch
    %9 = sbr.rel target = $region3
  $region8: #{non_residual_block.3} parent=0 // loop_exit
    _

</llo_original>
